<compile_context>
chip_gen: v5e
topology: v5e:2x2
jax: 0.10.0
libtpu: 0.0.40
codegen_flags: <defaults>
</compile_context>

<pallas_src>
import functools

import jax
import jax.numpy as jnp
from jax.experimental import pallas as pl
from jax.experimental.pallas import tpu as pltpu

FEAT = 128          # backbone feature width (Linear in_features)
NUM_CLASSES = 10    # Linear out_features
NC_PAD = 128        # lane-dense padded classifier width
TILE_B = 32         # batch tile (sublane-aligned; see VMEM note above)


def _cifar_kernel(x_ref, wp_ref, bp_ref, wc_ref, bc_ref, out_ref, *, hw):
    """Fused backbone-stand-in + classifier head for one batch tile.

    x_ref  : [TB*HW, C]       bf16 input tile (pixels on sublanes, C on lanes)
    wp_ref : [C, FEAT]        bf16 1x1-conv weight (resident)
    bp_ref : [1, FEAT]        f32 projection bias (lane vector)
    wc_ref : [FEAT, NC_PAD]   f32 classifier weight, zero-padded (resident)
    bc_ref : [1, NC_PAD]      f32 classifier bias, zero-padded
    out_ref: [TB, NC_PAD]     f32 logits tile (lane-dense, unmasked store)
    """
    tb = out_ref.shape[0]
    feat = wp_ref.shape[1]

    # 1x1-conv projection on the MXU: [TB*HW, C] @ [C, FEAT] -> f32.
    proj = jnp.dot(x_ref[...], wp_ref[...],
                   preferred_element_type=jnp.float32)          # [TB*HW, FEAT]

    # bias (lane vector broadcasts over sublanes for free) + ReLU, in f32.
    act = jnp.maximum(proj + bp_ref[...], 0.0)

    # global average pool: sublane-group reduce over HW; FEAT stays on lanes.
    feats = jnp.sum(act.reshape(tb, hw, feat), axis=1) * (1.0 / hw)  # [TB, FEAT]

    # classifier head: Linear(128, num_classes), lane-dense padded output.
    logits = jnp.dot(feats, wc_ref[...], preferred_element_type=jnp.float32)
    out_ref[...] = logits + bc_ref[...]


def cifar_classifier_forward(x_nchw, w_proj, b_proj, w_cls, b_cls,
                             freeze_backbone=False, tile_b=TILE_B):
    """x_nchw: [B, C, H, W] f32. Returns logits [B, NUM_CLASSES]."""
    B, C, H, W = x_nchw.shape
    HW = H * W
    NC = w_cls.shape[1]

    # NCHW -> [B*HW, C] (one XLA transpose) so the kernel's projection is a
    # single MXU matmul with pixels on sublanes and FEAT on lanes; streamed
    # in bf16 to halve HBM/VMEM traffic of the dominant input stream.
    x_pix = jnp.transpose(x_nchw, (0, 2, 3, 1)).reshape(B * HW, C)
    x_pix = x_pix.astype(jnp.bfloat16)

    # batch tile: multiple of 8 sublanes, clamped to the (8-padded) batch.
    b_pad8 = pl.cdiv(B, 8) * 8
    tile_b = max(8, min(tile_b, b_pad8))
    n_tiles = pl.cdiv(B, tile_b)
    B_pad = n_tiles * tile_b
    if B_pad != B:
        x_pix = jnp.pad(x_pix, ((0, (B_pad - B) * HW), (0, 0)))

    wp = jnp.asarray(w_proj, jnp.float32).astype(jnp.bfloat16)     # [C, FEAT]
    bp = jnp.asarray(b_proj, jnp.float32).reshape(1, FEAT)          # [1, FEAT]

    # lane-dense classifier params: pad NC -> 128 zero columns (f32, resident).
    wc_pad = jnp.zeros((FEAT, NC_PAD), jnp.float32)
    wc_pad = wc_pad.at[:, :NC].set(jnp.asarray(w_cls, jnp.float32))
    bc_pad = jnp.zeros((1, NC_PAD), jnp.float32)
    bc_pad = bc_pad.at[0, :NC].set(jnp.asarray(b_cls, jnp.float32))

    kernel = functools.partial(_cifar_kernel, hw=HW)

    flops = 2 * B_pad * HW * C * FEAT + 2 * B_pad * FEAT * NC_PAD
    bytes_accessed = (2 * (x_pix.size + wp.size)
                      + 4 * (bp.size + wc_pad.size + bc_pad.size
                             + B_pad * NC_PAD))

    out = pl.pallas_call(
        kernel,
        out_shape=jax.ShapeDtypeStruct((B_pad, NC_PAD), jnp.float32),
        grid=(n_tiles,),
        in_specs=[
            pl.BlockSpec((tile_b * HW, C), lambda i: (i, 0)),    # streamed
            pl.BlockSpec((C, FEAT), lambda i: (0, 0)),           # resident
            pl.BlockSpec((1, FEAT), lambda i: (0, 0)),
            pl.BlockSpec((FEAT, NC_PAD), lambda i: (0, 0)),
            pl.BlockSpec((1, NC_PAD), lambda i: (0, 0)),
        ],
        out_specs=pl.BlockSpec((tile_b, NC_PAD), lambda i: (i, 0)),
        compiler_params=pltpu.CompilerParams(
            dimension_semantics=("parallel",),       # megacore-shard on v7x
            vmem_limit_bytes=32 * 1024 * 1024,       # safe on v5e/v6e/v7x
        ),
        cost_estimate=pl.CostEstimate(
            flops=flops, transcendentals=0, bytes_accessed=bytes_accessed),
    )(x_pix, wp, bp, wc_pad, bc_pad)

    # freeze_backbone only affects gradients (features.detach()); forward
    # values are identical, so nothing to do here for inference.
    del freeze_backbone
    return out[:B, :NC]


def _reference_forward(x_nchw, w_proj, b_proj, w_cls, b_cls):
    """Pure-JAX reference, mirroring the kernel's bf16 input rounding."""
    B, C, H, W = x_nchw.shape
    xb = x_nchw.astype(jnp.bfloat16).astype(jnp.float32)
    wpb = jnp.asarray(w_proj, jnp.float32).astype(jnp.bfloat16).astype(jnp.float32)
    xp = jnp.transpose(xb, (0, 2, 3, 1)).reshape(B, H * W, C)
    px = jnp.maximum(
        jnp.einsum("bpc,cf->bpf", xp, wpb,
                   precision=jax.lax.Precision.HIGHEST) + b_proj, 0.0)
    feats = jnp.mean(px, axis=1)                       # [B, 128] == squeeze()
    return jnp.dot(feats, w_cls, precision=jax.lax.Precision.HIGHEST) + b_cls


if __name__ == "__main__":
    key = jax.random.PRNGKey(0)
    k_x, k_wp, k_bp, k_wc, k_bc = jax.random.split(key, 5)

    # small CIFAR-like input: batch=16, channels=4, 16x16 spatial
    B, C, H, W = 16, 4, 16, 16
    x = jax.random.normal(k_x, (B, C, H, W), dtype=jnp.float32)

    # deterministic synthetic parameters
    w_proj = jax.random.normal(k_wp, (C, FEAT), dtype=jnp.float32) * 0.1
    b_proj = jax.random.normal(k_bp, (FEAT,), dtype=jnp.float32) * 0.01
    w_cls = jax.random.normal(k_wc, (FEAT, NUM_CLASSES), dtype=jnp.float32) * 0.1
    b_cls = jax.random.normal(k_bc, (NUM_CLASSES,), dtype=jnp.float32) * 0.01

    logits = cifar_classifier_forward(x, w_proj, b_proj, w_cls, b_cls)
    logits = jax.block_until_ready(logits)

    ref = _reference_forward(x, w_proj, b_proj, w_cls, b_cls)
    assert logits.shape == (B, NUM_CLASSES)
    max_diff = float(jnp.max(jnp.abs(logits - ref)))
    # bf16 input rounding is mirrored in the reference; remaining differences
    # are summation-order / matmul-precision only.
    assert jnp.allclose(logits, ref, atol=2e-3, rtol=2e-3), (
        "mismatch vs reference; max |diff| = %e" % max_diff)

    print("KERNEL_OK")
</pallas_src>

<mosaic_0001>
module attributes {stable_mosaic.version = 11 : i64} {
  func.func @_cifar_kernel(%arg0: i32, %arg1: memref<4096x4xbf16, #tpu.memory_space<vmem>>, %arg2: memref<4x128xbf16, #tpu.memory_space<vmem>>, %arg3: memref<1x128xf32, #tpu.memory_space<vmem>>, %arg4: memref<128x128xf32, #tpu.memory_space<vmem>>, %arg5: memref<1x128xf32, #tpu.memory_space<vmem>>, %arg6: memref<16x128xf32, #tpu.memory_space<vmem>>) attributes {dimension_semantics = [#tpu.dimension_semantics<parallel>], iteration_bounds = array<i64: 1>, scalar_prefetch = 0 : i64, scratch_operands = 0 : i64, tpu.core_type = #tpu.core_type<tc>, window_params = [{transform_indices = @transform_0, window_bounds = array<i64: 4096, 4>}, {pipeline_mode = #tpu.pipeline_mode<synchronous>, transform_indices = @transform_1, window_bounds = array<i64: 4, 128>}, {pipeline_mode = #tpu.pipeline_mode<synchronous>, transform_indices = @transform_2, window_bounds = array<i64: 1, 128>}, {pipeline_mode = #tpu.pipeline_mode<synchronous>, transform_indices = @transform_3, window_bounds = array<i64: 128, 128>}, {pipeline_mode = #tpu.pipeline_mode<synchronous>, transform_indices = @transform_4, window_bounds = array<i64: 1, 128>}, {transform_indices = @transform_5, window_bounds = array<i64: 16, 128>}]} {
    %c0 = arith.constant 0 : index
    %c0_0 = arith.constant 0 : index
    %0 = vector.load %arg1[%c0, %c0_0] : memref<4096x4xbf16, #tpu.memory_space<vmem>>, vector<4096x4xbf16>
    %c0_1 = arith.constant 0 : index
    %c0_2 = arith.constant 0 : index
    %1 = vector.load %arg2[%c0_1, %c0_2] : memref<4x128xbf16, #tpu.memory_space<vmem>>, vector<4x128xbf16>
    %cst = arith.constant dense<0.000000e+00> : vector<4096x128xf32>
    %2 = tpu.matmul %0, %1, %cst {dimension_numbers = #tpu.dot_dimension_numbers<[1], [0], [0], [1], [0, 0, 1, 1], [], []>} : vector<4096x4xbf16>, vector<4x128xbf16>, vector<4096x128xf32> -> vector<4096x128xf32>
    %c0_3 = arith.constant 0 : index
    %c0_4 = arith.constant 0 : index
    %3 = vector.load %arg3[%c0_3, %c0_4] : memref<1x128xf32, #tpu.memory_space<vmem>>, vector<1x128xf32>
    %4 = vector.broadcast %3 : vector<1x128xf32> to vector<4096x128xf32>
    %5 = arith.addf %2, %4 : vector<4096x128xf32>
    %cst_5 = arith.constant 0.000000e+00 : f32
    %6 = vector.broadcast %cst_5 : f32 to vector<4096x128xf32>
    %7 = arith.maximumf %5, %6 : vector<4096x128xf32>
    %8 = vector.shape_cast %7 : vector<4096x128xf32> to vector<16x256x128xf32>
    %cst_6 = arith.constant dense<0.000000e+00> : vector<16x128xf32>
    %9 = vector.multi_reduction <add>, %8, %cst_6 [1] : vector<16x256x128xf32> to vector<16x128xf32>
    %cst_7 = arith.constant 3.906250e-03 : f32
    %10 = vector.broadcast %cst_7 : f32 to vector<16x128xf32>
    %11 = arith.mulf %9, %10 : vector<16x128xf32>
    %c0_8 = arith.constant 0 : index
    %c0_9 = arith.constant 0 : index
    %12 = vector.load %arg4[%c0_8, %c0_9] : memref<128x128xf32, #tpu.memory_space<vmem>>, vector<128x128xf32>
    %cst_10 = arith.constant dense<0.000000e+00> : vector<16x128xf32>
    %13 = tpu.matmul %11, %12, %cst_10 {dimension_numbers = #tpu.dot_dimension_numbers<[1], [0], [0], [1], [0, 0, 1, 1], [], []>} : vector<16x128xf32>, vector<128x128xf32>, vector<16x128xf32> -> vector<16x128xf32>
    %c0_11 = arith.constant 0 : index
    %c0_12 = arith.constant 0 : index
    %14 = vector.load %arg5[%c0_11, %c0_12] : memref<1x128xf32, #tpu.memory_space<vmem>>, vector<1x128xf32>
    %15 = vector.broadcast %14 : vector<1x128xf32> to vector<16x128xf32>
    %16 = arith.addf %13, %15 : vector<16x128xf32>
    %c0_13 = arith.constant 0 : index
    %c0_14 = arith.constant 0 : index
    %17 = vector.load %arg6[%c0_13, %c0_14] : memref<16x128xf32, #tpu.memory_space<vmem>>, vector<16x128xf32>
    tpu.vector_store %arg6[%c0_13, %c0_14], %16 {strides = array<i32>} : memref<16x128xf32, #tpu.memory_space<vmem>>, vector<16x128xf32>,
    return
  }
  func.func @transform_0(%arg0: i32) -> (i32, i32) {
    %c0_i32 = arith.constant 0 : i32
    %c0_i32_0 = arith.constant 0 : i32
    return %arg0, %c0_i32 : i32, i32
  }
  func.func @transform_1(%arg0: i32) -> (i32, i32) {
    %c0_i32 = arith.constant 0 : i32
    %c0_i32_0 = arith.constant 0 : i32
    %c0_i32_1 = arith.constant 0 : i32
    return %c0_i32, %c0_i32_0 : i32, i32
  }
  func.func @transform_2(%arg0: i32) -> (i32, i32) {
    %c0_i32 = arith.constant 0 : i32
    %c0_i32_0 = arith.constant 0 : i32
    %c0_i32_1 = arith.constant 0 : i32
    return %c0_i32, %c0_i32_0 : i32, i32
  }
  func.func @transform_3(%arg0: i32) -> (i32, i32) {
    %c0_i32 = arith.constant 0 : i32
    %c0_i32_0 = arith.constant 0 : i32
    %c0_i32_1 = arith.constant 0 : i32
    return %c0_i32, %c0_i32_0 : i32, i32
  }
  func.func @transform_4(%arg0: i32) -> (i32, i32) {
    %c0_i32 = arith.constant 0 : i32
    %c0_i32_0 = arith.constant 0 : i32
    %c0_i32_1 = arith.constant 0 : i32
    return %c0_i32, %c0_i32_0 : i32, i32
  }
  func.func @transform_5(%arg0: i32) -> (i32, i32) {
    %c0_i32 = arith.constant 0 : i32
    %c0_i32_0 = arith.constant 0 : i32
    return %arg0, %c0_i32 : i32, i32
  }
}

</mosaic_0001>

<llo_original>
// kernel: tpu_custom_call.1
$region0: #{tpu_custom_call.1}
  #allocation0 [shape = 'u32[]', space=smem, size = 0x4, offset = 0x4, fixed_abs, tag = 'smem constant byte address 0x4 - core index']
  #allocation1 [shape = 'u32[72,128]{1,0:T(1,128)}', space=vmem, size = 0x9000, scoped, tag = 'internal scratch']
  %s0 = inlined_call_operand.vmem [shape: bf16[4096,4], index: 0, kind: input, shape index: {}]
  %s1 = inlined_call_operand.vmem [shape: bf16[4,128], index: 1, kind: input, shape index: {}]
  %s2 = inlined_call_operand.vmem [shape: f32[1,128], index: 2, kind: input, shape index: {}]
  %s3 = inlined_call_operand.vmem [shape: f32[128,128], index: 3, kind: input, shape index: {}]
  %s4 = inlined_call_operand.vmem [shape: f32[1,128], index: 4, kind: input, shape index: {}]
  %s5 = inlined_call_operand.hbm [shape: f32[16,128], index: 5, kind: output, shape index: {}]
  %s6 = sld [smem:[#allocation0]]
  $region30: #{tpu_custom_call.1} parent=0
    _
  %s8 = ssub.s32 1, %s6
  %s9 = scalar_select 0, %s8, %s6
  $region1: #{tpu_custom_call.1} parent=0
    #allocation2 [shape = 'u8[8192]{0}', space=vmem, size = 0x2000, scoped, tag = 'output window, operand 0, single buffered']
    #allocation3 [shape = 's32[1]{0}', space=sflag, size = 0x4, scoped, tag = 'scoped memory for tpu_custom_call.1']
    %10 = vsyncpa [#allocation3], 0
    // Predicated region
    $region2: #{tpu_custom_call.1} parent=1 // pred_check
      _
    $region3: #{tpu_custom_call.1} parent=1 // pred_check_branch
      %12 = sbr.rel (0) target = $region5
    $region4: #{tpu_custom_call.1} parent=1 // pred_region
      _
    $region5: #{tpu_custom_call.1} parent=1 // pred_fallthru
      _
    // Predicated region
    $region6: #{tpu_custom_call.1} parent=1 // pred_check
      _
    $region7: #{tpu_custom_call.1} parent=1 // pred_check_branch
      %14 = sbr.rel (0) target = $region9
    $region8: #{tpu_custom_call.1} parent=1 // pred_region
      _
    $region9: #{tpu_custom_call.1} parent=1 // pred_fallthru
      _
    // Predicated region
    $region10: #{tpu_custom_call.1} parent=1 // pred_check
      _
    $region11: #{tpu_custom_call.1} parent=1 // pred_check_branch
      %16 = sbr.rel (0) target = $region13
    $region12: #{tpu_custom_call.1} parent=1 // pred_region
      _
    $region13: #{tpu_custom_call.1} parent=1 // pred_fallthru
      _
    // Predicated region
    $region14: #{tpu_custom_call.1} parent=1 // pred_check
      _
    $region15: #{tpu_custom_call.1} parent=1 // pred_check_branch
      %18 = sbr.rel (0) target = $region17
    $region16: #{tpu_custom_call.1} parent=1 // pred_region
      _
    $region17: #{tpu_custom_call.1} parent=1 // pred_fallthru
      _
    // Predicated region
    $region18: #{tpu_custom_call.1} parent=1 // pred_check
      _
    $region19: #{tpu_custom_call.1} parent=1 // pred_check_branch
      %20 = sbr.rel (0) target = $region21
    $region20: #{tpu_custom_call.1} parent=1 // pred_region
      _
    $region21: #{tpu_custom_call.1} parent=1 // pred_fallthru
      _
    %v22 = vld [vmem:[%s0] sm:$0xf]
    %v23 = vld [vmem:[%s0 + $0x4] sm:$0xf]
    %v24 = vld [vmem:[%s0 + $0x8] sm:$0xf]
    %v25 = vld [vmem:[%s0 + $0xc] sm:$0xf]
    %v26 = vld [vmem:[%s0 + $0x10] sm:$0xf]
    %v27 = vld [vmem:[%s0 + $0x14] sm:$0xf]
    %v28 = vld [vmem:[%s0 + $0x18] sm:$0xf]
    %v29 = vld [vmem:[%s0 + $0x1c] sm:$0xf]
    %v30 = vld [vmem:[%s0 + $0x20] sm:$0xf]
    %v31 = vld [vmem:[%s0 + $0x24] sm:$0xf]
    %v32 = vld [vmem:[%s0 + $0x28] sm:$0xf]
    %v33 = vld [vmem:[%s0 + $0x2c] sm:$0xf]
    %v34 = vld [vmem:[%s0 + $0x30] sm:$0xf]
    %v35 = vld [vmem:[%s0 + $0x34] sm:$0xf]
    %v36 = vld [vmem:[%s0 + $0x38] sm:$0xf]
    %v37 = vld [vmem:[%s0 + $0x3c] sm:$0xf]
    %v38 = vld [vmem:[%s0 + $0x40] sm:$0xf]
    %v39 = vld [vmem:[%s0 + $0x44] sm:$0xf]
    %v40 = vld [vmem:[%s0 + $0x48] sm:$0xf]
    %v41 = vld [vmem:[%s0 + $0x4c] sm:$0xf]
    %v42 = vld [vmem:[%s0 + $0x50] sm:$0xf]
    %v43 = vld [vmem:[%s0 + $0x54] sm:$0xf]
    %v44 = vld [vmem:[%s0 + $0x58] sm:$0xf]
    %v45 = vld [vmem:[%s0 + $0x5c] sm:$0xf]
    %v46 = vld [vmem:[%s0 + $0x60] sm:$0xf]
    %v47 = vld [vmem:[%s0 + $0x64] sm:$0xf]
    %v48 = vld [vmem:[%s0 + $0x68] sm:$0xf]
    %v49 = vld [vmem:[%s0 + $0x6c] sm:$0xf]
    %v50 = vld [vmem:[%s0 + $0x70] sm:$0xf]
    %v51 = vld [vmem:[%s0 + $0x74] sm:$0xf]
    %v52 = vld [vmem:[%s0 + $0x78] sm:$0xf]
    %v53 = vld [vmem:[%s0 + $0x7c] sm:$0xf]
    %v54 = vld [vmem:[%s0 + $0x80] sm:$0xf]
    %v55 = vld [vmem:[%s0 + $0x84] sm:$0xf]
    %v56 = vld [vmem:[%s0 + $0x88] sm:$0xf]
    %v57 = vld [vmem:[%s0 + $0x8c] sm:$0xf]
    %v58 = vld [vmem:[%s0 + $0x90] sm:$0xf]
    %v59 = vld [vmem:[%s0 + $0x94] sm:$0xf]
    %v60 = vld [vmem:[%s0 + $0x98] sm:$0xf]
    %v61 = vld [vmem:[%s0 + $0x9c] sm:$0xf]
    %v62 = vld [vmem:[%s0 + $0xa0] sm:$0xf]
    %v63 = vld [vmem:[%s0 + $0xa4] sm:$0xf]
    %v64 = vld [vmem:[%s0 + $0xa8] sm:$0xf]
    %v65 = vld [vmem:[%s0 + $0xac] sm:$0xf]
    %v66 = vld [vmem:[%s0 + $0xb0] sm:$0xf]
    %v67 = vld [vmem:[%s0 + $0xb4] sm:$0xf]
    %v68 = vld [vmem:[%s0 + $0xb8] sm:$0xf]
    %v69 = vld [vmem:[%s0 + $0xbc] sm:$0xf]
    %v70 = vld [vmem:[%s0 + $0xc0] sm:$0xf]
    %v71 = vld [vmem:[%s0 + $0xc4] sm:$0xf]
    %v72 = vld [vmem:[%s0 + $0xc8] sm:$0xf]
    %v73 = vld [vmem:[%s0 + $0xcc] sm:$0xf]
    %v74 = vld [vmem:[%s0 + $0xd0] sm:$0xf]
    %v75 = vld [vmem:[%s0 + $0xd4] sm:$0xf]
    %v76 = vld [vmem:[%s0 + $0xd8] sm:$0xf]
    %v77 = vld [vmem:[%s0 + $0xdc] sm:$0xf]
    %v78 = vld [vmem:[%s0 + $0xe0] sm:$0xf]
    %v79 = vld [vmem:[%s0 + $0xe4] sm:$0xf]
    %v80 = vld [vmem:[%s0 + $0xe8] sm:$0xf]
    %v81 = vld [vmem:[%s0 + $0xec] sm:$0xf]
    %v82 = vld [vmem:[%s0 + $0xf0] sm:$0xf]
    %v83 = vld [vmem:[%s0 + $0xf4] sm:$0xf]
    %v84 = vld [vmem:[%s0 + $0xf8] sm:$0xf]
    %v85 = vld [vmem:[%s0 + $0xfc] sm:$0xf]
    %v86 = vld [vmem:[%s0 + $0x100] sm:$0xf]
    %v87 = vld [vmem:[%s0 + $0x104] sm:$0xf]
    %v88 = vld [vmem:[%s0 + $0x108] sm:$0xf]
    %v89 = vld [vmem:[%s0 + $0x10c] sm:$0xf]
    %v90 = vld [vmem:[%s0 + $0x110] sm:$0xf]
    %v91 = vld [vmem:[%s0 + $0x114] sm:$0xf]
    %v92 = vld [vmem:[%s0 + $0x118] sm:$0xf]
    %v93 = vld [vmem:[%s0 + $0x11c] sm:$0xf]
    %v94 = vld [vmem:[%s0 + $0x120] sm:$0xf]
    %v95 = vld [vmem:[%s0 + $0x124] sm:$0xf]
    %v96 = vld [vmem:[%s0 + $0x128] sm:$0xf]
    %v97 = vld [vmem:[%s0 + $0x12c] sm:$0xf]
    %v98 = vld [vmem:[%s0 + $0x130] sm:$0xf]
    %v99 = vld [vmem:[%s0 + $0x134] sm:$0xf]
    %v100 = vld [vmem:[%s0 + $0x138] sm:$0xf]
    %v101 = vld [vmem:[%s0 + $0x13c] sm:$0xf]
    %v102 = vld [vmem:[%s0 + $0x140] sm:$0xf]
    %v103 = vld [vmem:[%s0 + $0x144] sm:$0xf]
    %v104 = vld [vmem:[%s0 + $0x148] sm:$0xf]
    %v105 = vld [vmem:[%s0 + $0x14c] sm:$0xf]
    %v106 = vld [vmem:[%s0 + $0x150] sm:$0xf]
    %v107 = vld [vmem:[%s0 + $0x154] sm:$0xf]
    %v108 = vld [vmem:[%s0 + $0x158] sm:$0xf]
    %v109 = vld [vmem:[%s0 + $0x15c] sm:$0xf]
    %v110 = vld [vmem:[%s0 + $0x160] sm:$0xf]
    %v111 = vld [vmem:[%s0 + $0x164] sm:$0xf]
    %v112 = vld [vmem:[%s0 + $0x168] sm:$0xf]
    %v113 = vld [vmem:[%s0 + $0x16c] sm:$0xf]
    %v114 = vld [vmem:[%s0 + $0x170] sm:$0xf]
    %v115 = vld [vmem:[%s0 + $0x174] sm:$0xf]
    %v116 = vld [vmem:[%s0 + $0x178] sm:$0xf]
    %v117 = vld [vmem:[%s0 + $0x17c] sm:$0xf]
    %v118 = vld [vmem:[%s0 + $0x180] sm:$0xf]
    %v119 = vld [vmem:[%s0 + $0x184] sm:$0xf]
    %v120 = vld [vmem:[%s0 + $0x188] sm:$0xf]
    %v121 = vld [vmem:[%s0 + $0x18c] sm:$0xf]
    %v122 = vld [vmem:[%s0 + $0x190] sm:$0xf]
    %v123 = vld [vmem:[%s0 + $0x194] sm:$0xf]
    %v124 = vld [vmem:[%s0 + $0x198] sm:$0xf]
    %v125 = vld [vmem:[%s0 + $0x19c] sm:$0xf]
    %v126 = vld [vmem:[%s0 + $0x1a0] sm:$0xf]
    %v127 = vld [vmem:[%s0 + $0x1a4] sm:$0xf]
    %v128 = vld [vmem:[%s0 + $0x1a8] sm:$0xf]
    %v129 = vld [vmem:[%s0 + $0x1ac] sm:$0xf]
    %v130 = vld [vmem:[%s0 + $0x1b0] sm:$0xf]
    %v131 = vld [vmem:[%s0 + $0x1b4] sm:$0xf]
    %v132 = vld [vmem:[%s0 + $0x1b8] sm:$0xf]
    %v133 = vld [vmem:[%s0 + $0x1bc] sm:$0xf]
    %v134 = vld [vmem:[%s0 + $0x1c0] sm:$0xf]
    %v135 = vld [vmem:[%s0 + $0x1c4] sm:$0xf]
    %v136 = vld [vmem:[%s0 + $0x1c8] sm:$0xf]
    %v137 = vld [vmem:[%s0 + $0x1cc] sm:$0xf]
    %v138 = vld [vmem:[%s0 + $0x1d0] sm:$0xf]
    %v139 = vld [vmem:[%s0 + $0x1d4] sm:$0xf]
    %v140 = vld [vmem:[%s0 + $0x1d8] sm:$0xf]
    %v141 = vld [vmem:[%s0 + $0x1dc] sm:$0xf]
    %v142 = vld [vmem:[%s0 + $0x1e0] sm:$0xf]
    %v143 = vld [vmem:[%s0 + $0x1e4] sm:$0xf]
    %v144 = vld [vmem:[%s0 + $0x1e8] sm:$0xf]
    %v145 = vld [vmem:[%s0 + $0x1ec] sm:$0xf]
    %v146 = vld [vmem:[%s0 + $0x1f0] sm:$0xf]
    %v147 = vld [vmem:[%s0 + $0x1f4] sm:$0xf]
    %v148 = vld [vmem:[%s0 + $0x1f8] sm:$0xf]
    %v149 = vld [vmem:[%s0 + $0x1fc] sm:$0xf]
    %v150 = vld [vmem:[%s0 + $0x200] sm:$0xf]
    %v151 = vld [vmem:[%s0 + $0x204] sm:$0xf]
    %v152 = vld [vmem:[%s0 + $0x208] sm:$0xf]
    %v153 = vld [vmem:[%s0 + $0x20c] sm:$0xf]
    %v154 = vld [vmem:[%s0 + $0x210] sm:$0xf]
    %v155 = vld [vmem:[%s0 + $0x214] sm:$0xf]
    %v156 = vld [vmem:[%s0 + $0x218] sm:$0xf]
    %v157 = vld [vmem:[%s0 + $0x21c] sm:$0xf]
    %v158 = vld [vmem:[%s0 + $0x220] sm:$0xf]
    %v159 = vld [vmem:[%s0 + $0x224] sm:$0xf]
    %v160 = vld [vmem:[%s0 + $0x228] sm:$0xf]
    %v161 = vld [vmem:[%s0 + $0x22c] sm:$0xf]
    %v162 = vld [vmem:[%s0 + $0x230] sm:$0xf]
    %v163 = vld [vmem:[%s0 + $0x234] sm:$0xf]
    %v164 = vld [vmem:[%s0 + $0x238] sm:$0xf]
    %v165 = vld [vmem:[%s0 + $0x23c] sm:$0xf]
    %v166 = vld [vmem:[%s0 + $0x240] sm:$0xf]
    %v167 = vld [vmem:[%s0 + $0x244] sm:$0xf]
    %v168 = vld [vmem:[%s0 + $0x248] sm:$0xf]
    %v169 = vld [vmem:[%s0 + $0x24c] sm:$0xf]
    %v170 = vld [vmem:[%s0 + $0x250] sm:$0xf]
    %v171 = vld [vmem:[%s0 + $0x254] sm:$0xf]
    %v172 = vld [vmem:[%s0 + $0x258] sm:$0xf]
    %v173 = vld [vmem:[%s0 + $0x25c] sm:$0xf]
    %v174 = vld [vmem:[%s0 + $0x260] sm:$0xf]
    %v175 = vld [vmem:[%s0 + $0x264] sm:$0xf]
    %v176 = vld [vmem:[%s0 + $0x268] sm:$0xf]
    %v177 = vld [vmem:[%s0 + $0x26c] sm:$0xf]
    %v178 = vld [vmem:[%s0 + $0x270] sm:$0xf]
    %v179 = vld [vmem:[%s0 + $0x274] sm:$0xf]
    %v180 = vld [vmem:[%s0 + $0x278] sm:$0xf]
    %v181 = vld [vmem:[%s0 + $0x27c] sm:$0xf]
    %v182 = vld [vmem:[%s0 + $0x280] sm:$0xf]
    %v183 = vld [vmem:[%s0 + $0x284] sm:$0xf]
    %v184 = vld [vmem:[%s0 + $0x288] sm:$0xf]
    %v185 = vld [vmem:[%s0 + $0x28c] sm:$0xf]
    %v186 = vld [vmem:[%s0 + $0x290] sm:$0xf]
    %v187 = vld [vmem:[%s0 + $0x294] sm:$0xf]
    %v188 = vld [vmem:[%s0 + $0x298] sm:$0xf]
    %v189 = vld [vmem:[%s0 + $0x29c] sm:$0xf]
    %v190 = vld [vmem:[%s0 + $0x2a0] sm:$0xf]
    %v191 = vld [vmem:[%s0 + $0x2a4] sm:$0xf]
    %v192 = vld [vmem:[%s0 + $0x2a8] sm:$0xf]
    %v193 = vld [vmem:[%s0 + $0x2ac] sm:$0xf]
    %v194 = vld [vmem:[%s0 + $0x2b0] sm:$0xf]
    %v195 = vld [vmem:[%s0 + $0x2b4] sm:$0xf]
    %v196 = vld [vmem:[%s0 + $0x2b8] sm:$0xf]
    %v197 = vld [vmem:[%s0 + $0x2bc] sm:$0xf]
    %v198 = vld [vmem:[%s0 + $0x2c0] sm:$0xf]
    %v199 = vld [vmem:[%s0 + $0x2c4] sm:$0xf]
    %v200 = vld [vmem:[%s0 + $0x2c8] sm:$0xf]
    %v201 = vld [vmem:[%s0 + $0x2cc] sm:$0xf]
    %v202 = vld [vmem:[%s0 + $0x2d0] sm:$0xf]
    %v203 = vld [vmem:[%s0 + $0x2d4] sm:$0xf]
    %v204 = vld [vmem:[%s0 + $0x2d8] sm:$0xf]
    %v205 = vld [vmem:[%s0 + $0x2dc] sm:$0xf]
    %v206 = vld [vmem:[%s0 + $0x2e0] sm:$0xf]
    %v207 = vld [vmem:[%s0 + $0x2e4] sm:$0xf]
    %v208 = vld [vmem:[%s0 + $0x2e8] sm:$0xf]
    %v209 = vld [vmem:[%s0 + $0x2ec] sm:$0xf]
    %v210 = vld [vmem:[%s0 + $0x2f0] sm:$0xf]
    %v211 = vld [vmem:[%s0 + $0x2f4] sm:$0xf]
    %v212 = vld [vmem:[%s0 + $0x2f8] sm:$0xf]
    %v213 = vld [vmem:[%s0 + $0x2fc] sm:$0xf]
    %v214 = vld [vmem:[%s0 + $0x300] sm:$0xf]
    %v215 = vld [vmem:[%s0 + $0x304] sm:$0xf]
    %v216 = vld [vmem:[%s0 + $0x308] sm:$0xf]
    %v217 = vld [vmem:[%s0 + $0x30c] sm:$0xf]
    %v218 = vld [vmem:[%s0 + $0x310] sm:$0xf]
    %v219 = vld [vmem:[%s0 + $0x314] sm:$0xf]
    %v220 = vld [vmem:[%s0 + $0x318] sm:$0xf]
    %v221 = vld [vmem:[%s0 + $0x31c] sm:$0xf]
    %v222 = vld [vmem:[%s0 + $0x320] sm:$0xf]
    %v223 = vld [vmem:[%s0 + $0x324] sm:$0xf]
    %v224 = vld [vmem:[%s0 + $0x328] sm:$0xf]
    %v225 = vld [vmem:[%s0 + $0x32c] sm:$0xf]
    %v226 = vld [vmem:[%s0 + $0x330] sm:$0xf]
    %v227 = vld [vmem:[%s0 + $0x334] sm:$0xf]
    %v228 = vld [vmem:[%s0 + $0x338] sm:$0xf]
    %v229 = vld [vmem:[%s0 + $0x33c] sm:$0xf]
    %v230 = vld [vmem:[%s0 + $0x340] sm:$0xf]
    %v231 = vld [vmem:[%s0 + $0x344] sm:$0xf]
    %v232 = vld [vmem:[%s0 + $0x348] sm:$0xf]
    %v233 = vld [vmem:[%s0 + $0x34c] sm:$0xf]
    %v234 = vld [vmem:[%s0 + $0x350] sm:$0xf]
    %v235 = vld [vmem:[%s0 + $0x354] sm:$0xf]
    %v236 = vld [vmem:[%s0 + $0x358] sm:$0xf]
    %v237 = vld [vmem:[%s0 + $0x35c] sm:$0xf]
    %v238 = vld [vmem:[%s0 + $0x360] sm:$0xf]
    %v239 = vld [vmem:[%s0 + $0x364] sm:$0xf]
    %v240 = vld [vmem:[%s0 + $0x368] sm:$0xf]
    %v241 = vld [vmem:[%s0 + $0x36c] sm:$0xf]
    %v242 = vld [vmem:[%s0 + $0x370] sm:$0xf]
    %v243 = vld [vmem:[%s0 + $0x374] sm:$0xf]
    %v244 = vld [vmem:[%s0 + $0x378] sm:$0xf]
    %v245 = vld [vmem:[%s0 + $0x37c] sm:$0xf]
    %v246 = vld [vmem:[%s0 + $0x380] sm:$0xf]
    %v247 = vld [vmem:[%s0 + $0x384] sm:$0xf]
    %v248 = vld [vmem:[%s0 + $0x388] sm:$0xf]
    %v249 = vld [vmem:[%s0 + $0x38c] sm:$0xf]
    %v250 = vld [vmem:[%s0 + $0x390] sm:$0xf]
    %v251 = vld [vmem:[%s0 + $0x394] sm:$0xf]
    %v252 = vld [vmem:[%s0 + $0x398] sm:$0xf]
    %v253 = vld [vmem:[%s0 + $0x39c] sm:$0xf]
    %v254 = vld [vmem:[%s0 + $0x3a0] sm:$0xf]
    %v255 = vld [vmem:[%s0 + $0x3a4] sm:$0xf]
    %v256 = vld [vmem:[%s0 + $0x3a8] sm:$0xf]
    %v257 = vld [vmem:[%s0 + $0x3ac] sm:$0xf]
    %v258 = vld [vmem:[%s0 + $0x3b0] sm:$0xf]
    %v259 = vld [vmem:[%s0 + $0x3b4] sm:$0xf]
    %v260 = vld [vmem:[%s0 + $0x3b8] sm:$0xf]
    %v261 = vld [vmem:[%s0 + $0x3bc] sm:$0xf]
    %v262 = vld [vmem:[%s0 + $0x3c0] sm:$0xf]
    %v263 = vld [vmem:[%s0 + $0x3c4] sm:$0xf]
    %v264 = vld [vmem:[%s0 + $0x3c8] sm:$0xf]
    %v265 = vld [vmem:[%s0 + $0x3cc] sm:$0xf]
    %v266 = vld [vmem:[%s0 + $0x3d0] sm:$0xf]
    %v267 = vld [vmem:[%s0 + $0x3d4] sm:$0xf]
    %v268 = vld [vmem:[%s0 + $0x3d8] sm:$0xf]
    %v269 = vld [vmem:[%s0 + $0x3dc] sm:$0xf]
    %v270 = vld [vmem:[%s0 + $0x3e0] sm:$0xf]
    %v271 = vld [vmem:[%s0 + $0x3e4] sm:$0xf]
    %v272 = vld [vmem:[%s0 + $0x3e8] sm:$0xf]
    %v273 = vld [vmem:[%s0 + $0x3ec] sm:$0xf]
    %v274 = vld [vmem:[%s0 + $0x3f0] sm:$0xf]
    %v275 = vld [vmem:[%s0 + $0x3f4] sm:$0xf]
    %v276 = vld [vmem:[%s0 + $0x3f8] sm:$0xf]
    %v277 = vld [vmem:[%s0 + $0x3fc] sm:$0xf]
    %v278 = vld [vmem:[%s0 + $0x400] sm:$0xf]
    %v279 = vld [vmem:[%s0 + $0x404] sm:$0xf]
    %v280 = vld [vmem:[%s0 + $0x408] sm:$0xf]
    %v281 = vld [vmem:[%s0 + $0x40c] sm:$0xf]
    %v282 = vld [vmem:[%s0 + $0x410] sm:$0xf]
    %v283 = vld [vmem:[%s0 + $0x414] sm:$0xf]
    %v284 = vld [vmem:[%s0 + $0x418] sm:$0xf]
    %v285 = vld [vmem:[%s0 + $0x41c] sm:$0xf]
    %v286 = vld [vmem:[%s0 + $0x420] sm:$0xf]
    %v287 = vld [vmem:[%s0 + $0x424] sm:$0xf]
    %v288 = vld [vmem:[%s0 + $0x428] sm:$0xf]
    %v289 = vld [vmem:[%s0 + $0x42c] sm:$0xf]
    %v290 = vld [vmem:[%s0 + $0x430] sm:$0xf]
    %v291 = vld [vmem:[%s0 + $0x434] sm:$0xf]
    %v292 = vld [vmem:[%s0 + $0x438] sm:$0xf]
    %v293 = vld [vmem:[%s0 + $0x43c] sm:$0xf]
    %v294 = vld [vmem:[%s0 + $0x440] sm:$0xf]
    %v295 = vld [vmem:[%s0 + $0x444] sm:$0xf]
    %v296 = vld [vmem:[%s0 + $0x448] sm:$0xf]
    %v297 = vld [vmem:[%s0 + $0x44c] sm:$0xf]
    %v298 = vld [vmem:[%s0 + $0x450] sm:$0xf]
    %v299 = vld [vmem:[%s0 + $0x454] sm:$0xf]
    %v300 = vld [vmem:[%s0 + $0x458] sm:$0xf]
    %v301 = vld [vmem:[%s0 + $0x45c] sm:$0xf]
    %v302 = vld [vmem:[%s0 + $0x460] sm:$0xf]
    %v303 = vld [vmem:[%s0 + $0x464] sm:$0xf]
    %v304 = vld [vmem:[%s0 + $0x468] sm:$0xf]
    %v305 = vld [vmem:[%s0 + $0x46c] sm:$0xf]
    %v306 = vld [vmem:[%s0 + $0x470] sm:$0xf]
    %v307 = vld [vmem:[%s0 + $0x474] sm:$0xf]
    %v308 = vld [vmem:[%s0 + $0x478] sm:$0xf]
    %v309 = vld [vmem:[%s0 + $0x47c] sm:$0xf]
    %v310 = vld [vmem:[%s0 + $0x480] sm:$0xf]
    %v311 = vld [vmem:[%s0 + $0x484] sm:$0xf]
    %v312 = vld [vmem:[%s0 + $0x488] sm:$0xf]
    %v313 = vld [vmem:[%s0 + $0x48c] sm:$0xf]
    %v314 = vld [vmem:[%s0 + $0x490] sm:$0xf]
    %v315 = vld [vmem:[%s0 + $0x494] sm:$0xf]
    %v316 = vld [vmem:[%s0 + $0x498] sm:$0xf]
    %v317 = vld [vmem:[%s0 + $0x49c] sm:$0xf]
    %v318 = vld [vmem:[%s0 + $0x4a0] sm:$0xf]
    %v319 = vld [vmem:[%s0 + $0x4a4] sm:$0xf]
    %v320 = vld [vmem:[%s0 + $0x4a8] sm:$0xf]
    %v321 = vld [vmem:[%s0 + $0x4ac] sm:$0xf]
    %v322 = vld [vmem:[%s0 + $0x4b0] sm:$0xf]
    %v323 = vld [vmem:[%s0 + $0x4b4] sm:$0xf]
    %v324 = vld [vmem:[%s0 + $0x4b8] sm:$0xf]
    %v325 = vld [vmem:[%s0 + $0x4bc] sm:$0xf]
    %v326 = vld [vmem:[%s0 + $0x4c0] sm:$0xf]
    %v327 = vld [vmem:[%s0 + $0x4c4] sm:$0xf]
    %v328 = vld [vmem:[%s0 + $0x4c8] sm:$0xf]
    %v329 = vld [vmem:[%s0 + $0x4cc] sm:$0xf]
    %v330 = vld [vmem:[%s0 + $0x4d0] sm:$0xf]
    %v331 = vld [vmem:[%s0 + $0x4d4] sm:$0xf]
    %v332 = vld [vmem:[%s0 + $0x4d8] sm:$0xf]
    %v333 = vld [vmem:[%s0 + $0x4dc] sm:$0xf]
    %v334 = vld [vmem:[%s0 + $0x4e0] sm:$0xf]
    %v335 = vld [vmem:[%s0 + $0x4e4] sm:$0xf]
    %v336 = vld [vmem:[%s0 + $0x4e8] sm:$0xf]
    %v337 = vld [vmem:[%s0 + $0x4ec] sm:$0xf]
    %v338 = vld [vmem:[%s0 + $0x4f0] sm:$0xf]
    %v339 = vld [vmem:[%s0 + $0x4f4] sm:$0xf]
    %v340 = vld [vmem:[%s0 + $0x4f8] sm:$0xf]
    %v341 = vld [vmem:[%s0 + $0x4fc] sm:$0xf]
    %v342 = vld [vmem:[%s0 + $0x500] sm:$0xf]
    %v343 = vld [vmem:[%s0 + $0x504] sm:$0xf]
    %v344 = vld [vmem:[%s0 + $0x508] sm:$0xf]
    %v345 = vld [vmem:[%s0 + $0x50c] sm:$0xf]
    %v346 = vld [vmem:[%s0 + $0x510] sm:$0xf]
    %v347 = vld [vmem:[%s0 + $0x514] sm:$0xf]
    %v348 = vld [vmem:[%s0 + $0x518] sm:$0xf]
    %v349 = vld [vmem:[%s0 + $0x51c] sm:$0xf]
    %v350 = vld [vmem:[%s0 + $0x520] sm:$0xf]
    %v351 = vld [vmem:[%s0 + $0x524] sm:$0xf]
    %v352 = vld [vmem:[%s0 + $0x528] sm:$0xf]
    %v353 = vld [vmem:[%s0 + $0x52c] sm:$0xf]
    %v354 = vld [vmem:[%s0 + $0x530] sm:$0xf]
    %v355 = vld [vmem:[%s0 + $0x534] sm:$0xf]
    %v356 = vld [vmem:[%s0 + $0x538] sm:$0xf]
    %v357 = vld [vmem:[%s0 + $0x53c] sm:$0xf]
    %v358 = vld [vmem:[%s0 + $0x540] sm:$0xf]
    %v359 = vld [vmem:[%s0 + $0x544] sm:$0xf]
    %v360 = vld [vmem:[%s0 + $0x548] sm:$0xf]
    %v361 = vld [vmem:[%s0 + $0x54c] sm:$0xf]
    %v362 = vld [vmem:[%s0 + $0x550] sm:$0xf]
    %v363 = vld [vmem:[%s0 + $0x554] sm:$0xf]
    %v364 = vld [vmem:[%s0 + $0x558] sm:$0xf]
    %v365 = vld [vmem:[%s0 + $0x55c] sm:$0xf]
    %v366 = vld [vmem:[%s0 + $0x560] sm:$0xf]
    %v367 = vld [vmem:[%s0 + $0x564] sm:$0xf]
    %v368 = vld [vmem:[%s0 + $0x568] sm:$0xf]
    %v369 = vld [vmem:[%s0 + $0x56c] sm:$0xf]
    %v370 = vld [vmem:[%s0 + $0x570] sm:$0xf]
    %v371 = vld [vmem:[%s0 + $0x574] sm:$0xf]
    %v372 = vld [vmem:[%s0 + $0x578] sm:$0xf]
    %v373 = vld [vmem:[%s0 + $0x57c] sm:$0xf]
    %v374 = vld [vmem:[%s0 + $0x580] sm:$0xf]
    %v375 = vld [vmem:[%s0 + $0x584] sm:$0xf]
    %v376 = vld [vmem:[%s0 + $0x588] sm:$0xf]
    %v377 = vld [vmem:[%s0 + $0x58c] sm:$0xf]
    %v378 = vld [vmem:[%s0 + $0x590] sm:$0xf]
    %v379 = vld [vmem:[%s0 + $0x594] sm:$0xf]
    %v380 = vld [vmem:[%s0 + $0x598] sm:$0xf]
    %v381 = vld [vmem:[%s0 + $0x59c] sm:$0xf]
    %v382 = vld [vmem:[%s0 + $0x5a0] sm:$0xf]
    %v383 = vld [vmem:[%s0 + $0x5a4] sm:$0xf]
    %v384 = vld [vmem:[%s0 + $0x5a8] sm:$0xf]
    %v385 = vld [vmem:[%s0 + $0x5ac] sm:$0xf]
    %v386 = vld [vmem:[%s0 + $0x5b0] sm:$0xf]
    %v387 = vld [vmem:[%s0 + $0x5b4] sm:$0xf]
    %v388 = vld [vmem:[%s0 + $0x5b8] sm:$0xf]
    %v389 = vld [vmem:[%s0 + $0x5bc] sm:$0xf]
    %v390 = vld [vmem:[%s0 + $0x5c0] sm:$0xf]
    %v391 = vld [vmem:[%s0 + $0x5c4] sm:$0xf]
    %v392 = vld [vmem:[%s0 + $0x5c8] sm:$0xf]
    %v393 = vld [vmem:[%s0 + $0x5cc] sm:$0xf]
    %v394 = vld [vmem:[%s0 + $0x5d0] sm:$0xf]
    %v395 = vld [vmem:[%s0 + $0x5d4] sm:$0xf]
    %v396 = vld [vmem:[%s0 + $0x5d8] sm:$0xf]
    %v397 = vld [vmem:[%s0 + $0x5dc] sm:$0xf]
    %v398 = vld [vmem:[%s0 + $0x5e0] sm:$0xf]
    %v399 = vld [vmem:[%s0 + $0x5e4] sm:$0xf]
    %v400 = vld [vmem:[%s0 + $0x5e8] sm:$0xf]
    %v401 = vld [vmem:[%s0 + $0x5ec] sm:$0xf]
    %v402 = vld [vmem:[%s0 + $0x5f0] sm:$0xf]
    %v403 = vld [vmem:[%s0 + $0x5f4] sm:$0xf]
    %v404 = vld [vmem:[%s0 + $0x5f8] sm:$0xf]
    %v405 = vld [vmem:[%s0 + $0x5fc] sm:$0xf]
    %v406 = vld [vmem:[%s0 + $0x600] sm:$0xf]
    %v407 = vld [vmem:[%s0 + $0x604] sm:$0xf]
    %v408 = vld [vmem:[%s0 + $0x608] sm:$0xf]
    %v409 = vld [vmem:[%s0 + $0x60c] sm:$0xf]
    %v410 = vld [vmem:[%s0 + $0x610] sm:$0xf]
    %v411 = vld [vmem:[%s0 + $0x614] sm:$0xf]
    %v412 = vld [vmem:[%s0 + $0x618] sm:$0xf]
    %v413 = vld [vmem:[%s0 + $0x61c] sm:$0xf]
    %v414 = vld [vmem:[%s0 + $0x620] sm:$0xf]
    %v415 = vld [vmem:[%s0 + $0x624] sm:$0xf]
    %v416 = vld [vmem:[%s0 + $0x628] sm:$0xf]
    %v417 = vld [vmem:[%s0 + $0x62c] sm:$0xf]
    %v418 = vld [vmem:[%s0 + $0x630] sm:$0xf]
    %v419 = vld [vmem:[%s0 + $0x634] sm:$0xf]
    %v420 = vld [vmem:[%s0 + $0x638] sm:$0xf]
    %v421 = vld [vmem:[%s0 + $0x63c] sm:$0xf]
    %v422 = vld [vmem:[%s0 + $0x640] sm:$0xf]
    %v423 = vld [vmem:[%s0 + $0x644] sm:$0xf]
    %v424 = vld [vmem:[%s0 + $0x648] sm:$0xf]
    %v425 = vld [vmem:[%s0 + $0x64c] sm:$0xf]
    %v426 = vld [vmem:[%s0 + $0x650] sm:$0xf]
    %v427 = vld [vmem:[%s0 + $0x654] sm:$0xf]
    %v428 = vld [vmem:[%s0 + $0x658] sm:$0xf]
    %v429 = vld [vmem:[%s0 + $0x65c] sm:$0xf]
    %v430 = vld [vmem:[%s0 + $0x660] sm:$0xf]
    %v431 = vld [vmem:[%s0 + $0x664] sm:$0xf]
    %v432 = vld [vmem:[%s0 + $0x668] sm:$0xf]
    %v433 = vld [vmem:[%s0 + $0x66c] sm:$0xf]
    %v434 = vld [vmem:[%s0 + $0x670] sm:$0xf]
    %v435 = vld [vmem:[%s0 + $0x674] sm:$0xf]
    %v436 = vld [vmem:[%s0 + $0x678] sm:$0xf]
    %v437 = vld [vmem:[%s0 + $0x67c] sm:$0xf]
    %v438 = vld [vmem:[%s0 + $0x680] sm:$0xf]
    %v439 = vld [vmem:[%s0 + $0x684] sm:$0xf]
    %v440 = vld [vmem:[%s0 + $0x688] sm:$0xf]
    %v441 = vld [vmem:[%s0 + $0x68c] sm:$0xf]
    %v442 = vld [vmem:[%s0 + $0x690] sm:$0xf]
    %v443 = vld [vmem:[%s0 + $0x694] sm:$0xf]
    %v444 = vld [vmem:[%s0 + $0x698] sm:$0xf]
    %v445 = vld [vmem:[%s0 + $0x69c] sm:$0xf]
    %v446 = vld [vmem:[%s0 + $0x6a0] sm:$0xf]
    %v447 = vld [vmem:[%s0 + $0x6a4] sm:$0xf]
    %v448 = vld [vmem:[%s0 + $0x6a8] sm:$0xf]
    %v449 = vld [vmem:[%s0 + $0x6ac] sm:$0xf]
    %v450 = vld [vmem:[%s0 + $0x6b0] sm:$0xf]
    %v451 = vld [vmem:[%s0 + $0x6b4] sm:$0xf]
    %v452 = vld [vmem:[%s0 + $0x6b8] sm:$0xf]
    %v453 = vld [vmem:[%s0 + $0x6bc] sm:$0xf]
    %v454 = vld [vmem:[%s0 + $0x6c0] sm:$0xf]
    %v455 = vld [vmem:[%s0 + $0x6c4] sm:$0xf]
    %v456 = vld [vmem:[%s0 + $0x6c8] sm:$0xf]
    %v457 = vld [vmem:[%s0 + $0x6cc] sm:$0xf]
    %v458 = vld [vmem:[%s0 + $0x6d0] sm:$0xf]
    %v459 = vld [vmem:[%s0 + $0x6d4] sm:$0xf]
    %v460 = vld [vmem:[%s0 + $0x6d8] sm:$0xf]
    %v461 = vld [vmem:[%s0 + $0x6dc] sm:$0xf]
    %v462 = vld [vmem:[%s0 + $0x6e0] sm:$0xf]
    %v463 = vld [vmem:[%s0 + $0x6e4] sm:$0xf]
    %v464 = vld [vmem:[%s0 + $0x6e8] sm:$0xf]
    %v465 = vld [vmem:[%s0 + $0x6ec] sm:$0xf]
    %v466 = vld [vmem:[%s0 + $0x6f0] sm:$0xf]
    %v467 = vld [vmem:[%s0 + $0x6f4] sm:$0xf]
    %v468 = vld [vmem:[%s0 + $0x6f8] sm:$0xf]
    %v469 = vld [vmem:[%s0 + $0x6fc] sm:$0xf]
    %v470 = vld [vmem:[%s0 + $0x700] sm:$0xf]
    %v471 = vld [vmem:[%s0 + $0x704] sm:$0xf]
    %v472 = vld [vmem:[%s0 + $0x708] sm:$0xf]
    %v473 = vld [vmem:[%s0 + $0x70c] sm:$0xf]
    %v474 = vld [vmem:[%s0 + $0x710] sm:$0xf]
    %v475 = vld [vmem:[%s0 + $0x714] sm:$0xf]
    %v476 = vld [vmem:[%s0 + $0x718] sm:$0xf]
    %v477 = vld [vmem:[%s0 + $0x71c] sm:$0xf]
    %v478 = vld [vmem:[%s0 + $0x720] sm:$0xf]
    %v479 = vld [vmem:[%s0 + $0x724] sm:$0xf]
    %v480 = vld [vmem:[%s0 + $0x728] sm:$0xf]
    %v481 = vld [vmem:[%s0 + $0x72c] sm:$0xf]
    %v482 = vld [vmem:[%s0 + $0x730] sm:$0xf]
    %v483 = vld [vmem:[%s0 + $0x734] sm:$0xf]
    %v484 = vld [vmem:[%s0 + $0x738] sm:$0xf]
    %v485 = vld [vmem:[%s0 + $0x73c] sm:$0xf]
    %v486 = vld [vmem:[%s0 + $0x740] sm:$0xf]
    %v487 = vld [vmem:[%s0 + $0x744] sm:$0xf]
    %v488 = vld [vmem:[%s0 + $0x748] sm:$0xf]
    %v489 = vld [vmem:[%s0 + $0x74c] sm:$0xf]
    %v490 = vld [vmem:[%s0 + $0x750] sm:$0xf]
    %v491 = vld [vmem:[%s0 + $0x754] sm:$0xf]
    %v492 = vld [vmem:[%s0 + $0x758] sm:$0xf]
    %v493 = vld [vmem:[%s0 + $0x75c] sm:$0xf]
    %v494 = vld [vmem:[%s0 + $0x760] sm:$0xf]
    %v495 = vld [vmem:[%s0 + $0x764] sm:$0xf]
    %v496 = vld [vmem:[%s0 + $0x768] sm:$0xf]
    %v497 = vld [vmem:[%s0 + $0x76c] sm:$0xf]
    %v498 = vld [vmem:[%s0 + $0x770] sm:$0xf]
    %v499 = vld [vmem:[%s0 + $0x774] sm:$0xf]
    %v500 = vld [vmem:[%s0 + $0x778] sm:$0xf]
    %v501 = vld [vmem:[%s0 + $0x77c] sm:$0xf]
    %v502 = vld [vmem:[%s0 + $0x780] sm:$0xf]
    %v503 = vld [vmem:[%s0 + $0x784] sm:$0xf]
    %v504 = vld [vmem:[%s0 + $0x788] sm:$0xf]
    %v505 = vld [vmem:[%s0 + $0x78c] sm:$0xf]
    %v506 = vld [vmem:[%s0 + $0x790] sm:$0xf]
    %v507 = vld [vmem:[%s0 + $0x794] sm:$0xf]
    %v508 = vld [vmem:[%s0 + $0x798] sm:$0xf]
    %v509 = vld [vmem:[%s0 + $0x79c] sm:$0xf]
    %v510 = vld [vmem:[%s0 + $0x7a0] sm:$0xf]
    %v511 = vld [vmem:[%s0 + $0x7a4] sm:$0xf]
    %v512 = vld [vmem:[%s0 + $0x7a8] sm:$0xf]
    %v513 = vld [vmem:[%s0 + $0x7ac] sm:$0xf]
    %v514 = vld [vmem:[%s0 + $0x7b0] sm:$0xf]
    %v515 = vld [vmem:[%s0 + $0x7b4] sm:$0xf]
    %v516 = vld [vmem:[%s0 + $0x7b8] sm:$0xf]
    %v517 = vld [vmem:[%s0 + $0x7bc] sm:$0xf]
    %v518 = vld [vmem:[%s0 + $0x7c0] sm:$0xf]
    %v519 = vld [vmem:[%s0 + $0x7c4] sm:$0xf]
    %v520 = vld [vmem:[%s0 + $0x7c8] sm:$0xf]
    %v521 = vld [vmem:[%s0 + $0x7cc] sm:$0xf]
    %v522 = vld [vmem:[%s0 + $0x7d0] sm:$0xf]
    %v523 = vld [vmem:[%s0 + $0x7d4] sm:$0xf]
    %v524 = vld [vmem:[%s0 + $0x7d8] sm:$0xf]
    %v525 = vld [vmem:[%s0 + $0x7dc] sm:$0xf]
    %v526 = vld [vmem:[%s0 + $0x7e0] sm:$0xf]
    %v527 = vld [vmem:[%s0 + $0x7e4] sm:$0xf]
    %v528 = vld [vmem:[%s0 + $0x7e8] sm:$0xf]
    %v529 = vld [vmem:[%s0 + $0x7ec] sm:$0xf]
    %v530 = vld [vmem:[%s0 + $0x7f0] sm:$0xf]
    %v531 = vld [vmem:[%s0 + $0x7f4] sm:$0xf]
    %v532 = vld [vmem:[%s0 + $0x7f8] sm:$0xf]
    %v533 = vld [vmem:[%s0 + $0x7fc] sm:$0xf]
    %v534 = vld [vmem:[%s1] sm:$0x3]
    %v535 = vld [vmem:[%s2] sm:$0x1]
    %v537 = vperm.slane %v535, 0
    %v1051 = vunpack.c.l.b16 %v22
    %v1052 = vunpack.c.l.b16 %v23
    %v1053 = vunpack.c.l.b16 %v24
    %v1054 = vunpack.c.l.b16 %v25
    %v1055 = vunpack.c.l.b16 %v26
    %v1056 = vunpack.c.l.b16 %v27
    %v1057 = vunpack.c.l.b16 %v28
    %v1058 = vunpack.c.l.b16 %v29
    %v1059 = vunpack.c.l.b16 %v30
    %v1060 = vunpack.c.l.b16 %v31
    %v1061 = vunpack.c.l.b16 %v32
    %v1062 = vunpack.c.l.b16 %v33
    %v1063 = vunpack.c.l.b16 %v34
    %v1064 = vunpack.c.l.b16 %v35
    %v1065 = vunpack.c.l.b16 %v36
    %v1066 = vunpack.c.l.b16 %v37
    %v1067 = vunpack.c.l.b16 %v38
    %v1068 = vunpack.c.l.b16 %v39
    %v1069 = vunpack.c.l.b16 %v40
    %v1070 = vunpack.c.l.b16 %v41
    %v1071 = vunpack.c.l.b16 %v42
    %v1072 = vunpack.c.l.b16 %v43
    %v1073 = vunpack.c.l.b16 %v44
    %v1074 = vunpack.c.l.b16 %v45
    %v1075 = vunpack.c.l.b16 %v46
    %v1076 = vunpack.c.l.b16 %v47
    %v1077 = vunpack.c.l.b16 %v48
    %v1078 = vunpack.c.l.b16 %v49
    %v1079 = vunpack.c.l.b16 %v50
    %v1080 = vunpack.c.l.b16 %v51
    %v1081 = vunpack.c.l.b16 %v52
    %v1082 = vunpack.c.l.b16 %v53
    %v1083 = vunpack.c.l.b16 %v54
    %v1084 = vunpack.c.l.b16 %v55
    %v1085 = vunpack.c.l.b16 %v56
    %v1086 = vunpack.c.l.b16 %v57
    %v1087 = vunpack.c.l.b16 %v58
    %v1088 = vunpack.c.l.b16 %v59
    %v1089 = vunpack.c.l.b16 %v60
    %v1090 = vunpack.c.l.b16 %v61
    %v1091 = vunpack.c.l.b16 %v62
    %v1092 = vunpack.c.l.b16 %v63
    %v1093 = vunpack.c.l.b16 %v64
    %v1094 = vunpack.c.l.b16 %v65
    %v1095 = vunpack.c.l.b16 %v66
    %v1096 = vunpack.c.l.b16 %v67
    %v1097 = vunpack.c.l.b16 %v68
    %v1098 = vunpack.c.l.b16 %v69
    %v1099 = vunpack.c.l.b16 %v70
    %v1100 = vunpack.c.l.b16 %v71
    %v1101 = vunpack.c.l.b16 %v72
    %v1102 = vunpack.c.l.b16 %v73
    %v1103 = vunpack.c.l.b16 %v74
    %v1104 = vunpack.c.l.b16 %v75
    %v1105 = vunpack.c.l.b16 %v76
    %v1106 = vunpack.c.l.b16 %v77
    %v1107 = vunpack.c.l.b16 %v78
    %v1108 = vunpack.c.l.b16 %v79
    %v1109 = vunpack.c.l.b16 %v80
    %v1110 = vunpack.c.l.b16 %v81
    %v1111 = vunpack.c.l.b16 %v82
    %v1112 = vunpack.c.l.b16 %v83
    %v1113 = vunpack.c.l.b16 %v84
    %v1114 = vunpack.c.l.b16 %v85
    %v1115 = vunpack.c.l.b16 %v86
    %v1116 = vunpack.c.l.b16 %v87
    %v1117 = vunpack.c.l.b16 %v88
    %v1118 = vunpack.c.l.b16 %v89
    %v1119 = vunpack.c.l.b16 %v90
    %v1120 = vunpack.c.l.b16 %v91
    %v1121 = vunpack.c.l.b16 %v92
    %v1122 = vunpack.c.l.b16 %v93
    %v1123 = vunpack.c.l.b16 %v94
    %v1124 = vunpack.c.l.b16 %v95
    %v1125 = vunpack.c.l.b16 %v96
    %v1126 = vunpack.c.l.b16 %v97
    %v1127 = vunpack.c.l.b16 %v98
    %v1128 = vunpack.c.l.b16 %v99
    %v1129 = vunpack.c.l.b16 %v100
    %v1130 = vunpack.c.l.b16 %v101
    %v1131 = vunpack.c.l.b16 %v102
    %v1132 = vunpack.c.l.b16 %v103
    %v1133 = vunpack.c.l.b16 %v104
    %v1134 = vunpack.c.l.b16 %v105
    %v1135 = vunpack.c.l.b16 %v106
    %v1136 = vunpack.c.l.b16 %v107
    %v1137 = vunpack.c.l.b16 %v108
    %v1138 = vunpack.c.l.b16 %v109
    %v1139 = vunpack.c.l.b16 %v110
    %v1140 = vunpack.c.l.b16 %v111
    %v1141 = vunpack.c.l.b16 %v112
    %v1142 = vunpack.c.l.b16 %v113
    %v1143 = vunpack.c.l.b16 %v114
    %v1144 = vunpack.c.l.b16 %v115
    %v1145 = vunpack.c.l.b16 %v116
    %v1146 = vunpack.c.l.b16 %v117
    %v1147 = vunpack.c.l.b16 %v118
    %v1148 = vunpack.c.l.b16 %v119
    %v1149 = vunpack.c.l.b16 %v120
    %v1150 = vunpack.c.l.b16 %v121
    %v1151 = vunpack.c.l.b16 %v122
    %v1152 = vunpack.c.l.b16 %v123
    %v1153 = vunpack.c.l.b16 %v124
    %v1154 = vunpack.c.l.b16 %v125
    %v1155 = vunpack.c.l.b16 %v126
    %v1156 = vunpack.c.l.b16 %v127
    %v1157 = vunpack.c.l.b16 %v128
    %v1158 = vunpack.c.l.b16 %v129
    %v1159 = vunpack.c.l.b16 %v130
    %v1160 = vunpack.c.l.b16 %v131
    %v1161 = vunpack.c.l.b16 %v132
    %v1162 = vunpack.c.l.b16 %v133
    %v1163 = vunpack.c.l.b16 %v134
    %v1164 = vunpack.c.l.b16 %v135
    %v1165 = vunpack.c.l.b16 %v136
    %v1166 = vunpack.c.l.b16 %v137
    %v1167 = vunpack.c.l.b16 %v138
    %v1168 = vunpack.c.l.b16 %v139
    %v1169 = vunpack.c.l.b16 %v140
    %v1170 = vunpack.c.l.b16 %v141
    %v1171 = vunpack.c.l.b16 %v142
    %v1172 = vunpack.c.l.b16 %v143
    %v1173 = vunpack.c.l.b16 %v144
    %v1174 = vunpack.c.l.b16 %v145
    %v1175 = vunpack.c.l.b16 %v146
    %v1176 = vunpack.c.l.b16 %v147
    %v1177 = vunpack.c.l.b16 %v148
    %v1178 = vunpack.c.l.b16 %v149
    %v1179 = vunpack.c.l.b16 %v150
    %v1180 = vunpack.c.l.b16 %v151
    %v1181 = vunpack.c.l.b16 %v152
    %v1182 = vunpack.c.l.b16 %v153
    %v1183 = vunpack.c.l.b16 %v154
    %v1184 = vunpack.c.l.b16 %v155
    %v1185 = vunpack.c.l.b16 %v156
    %v1186 = vunpack.c.l.b16 %v157
    %v1187 = vunpack.c.l.b16 %v158
    %v1188 = vunpack.c.l.b16 %v159
    %v1189 = vunpack.c.l.b16 %v160
    %v1190 = vunpack.c.l.b16 %v161
    %v1191 = vunpack.c.l.b16 %v162
    %v1192 = vunpack.c.l.b16 %v163
    %v1193 = vunpack.c.l.b16 %v164
    %v1194 = vunpack.c.l.b16 %v165
    %v1195 = vunpack.c.l.b16 %v166
    %v1196 = vunpack.c.l.b16 %v167
    %v1197 = vunpack.c.l.b16 %v168
    %v1198 = vunpack.c.l.b16 %v169
    %v1199 = vunpack.c.l.b16 %v170
    %v1200 = vunpack.c.l.b16 %v171
    %v1201 = vunpack.c.l.b16 %v172
    %v1202 = vunpack.c.l.b16 %v173
    %v1203 = vunpack.c.l.b16 %v174
    %v1204 = vunpack.c.l.b16 %v175
    %v1205 = vunpack.c.l.b16 %v176
    %v1206 = vunpack.c.l.b16 %v177
    %v1207 = vunpack.c.l.b16 %v178
    %v1208 = vunpack.c.l.b16 %v179
    %v1209 = vunpack.c.l.b16 %v180
    %v1210 = vunpack.c.l.b16 %v181
    %v1211 = vunpack.c.l.b16 %v182
    %v1212 = vunpack.c.l.b16 %v183
    %v1213 = vunpack.c.l.b16 %v184
    %v1214 = vunpack.c.l.b16 %v185
    %v1215 = vunpack.c.l.b16 %v186
    %v1216 = vunpack.c.l.b16 %v187
    %v1217 = vunpack.c.l.b16 %v188
    %v1218 = vunpack.c.l.b16 %v189
    %v1219 = vunpack.c.l.b16 %v190
    %v1220 = vunpack.c.l.b16 %v191
    %v1221 = vunpack.c.l.b16 %v192
    %v1222 = vunpack.c.l.b16 %v193
    %v1223 = vunpack.c.l.b16 %v194
    %v1224 = vunpack.c.l.b16 %v195
    %v1225 = vunpack.c.l.b16 %v196
    %v1226 = vunpack.c.l.b16 %v197
    %v1227 = vunpack.c.l.b16 %v198
    %v1228 = vunpack.c.l.b16 %v199
    %v1229 = vunpack.c.l.b16 %v200
    %v1230 = vunpack.c.l.b16 %v201
    %v1231 = vunpack.c.l.b16 %v202
    %v1232 = vunpack.c.l.b16 %v203
    %v1233 = vunpack.c.l.b16 %v204
    %v1234 = vunpack.c.l.b16 %v205
    %v1235 = vunpack.c.l.b16 %v206
    %v1236 = vunpack.c.l.b16 %v207
    %v1237 = vunpack.c.l.b16 %v208
    %v1238 = vunpack.c.l.b16 %v209
    %v1239 = vunpack.c.l.b16 %v210
    %v1240 = vunpack.c.l.b16 %v211
    %v1241 = vunpack.c.l.b16 %v212
    %v1242 = vunpack.c.l.b16 %v213
    %v1243 = vunpack.c.l.b16 %v214
    %v1244 = vunpack.c.l.b16 %v215
    %v1245 = vunpack.c.l.b16 %v216
    %v1246 = vunpack.c.l.b16 %v217
    %v1247 = vunpack.c.l.b16 %v218
    %v1248 = vunpack.c.l.b16 %v219
    %v1249 = vunpack.c.l.b16 %v220
    %v1250 = vunpack.c.l.b16 %v221
    %v1251 = vunpack.c.l.b16 %v222
    %v1252 = vunpack.c.l.b16 %v223
    %v1253 = vunpack.c.l.b16 %v224
    %v1254 = vunpack.c.l.b16 %v225
    %v1255 = vunpack.c.l.b16 %v226
    %v1256 = vunpack.c.l.b16 %v227
    %v1257 = vunpack.c.l.b16 %v228
    %v1258 = vunpack.c.l.b16 %v229
    %v1259 = vunpack.c.l.b16 %v230
    %v1260 = vunpack.c.l.b16 %v231
    %v1261 = vunpack.c.l.b16 %v232
    %v1262 = vunpack.c.l.b16 %v233
    %v1263 = vunpack.c.l.b16 %v234
    %v1264 = vunpack.c.l.b16 %v235
    %v1265 = vunpack.c.l.b16 %v236
    %v1266 = vunpack.c.l.b16 %v237
    %v1267 = vunpack.c.l.b16 %v238
    %v1268 = vunpack.c.l.b16 %v239
    %v1269 = vunpack.c.l.b16 %v240
    %v1270 = vunpack.c.l.b16 %v241
    %v1271 = vunpack.c.l.b16 %v242
    %v1272 = vunpack.c.l.b16 %v243
    %v1273 = vunpack.c.l.b16 %v244
    %v1274 = vunpack.c.l.b16 %v245
    %v1275 = vunpack.c.l.b16 %v246
    %v1276 = vunpack.c.l.b16 %v247
    %v1277 = vunpack.c.l.b16 %v248
    %v1278 = vunpack.c.l.b16 %v249
    %v1279 = vunpack.c.l.b16 %v250
    %v1280 = vunpack.c.l.b16 %v251
    %v1281 = vunpack.c.l.b16 %v252
    %v1282 = vunpack.c.l.b16 %v253
    %v1283 = vunpack.c.l.b16 %v254
    %v1284 = vunpack.c.l.b16 %v255
    %v1285 = vunpack.c.l.b16 %v256
    %v1286 = vunpack.c.l.b16 %v257
    %v1287 = vunpack.c.l.b16 %v258
    %v1288 = vunpack.c.l.b16 %v259
    %v1289 = vunpack.c.l.b16 %v260
    %v1290 = vunpack.c.l.b16 %v261
    %v1291 = vunpack.c.l.b16 %v262
    %v1292 = vunpack.c.l.b16 %v263
    %v1293 = vunpack.c.l.b16 %v264
    %v1294 = vunpack.c.l.b16 %v265
    %v1295 = vunpack.c.l.b16 %v266
    %v1296 = vunpack.c.l.b16 %v267
    %v1297 = vunpack.c.l.b16 %v268
    %v1298 = vunpack.c.l.b16 %v269
    %v1299 = vunpack.c.l.b16 %v270
    %v1300 = vunpack.c.l.b16 %v271
    %v1301 = vunpack.c.l.b16 %v272
    %v1302 = vunpack.c.l.b16 %v273
    %v1303 = vunpack.c.l.b16 %v274
    %v1304 = vunpack.c.l.b16 %v275
    %v1305 = vunpack.c.l.b16 %v276
    %v1306 = vunpack.c.l.b16 %v277
    %v1307 = vunpack.c.l.b16 %v278
    %v1308 = vunpack.c.l.b16 %v279
    %v1309 = vunpack.c.l.b16 %v280
    %v1310 = vunpack.c.l.b16 %v281
    %v1311 = vunpack.c.l.b16 %v282
    %v1312 = vunpack.c.l.b16 %v283
    %v1313 = vunpack.c.l.b16 %v284
    %v1314 = vunpack.c.l.b16 %v285
    %v1315 = vunpack.c.l.b16 %v286
    %v1316 = vunpack.c.l.b16 %v287
    %v1317 = vunpack.c.l.b16 %v288
    %v1318 = vunpack.c.l.b16 %v289
    %v1319 = vunpack.c.l.b16 %v290
    %v1320 = vunpack.c.l.b16 %v291
    %v1321 = vunpack.c.l.b16 %v292
    %v1322 = vunpack.c.l.b16 %v293
    %v1323 = vunpack.c.l.b16 %v294
    %v1324 = vunpack.c.l.b16 %v295
    %v1325 = vunpack.c.l.b16 %v296
    %v1326 = vunpack.c.l.b16 %v297
    %v1327 = vunpack.c.l.b16 %v298
    %v1328 = vunpack.c.l.b16 %v299
    %v1329 = vunpack.c.l.b16 %v300
    %v1330 = vunpack.c.l.b16 %v301
    %v1331 = vunpack.c.l.b16 %v302
    %v1332 = vunpack.c.l.b16 %v303
    %v1333 = vunpack.c.l.b16 %v304
    %v1334 = vunpack.c.l.b16 %v305
    %v1335 = vunpack.c.l.b16 %v306
    %v1336 = vunpack.c.l.b16 %v307
    %v1337 = vunpack.c.l.b16 %v308
    %v1338 = vunpack.c.l.b16 %v309
    %v1339 = vunpack.c.l.b16 %v310
    %v1340 = vunpack.c.l.b16 %v311
    %v1341 = vunpack.c.l.b16 %v312
    %v1342 = vunpack.c.l.b16 %v313
    %v1343 = vunpack.c.l.b16 %v314
    %v1344 = vunpack.c.l.b16 %v315
    %v1345 = vunpack.c.l.b16 %v316
    %v1346 = vunpack.c.l.b16 %v317
    %v1347 = vunpack.c.l.b16 %v318
    %v1348 = vunpack.c.l.b16 %v319
    %v1349 = vunpack.c.l.b16 %v320
    %v1350 = vunpack.c.l.b16 %v321
    %v1351 = vunpack.c.l.b16 %v322
    %v1352 = vunpack.c.l.b16 %v323
    %v1353 = vunpack.c.l.b16 %v324
    %v1354 = vunpack.c.l.b16 %v325
    %v1355 = vunpack.c.l.b16 %v326
    %v1356 = vunpack.c.l.b16 %v327
    %v1357 = vunpack.c.l.b16 %v328
    %v1358 = vunpack.c.l.b16 %v329
    %v1359 = vunpack.c.l.b16 %v330
    %v1360 = vunpack.c.l.b16 %v331
    %v1361 = vunpack.c.l.b16 %v332
    %v1362 = vunpack.c.l.b16 %v333
    %v1363 = vunpack.c.l.b16 %v334
    %v1364 = vunpack.c.l.b16 %v335
    %v1365 = vunpack.c.l.b16 %v336
    %v1366 = vunpack.c.l.b16 %v337
    %v1367 = vunpack.c.l.b16 %v338
    %v1368 = vunpack.c.l.b16 %v339
    %v1369 = vunpack.c.l.b16 %v340
    %v1370 = vunpack.c.l.b16 %v341
    %v1371 = vunpack.c.l.b16 %v342
    %v1372 = vunpack.c.l.b16 %v343
    %v1373 = vunpack.c.l.b16 %v344
    %v1374 = vunpack.c.l.b16 %v345
    %v1375 = vunpack.c.l.b16 %v346
    %v1376 = vunpack.c.l.b16 %v347
    %v1377 = vunpack.c.l.b16 %v348
    %v1378 = vunpack.c.l.b16 %v349
    %v1379 = vunpack.c.l.b16 %v350
    %v1380 = vunpack.c.l.b16 %v351
    %v1381 = vunpack.c.l.b16 %v352
    %v1382 = vunpack.c.l.b16 %v353
    %v1383 = vunpack.c.l.b16 %v354
    %v1384 = vunpack.c.l.b16 %v355
    %v1385 = vunpack.c.l.b16 %v356
    %v1386 = vunpack.c.l.b16 %v357
    %v1387 = vunpack.c.l.b16 %v358
    %v1388 = vunpack.c.l.b16 %v359
    %v1389 = vunpack.c.l.b16 %v360
    %v1390 = vunpack.c.l.b16 %v361
    %v1391 = vunpack.c.l.b16 %v362
    %v1392 = vunpack.c.l.b16 %v363
    %v1393 = vunpack.c.l.b16 %v364
    %v1394 = vunpack.c.l.b16 %v365
    %v1395 = vunpack.c.l.b16 %v366
    %v1396 = vunpack.c.l.b16 %v367
    %v1397 = vunpack.c.l.b16 %v368
    %v1398 = vunpack.c.l.b16 %v369
    %v1399 = vunpack.c.l.b16 %v370
    %v1400 = vunpack.c.l.b16 %v371
    %v1401 = vunpack.c.l.b16 %v372
    %v1402 = vunpack.c.l.b16 %v373
    %v1403 = vunpack.c.l.b16 %v374
    %v1404 = vunpack.c.l.b16 %v375
    %v1405 = vunpack.c.l.b16 %v376
    %v1406 = vunpack.c.l.b16 %v377
    %v1407 = vunpack.c.l.b16 %v378
    %v1408 = vunpack.c.l.b16 %v379
    %v1409 = vunpack.c.l.b16 %v380
    %v1410 = vunpack.c.l.b16 %v381
    %v1411 = vunpack.c.l.b16 %v382
    %v1412 = vunpack.c.l.b16 %v383
    %v1413 = vunpack.c.l.b16 %v384
    %v1414 = vunpack.c.l.b16 %v385
    %v1415 = vunpack.c.l.b16 %v386
    %v1416 = vunpack.c.l.b16 %v387
    %v1417 = vunpack.c.l.b16 %v388
    %v1418 = vunpack.c.l.b16 %v389
    %v1419 = vunpack.c.l.b16 %v390
    %v1420 = vunpack.c.l.b16 %v391
    %v1421 = vunpack.c.l.b16 %v392
    %v1422 = vunpack.c.l.b16 %v393
    %v1423 = vunpack.c.l.b16 %v394
    %v1424 = vunpack.c.l.b16 %v395
    %v1425 = vunpack.c.l.b16 %v396
    %v1426 = vunpack.c.l.b16 %v397
    %v1427 = vunpack.c.l.b16 %v398
    %v1428 = vunpack.c.l.b16 %v399
    %v1429 = vunpack.c.l.b16 %v400
    %v1430 = vunpack.c.l.b16 %v401
    %v1431 = vunpack.c.l.b16 %v402
    %v1432 = vunpack.c.l.b16 %v403
    %v1433 = vunpack.c.l.b16 %v404
    %v1434 = vunpack.c.l.b16 %v405
    %v1435 = vunpack.c.l.b16 %v406
    %v1436 = vunpack.c.l.b16 %v407
    %v1437 = vunpack.c.l.b16 %v408
    %v1438 = vunpack.c.l.b16 %v409
    %v1439 = vunpack.c.l.b16 %v410
    %v1440 = vunpack.c.l.b16 %v411
    %v1441 = vunpack.c.l.b16 %v412
    %v1442 = vunpack.c.l.b16 %v413
    %v1443 = vunpack.c.l.b16 %v414
    %v1444 = vunpack.c.l.b16 %v415
    %v1445 = vunpack.c.l.b16 %v416
    %v1446 = vunpack.c.l.b16 %v417
    %v1447 = vunpack.c.l.b16 %v418
    %v1448 = vunpack.c.l.b16 %v419
    %v1449 = vunpack.c.l.b16 %v420
    %v1450 = vunpack.c.l.b16 %v421
    %v1451 = vunpack.c.l.b16 %v422
    %v1452 = vunpack.c.l.b16 %v423
    %v1453 = vunpack.c.l.b16 %v424
    %v1454 = vunpack.c.l.b16 %v425
    %v1455 = vunpack.c.l.b16 %v426
    %v1456 = vunpack.c.l.b16 %v427
    %v1457 = vunpack.c.l.b16 %v428
    %v1458 = vunpack.c.l.b16 %v429
    %v1459 = vunpack.c.l.b16 %v430
    %v1460 = vunpack.c.l.b16 %v431
    %v1461 = vunpack.c.l.b16 %v432
    %v1462 = vunpack.c.l.b16 %v433
    %v1463 = vunpack.c.l.b16 %v434
    %v1464 = vunpack.c.l.b16 %v435
    %v1465 = vunpack.c.l.b16 %v436
    %v1466 = vunpack.c.l.b16 %v437
    %v1467 = vunpack.c.l.b16 %v438
    %v1468 = vunpack.c.l.b16 %v439
    %v1469 = vunpack.c.l.b16 %v440
    %v1470 = vunpack.c.l.b16 %v441
    %v1471 = vunpack.c.l.b16 %v442
    %v1472 = vunpack.c.l.b16 %v443
    %v1473 = vunpack.c.l.b16 %v444
    %v1474 = vunpack.c.l.b16 %v445
    %v1475 = vunpack.c.l.b16 %v446
    %v1476 = vunpack.c.l.b16 %v447
    %v1477 = vunpack.c.l.b16 %v448
    %v1478 = vunpack.c.l.b16 %v449
    %v1479 = vunpack.c.l.b16 %v450
    %v1480 = vunpack.c.l.b16 %v451
    %v1481 = vunpack.c.l.b16 %v452
    %v1482 = vunpack.c.l.b16 %v453
    %v1483 = vunpack.c.l.b16 %v454
    %v1484 = vunpack.c.l.b16 %v455
    %v1485 = vunpack.c.l.b16 %v456
    %v1486 = vunpack.c.l.b16 %v457
    %v1487 = vunpack.c.l.b16 %v458
    %v1488 = vunpack.c.l.b16 %v459
    %v1489 = vunpack.c.l.b16 %v460
    %v1490 = vunpack.c.l.b16 %v461
    %v1491 = vunpack.c.l.b16 %v462
    %v1492 = vunpack.c.l.b16 %v463
    %v1493 = vunpack.c.l.b16 %v464
    %v1494 = vunpack.c.l.b16 %v465
    %v1495 = vunpack.c.l.b16 %v466
    %v1496 = vunpack.c.l.b16 %v467
    %v1497 = vunpack.c.l.b16 %v468
    %v1498 = vunpack.c.l.b16 %v469
    %v1499 = vunpack.c.l.b16 %v470
    %v1500 = vunpack.c.l.b16 %v471
    %v1501 = vunpack.c.l.b16 %v472
    %v1502 = vunpack.c.l.b16 %v473
    %v1503 = vunpack.c.l.b16 %v474
    %v1504 = vunpack.c.l.b16 %v475
    %v1505 = vunpack.c.l.b16 %v476
    %v1506 = vunpack.c.l.b16 %v477
    %v1507 = vunpack.c.l.b16 %v478
    %v1508 = vunpack.c.l.b16 %v479
    %v1509 = vunpack.c.l.b16 %v480
    %v1510 = vunpack.c.l.b16 %v481
    %v1511 = vunpack.c.l.b16 %v482
    %v1512 = vunpack.c.l.b16 %v483
    %v1513 = vunpack.c.l.b16 %v484
    %v1514 = vunpack.c.l.b16 %v485
    %v1515 = vunpack.c.l.b16 %v486
    %v1516 = vunpack.c.l.b16 %v487
    %v1517 = vunpack.c.l.b16 %v488
    %v1518 = vunpack.c.l.b16 %v489
    %v1519 = vunpack.c.l.b16 %v490
    %v1520 = vunpack.c.l.b16 %v491
    %v1521 = vunpack.c.l.b16 %v492
    %v1522 = vunpack.c.l.b16 %v493
    %v1523 = vunpack.c.l.b16 %v494
    %v1524 = vunpack.c.l.b16 %v495
    %v1525 = vunpack.c.l.b16 %v496
    %v1526 = vunpack.c.l.b16 %v497
    %v1527 = vunpack.c.l.b16 %v498
    %v1528 = vunpack.c.l.b16 %v499
    %v1529 = vunpack.c.l.b16 %v500
    %v1530 = vunpack.c.l.b16 %v501
    %v1531 = vunpack.c.l.b16 %v502
    %v1532 = vunpack.c.l.b16 %v503
    %v1533 = vunpack.c.l.b16 %v504
    %v1534 = vunpack.c.l.b16 %v505
    %v1535 = vunpack.c.l.b16 %v506
    %v1536 = vunpack.c.l.b16 %v507
    %v1537 = vunpack.c.l.b16 %v508
    %v1538 = vunpack.c.l.b16 %v509
    %v1539 = vunpack.c.l.b16 %v510
    %v1540 = vunpack.c.l.b16 %v511
    %v1541 = vunpack.c.l.b16 %v512
    %v1542 = vunpack.c.l.b16 %v513
    %v1543 = vunpack.c.l.b16 %v514
    %v1544 = vunpack.c.l.b16 %v515
    %v1545 = vunpack.c.l.b16 %v516
    %v1546 = vunpack.c.l.b16 %v517
    %v1547 = vunpack.c.l.b16 %v518
    %v1548 = vunpack.c.l.b16 %v519
    %v1549 = vunpack.c.l.b16 %v520
    %v1550 = vunpack.c.l.b16 %v521
    %v1551 = vunpack.c.l.b16 %v522
    %v1552 = vunpack.c.l.b16 %v523
    %v1553 = vunpack.c.l.b16 %v524
    %v1554 = vunpack.c.l.b16 %v525
    %v1555 = vunpack.c.l.b16 %v526
    %v1556 = vunpack.c.l.b16 %v527
    %v1557 = vunpack.c.l.b16 %v528
    %v1558 = vunpack.c.l.b16 %v529
    %v1559 = vunpack.c.l.b16 %v530
    %v1560 = vunpack.c.l.b16 %v531
    %v1561 = vunpack.c.l.b16 %v532
    %v1562 = vunpack.c.l.b16 %v533
    %v1563 = vpack.c.b16 %v1052, %v1051
    %v1564 = vpack.c.b16 %v1054, %v1053
    %v1565 = vpack.c.b16 %v1056, %v1055
    %v1566 = vpack.c.b16 %v1058, %v1057
    %v1567 = vpack.c.b16 %v1060, %v1059
    %v1568 = vpack.c.b16 %v1062, %v1061
    %v1569 = vpack.c.b16 %v1064, %v1063
    %v1570 = vpack.c.b16 %v1066, %v1065
    %v1571 = vpack.c.b16 %v1068, %v1067
    %v1572 = vpack.c.b16 %v1070, %v1069
    %v1573 = vpack.c.b16 %v1072, %v1071
    %v1574 = vpack.c.b16 %v1074, %v1073
    %v1575 = vpack.c.b16 %v1076, %v1075
    %v1576 = vpack.c.b16 %v1078, %v1077
    %v1577 = vpack.c.b16 %v1080, %v1079
    %v1578 = vpack.c.b16 %v1082, %v1081
    %v1579 = vpack.c.b16 %v1084, %v1083
    %v1580 = vpack.c.b16 %v1086, %v1085
    %v1581 = vpack.c.b16 %v1088, %v1087
    %v1582 = vpack.c.b16 %v1090, %v1089
    %v1583 = vpack.c.b16 %v1092, %v1091
    %v1584 = vpack.c.b16 %v1094, %v1093
    %v1585 = vpack.c.b16 %v1096, %v1095
    %v1586 = vpack.c.b16 %v1098, %v1097
    %v1587 = vpack.c.b16 %v1100, %v1099
    %v1588 = vpack.c.b16 %v1102, %v1101
    %v1589 = vpack.c.b16 %v1104, %v1103
    %v1590 = vpack.c.b16 %v1106, %v1105
    %v1591 = vpack.c.b16 %v1108, %v1107
    %v1592 = vpack.c.b16 %v1110, %v1109
    %v1593 = vpack.c.b16 %v1112, %v1111
    %v1594 = vpack.c.b16 %v1114, %v1113
    %v1595 = vpack.c.b16 %v1116, %v1115
    %v1596 = vpack.c.b16 %v1118, %v1117
    %v1597 = vpack.c.b16 %v1120, %v1119
    %v1598 = vpack.c.b16 %v1122, %v1121
    %v1599 = vpack.c.b16 %v1124, %v1123
    %v1600 = vpack.c.b16 %v1126, %v1125
    %v1601 = vpack.c.b16 %v1128, %v1127
    %v1602 = vpack.c.b16 %v1130, %v1129
    %v1603 = vpack.c.b16 %v1132, %v1131
    %v1604 = vpack.c.b16 %v1134, %v1133
    %v1605 = vpack.c.b16 %v1136, %v1135
    %v1606 = vpack.c.b16 %v1138, %v1137
    %v1607 = vpack.c.b16 %v1140, %v1139
    %v1608 = vpack.c.b16 %v1142, %v1141
    %v1609 = vpack.c.b16 %v1144, %v1143
    %v1610 = vpack.c.b16 %v1146, %v1145
    %v1611 = vpack.c.b16 %v1148, %v1147
    %v1612 = vpack.c.b16 %v1150, %v1149
    %v1613 = vpack.c.b16 %v1152, %v1151
    %v1614 = vpack.c.b16 %v1154, %v1153
    %v1615 = vpack.c.b16 %v1156, %v1155
    %v1616 = vpack.c.b16 %v1158, %v1157
    %v1617 = vpack.c.b16 %v1160, %v1159
    %v1618 = vpack.c.b16 %v1162, %v1161
    %v1619 = vpack.c.b16 %v1164, %v1163
    %v1620 = vpack.c.b16 %v1166, %v1165
    %v1621 = vpack.c.b16 %v1168, %v1167
    %v1622 = vpack.c.b16 %v1170, %v1169
    %v1623 = vpack.c.b16 %v1172, %v1171
    %v1624 = vpack.c.b16 %v1174, %v1173
    %v1625 = vpack.c.b16 %v1176, %v1175
    %v1626 = vpack.c.b16 %v1178, %v1177
    %v1627 = vpack.c.b16 %v1180, %v1179
    %v1628 = vpack.c.b16 %v1182, %v1181
    %v1629 = vpack.c.b16 %v1184, %v1183
    %v1630 = vpack.c.b16 %v1186, %v1185
    %v1631 = vpack.c.b16 %v1188, %v1187
    %v1632 = vpack.c.b16 %v1190, %v1189
    %v1633 = vpack.c.b16 %v1192, %v1191
    %v1634 = vpack.c.b16 %v1194, %v1193
    %v1635 = vpack.c.b16 %v1196, %v1195
    %v1636 = vpack.c.b16 %v1198, %v1197
    %v1637 = vpack.c.b16 %v1200, %v1199
    %v1638 = vpack.c.b16 %v1202, %v1201
    %v1639 = vpack.c.b16 %v1204, %v1203
    %v1640 = vpack.c.b16 %v1206, %v1205
    %v1641 = vpack.c.b16 %v1208, %v1207
    %v1642 = vpack.c.b16 %v1210, %v1209
    %v1643 = vpack.c.b16 %v1212, %v1211
    %v1644 = vpack.c.b16 %v1214, %v1213
    %v1645 = vpack.c.b16 %v1216, %v1215
    %v1646 = vpack.c.b16 %v1218, %v1217
    %v1647 = vpack.c.b16 %v1220, %v1219
    %v1648 = vpack.c.b16 %v1222, %v1221
    %v1649 = vpack.c.b16 %v1224, %v1223
    %v1650 = vpack.c.b16 %v1226, %v1225
    %v1651 = vpack.c.b16 %v1228, %v1227
    %v1652 = vpack.c.b16 %v1230, %v1229
    %v1653 = vpack.c.b16 %v1232, %v1231
    %v1654 = vpack.c.b16 %v1234, %v1233
    %v1655 = vpack.c.b16 %v1236, %v1235
    %v1656 = vpack.c.b16 %v1238, %v1237
    %v1657 = vpack.c.b16 %v1240, %v1239
    %v1658 = vpack.c.b16 %v1242, %v1241
    %v1659 = vpack.c.b16 %v1244, %v1243
    %v1660 = vpack.c.b16 %v1246, %v1245
    %v1661 = vpack.c.b16 %v1248, %v1247
    %v1662 = vpack.c.b16 %v1250, %v1249
    %v1663 = vpack.c.b16 %v1252, %v1251
    %v1664 = vpack.c.b16 %v1254, %v1253
    %v1665 = vpack.c.b16 %v1256, %v1255
    %v1666 = vpack.c.b16 %v1258, %v1257
    %v1667 = vpack.c.b16 %v1260, %v1259
    %v1668 = vpack.c.b16 %v1262, %v1261
    %v1669 = vpack.c.b16 %v1264, %v1263
    %v1670 = vpack.c.b16 %v1266, %v1265
    %v1671 = vpack.c.b16 %v1268, %v1267
    %v1672 = vpack.c.b16 %v1270, %v1269
    %v1673 = vpack.c.b16 %v1272, %v1271
    %v1674 = vpack.c.b16 %v1274, %v1273
    %v1675 = vpack.c.b16 %v1276, %v1275
    %v1676 = vpack.c.b16 %v1278, %v1277
    %v1677 = vpack.c.b16 %v1280, %v1279
    %v1678 = vpack.c.b16 %v1282, %v1281
    %v1679 = vpack.c.b16 %v1284, %v1283
    %v1680 = vpack.c.b16 %v1286, %v1285
    %v1681 = vpack.c.b16 %v1288, %v1287
    %v1682 = vpack.c.b16 %v1290, %v1289
    %v1683 = vpack.c.b16 %v1292, %v1291
    %v1684 = vpack.c.b16 %v1294, %v1293
    %v1685 = vpack.c.b16 %v1296, %v1295
    %v1686 = vpack.c.b16 %v1298, %v1297
    %v1687 = vpack.c.b16 %v1300, %v1299
    %v1688 = vpack.c.b16 %v1302, %v1301
    %v1689 = vpack.c.b16 %v1304, %v1303
    %v1690 = vpack.c.b16 %v1306, %v1305
    %v1691 = vpack.c.b16 %v1308, %v1307
    %v1692 = vpack.c.b16 %v1310, %v1309
    %v1693 = vpack.c.b16 %v1312, %v1311
    %v1694 = vpack.c.b16 %v1314, %v1313
    %v1695 = vpack.c.b16 %v1316, %v1315
    %v1696 = vpack.c.b16 %v1318, %v1317
    %v1697 = vpack.c.b16 %v1320, %v1319
    %v1698 = vpack.c.b16 %v1322, %v1321
    %v1699 = vpack.c.b16 %v1324, %v1323
    %v1700 = vpack.c.b16 %v1326, %v1325
    %v1701 = vpack.c.b16 %v1328, %v1327
    %v1702 = vpack.c.b16 %v1330, %v1329
    %v1703 = vpack.c.b16 %v1332, %v1331
    %v1704 = vpack.c.b16 %v1334, %v1333
    %v1705 = vpack.c.b16 %v1336, %v1335
    %v1706 = vpack.c.b16 %v1338, %v1337
    %v1707 = vpack.c.b16 %v1340, %v1339
    %v1708 = vpack.c.b16 %v1342, %v1341
    %v1709 = vpack.c.b16 %v1344, %v1343
    %v1710 = vpack.c.b16 %v1346, %v1345
    %v1711 = vpack.c.b16 %v1348, %v1347
    %v1712 = vpack.c.b16 %v1350, %v1349
    %v1713 = vpack.c.b16 %v1352, %v1351
    %v1714 = vpack.c.b16 %v1354, %v1353
    %v1715 = vpack.c.b16 %v1356, %v1355
    %v1716 = vpack.c.b16 %v1358, %v1357
    %v1717 = vpack.c.b16 %v1360, %v1359
    %v1718 = vpack.c.b16 %v1362, %v1361
    %v1719 = vpack.c.b16 %v1364, %v1363
    %v1720 = vpack.c.b16 %v1366, %v1365
    %v1721 = vpack.c.b16 %v1368, %v1367
    %v1722 = vpack.c.b16 %v1370, %v1369
    %v1723 = vpack.c.b16 %v1372, %v1371
    %v1724 = vpack.c.b16 %v1374, %v1373
    %v1725 = vpack.c.b16 %v1376, %v1375
    %v1726 = vpack.c.b16 %v1378, %v1377
    %v1727 = vpack.c.b16 %v1380, %v1379
    %v1728 = vpack.c.b16 %v1382, %v1381
    %v1729 = vpack.c.b16 %v1384, %v1383
    %v1730 = vpack.c.b16 %v1386, %v1385
    %v1731 = vpack.c.b16 %v1388, %v1387
    %v1732 = vpack.c.b16 %v1390, %v1389
    %v1733 = vpack.c.b16 %v1392, %v1391
    %v1734 = vpack.c.b16 %v1394, %v1393
    %v1735 = vpack.c.b16 %v1396, %v1395
    %v1736 = vpack.c.b16 %v1398, %v1397
    %v1737 = vpack.c.b16 %v1400, %v1399
    %v1738 = vpack.c.b16 %v1402, %v1401
    %v1739 = vpack.c.b16 %v1404, %v1403
    %v1740 = vpack.c.b16 %v1406, %v1405
    %v1741 = vpack.c.b16 %v1408, %v1407
    %v1742 = vpack.c.b16 %v1410, %v1409
    %v1743 = vpack.c.b16 %v1412, %v1411
    %v1744 = vpack.c.b16 %v1414, %v1413
    %v1745 = vpack.c.b16 %v1416, %v1415
    %v1746 = vpack.c.b16 %v1418, %v1417
    %v1747 = vpack.c.b16 %v1420, %v1419
    %v1748 = vpack.c.b16 %v1422, %v1421
    %v1749 = vpack.c.b16 %v1424, %v1423
    %v1750 = vpack.c.b16 %v1426, %v1425
    %v1751 = vpack.c.b16 %v1428, %v1427
    %v1752 = vpack.c.b16 %v1430, %v1429
    %v1753 = vpack.c.b16 %v1432, %v1431
    %v1754 = vpack.c.b16 %v1434, %v1433
    %v1755 = vpack.c.b16 %v1436, %v1435
    %v1756 = vpack.c.b16 %v1438, %v1437
    %v1757 = vpack.c.b16 %v1440, %v1439
    %v1758 = vpack.c.b16 %v1442, %v1441
    %v1759 = vpack.c.b16 %v1444, %v1443
    %v1760 = vpack.c.b16 %v1446, %v1445
    %v1761 = vpack.c.b16 %v1448, %v1447
    %v1762 = vpack.c.b16 %v1450, %v1449
    %v1763 = vpack.c.b16 %v1452, %v1451
    %v1764 = vpack.c.b16 %v1454, %v1453
    %v1765 = vpack.c.b16 %v1456, %v1455
    %v1766 = vpack.c.b16 %v1458, %v1457
    %v1767 = vpack.c.b16 %v1460, %v1459
    %v1768 = vpack.c.b16 %v1462, %v1461
    %v1769 = vpack.c.b16 %v1464, %v1463
    %v1770 = vpack.c.b16 %v1466, %v1465
    %v1771 = vpack.c.b16 %v1468, %v1467
    %v1772 = vpack.c.b16 %v1470, %v1469
    %v1773 = vpack.c.b16 %v1472, %v1471
    %v1774 = vpack.c.b16 %v1474, %v1473
    %v1775 = vpack.c.b16 %v1476, %v1475
    %v1776 = vpack.c.b16 %v1478, %v1477
    %v1777 = vpack.c.b16 %v1480, %v1479
    %v1778 = vpack.c.b16 %v1482, %v1481
    %v1779 = vpack.c.b16 %v1484, %v1483
    %v1780 = vpack.c.b16 %v1486, %v1485
    %v1781 = vpack.c.b16 %v1488, %v1487
    %v1782 = vpack.c.b16 %v1490, %v1489
    %v1783 = vpack.c.b16 %v1492, %v1491
    %v1784 = vpack.c.b16 %v1494, %v1493
    %v1785 = vpack.c.b16 %v1496, %v1495
    %v1786 = vpack.c.b16 %v1498, %v1497
    %v1787 = vpack.c.b16 %v1500, %v1499
    %v1788 = vpack.c.b16 %v1502, %v1501
    %v1789 = vpack.c.b16 %v1504, %v1503
    %v1790 = vpack.c.b16 %v1506, %v1505
    %v1791 = vpack.c.b16 %v1508, %v1507
    %v1792 = vpack.c.b16 %v1510, %v1509
    %v1793 = vpack.c.b16 %v1512, %v1511
    %v1794 = vpack.c.b16 %v1514, %v1513
    %v1795 = vpack.c.b16 %v1516, %v1515
    %v1796 = vpack.c.b16 %v1518, %v1517
    %v1797 = vpack.c.b16 %v1520, %v1519
    %v1798 = vpack.c.b16 %v1522, %v1521
    %v1799 = vpack.c.b16 %v1524, %v1523
    %v1800 = vpack.c.b16 %v1526, %v1525
    %v1801 = vpack.c.b16 %v1528, %v1527
    %v1802 = vpack.c.b16 %v1530, %v1529
    %v1803 = vpack.c.b16 %v1532, %v1531
    %v1804 = vpack.c.b16 %v1534, %v1533
    %v1805 = vpack.c.b16 %v1536, %v1535
    %v1806 = vpack.c.b16 %v1538, %v1537
    %v1807 = vpack.c.b16 %v1540, %v1539
    %v1808 = vpack.c.b16 %v1542, %v1541
    %v1809 = vpack.c.b16 %v1544, %v1543
    %v1810 = vpack.c.b16 %v1546, %v1545
    %v1811 = vpack.c.b16 %v1548, %v1547
    %v1812 = vpack.c.b16 %v1550, %v1549
    %v1813 = vpack.c.b16 %v1552, %v1551
    %v1814 = vpack.c.b16 %v1554, %v1553
    %v1815 = vpack.c.b16 %v1556, %v1555
    %v1816 = vpack.c.b16 %v1558, %v1557
    %v1817 = vpack.c.b16 %v1560, %v1559
    %v1818 = vpack.c.b16 %v1562, %v1561
    %vm1819 = vcmask 31744
    %v1821 = vsel %vm1819, %v1563, 0
    %v1824 = vsel %vm1819, %v1564, 0
    %v1827 = vsel %vm1819, %v1565, 0
    %v1830 = vsel %vm1819, %v1566, 0
    %v1833 = vsel %vm1819, %v1567, 0
    %v1836 = vsel %vm1819, %v1568, 0
    %v1839 = vsel %vm1819, %v1569, 0
    %v1842 = vsel %vm1819, %v1570, 0
    %v1845 = vsel %vm1819, %v1571, 0
    %v1848 = vsel %vm1819, %v1572, 0
    %v1851 = vsel %vm1819, %v1573, 0
    %v1854 = vsel %vm1819, %v1574, 0
    %v1857 = vsel %vm1819, %v1575, 0
    %v1860 = vsel %vm1819, %v1576, 0
    %v1863 = vsel %vm1819, %v1577, 0
    %v1866 = vsel %vm1819, %v1578, 0
    %v1869 = vsel %vm1819, %v1579, 0
    %v1872 = vsel %vm1819, %v1580, 0
    %v1875 = vsel %vm1819, %v1581, 0
    %v1878 = vsel %vm1819, %v1582, 0
    %v1881 = vsel %vm1819, %v1583, 0
    %v1884 = vsel %vm1819, %v1584, 0
    %v1887 = vsel %vm1819, %v1585, 0
    %v1890 = vsel %vm1819, %v1586, 0
    %v1893 = vsel %vm1819, %v1587, 0
    %v1896 = vsel %vm1819, %v1588, 0
    %v1899 = vsel %vm1819, %v1589, 0
    %v1902 = vsel %vm1819, %v1590, 0
    %v1905 = vsel %vm1819, %v1591, 0
    %v1908 = vsel %vm1819, %v1592, 0
    %v1911 = vsel %vm1819, %v1593, 0
    %v1914 = vsel %vm1819, %v1594, 0
    %v1917 = vsel %vm1819, %v1595, 0
    %v1920 = vsel %vm1819, %v1596, 0
    %v1923 = vsel %vm1819, %v1597, 0
    %v1926 = vsel %vm1819, %v1598, 0
    %v1929 = vsel %vm1819, %v1599, 0
    %v1932 = vsel %vm1819, %v1600, 0
    %v1935 = vsel %vm1819, %v1601, 0
    %v1938 = vsel %vm1819, %v1602, 0
    %v1941 = vsel %vm1819, %v1603, 0
    %v1944 = vsel %vm1819, %v1604, 0
    %v1947 = vsel %vm1819, %v1605, 0
    %v1950 = vsel %vm1819, %v1606, 0
    %v1953 = vsel %vm1819, %v1607, 0
    %v1956 = vsel %vm1819, %v1608, 0
    %v1959 = vsel %vm1819, %v1609, 0
    %v1962 = vsel %vm1819, %v1610, 0
    %v1965 = vsel %vm1819, %v1611, 0
    %v1968 = vsel %vm1819, %v1612, 0
    %v1971 = vsel %vm1819, %v1613, 0
    %v1974 = vsel %vm1819, %v1614, 0
    %v1977 = vsel %vm1819, %v1615, 0
    %v1980 = vsel %vm1819, %v1616, 0
    %v1983 = vsel %vm1819, %v1617, 0
    %v1986 = vsel %vm1819, %v1618, 0
    %v1989 = vsel %vm1819, %v1619, 0
    %v1992 = vsel %vm1819, %v1620, 0
    %v1995 = vsel %vm1819, %v1621, 0
    %v1998 = vsel %vm1819, %v1622, 0
    %v2001 = vsel %vm1819, %v1623, 0
    %v2004 = vsel %vm1819, %v1624, 0
    %v2007 = vsel %vm1819, %v1625, 0
    %v2010 = vsel %vm1819, %v1626, 0
    %v2013 = vsel %vm1819, %v1627, 0
    %v2016 = vsel %vm1819, %v1628, 0
    %v2019 = vsel %vm1819, %v1629, 0
    %v2022 = vsel %vm1819, %v1630, 0
    %v2025 = vsel %vm1819, %v1631, 0
    %v2028 = vsel %vm1819, %v1632, 0
    %v2031 = vsel %vm1819, %v1633, 0
    %v2034 = vsel %vm1819, %v1634, 0
    %v2037 = vsel %vm1819, %v1635, 0
    %v2040 = vsel %vm1819, %v1636, 0
    %v2043 = vsel %vm1819, %v1637, 0
    %v2046 = vsel %vm1819, %v1638, 0
    %v2049 = vsel %vm1819, %v1639, 0
    %v2052 = vsel %vm1819, %v1640, 0
    %v2055 = vsel %vm1819, %v1641, 0
    %v2058 = vsel %vm1819, %v1642, 0
    %v2061 = vsel %vm1819, %v1643, 0
    %v2064 = vsel %vm1819, %v1644, 0
    %v2067 = vsel %vm1819, %v1645, 0
    %v2070 = vsel %vm1819, %v1646, 0
    %v2073 = vsel %vm1819, %v1647, 0
    %v2076 = vsel %vm1819, %v1648, 0
    %v2079 = vsel %vm1819, %v1649, 0
    %v2082 = vsel %vm1819, %v1650, 0
    %v2085 = vsel %vm1819, %v1651, 0
    %v2088 = vsel %vm1819, %v1652, 0
    %v2091 = vsel %vm1819, %v1653, 0
    %v2094 = vsel %vm1819, %v1654, 0
    %v2097 = vsel %vm1819, %v1655, 0
    %v2100 = vsel %vm1819, %v1656, 0
    %v2103 = vsel %vm1819, %v1657, 0
    %v2106 = vsel %vm1819, %v1658, 0
    %v2109 = vsel %vm1819, %v1659, 0
    %v2112 = vsel %vm1819, %v1660, 0
    %v2115 = vsel %vm1819, %v1661, 0
    %v2118 = vsel %vm1819, %v1662, 0
    %v2121 = vsel %vm1819, %v1663, 0
    %v2124 = vsel %vm1819, %v1664, 0
    %v2127 = vsel %vm1819, %v1665, 0
    %v2130 = vsel %vm1819, %v1666, 0
    %v2133 = vsel %vm1819, %v1667, 0
    %v2136 = vsel %vm1819, %v1668, 0
    %v2139 = vsel %vm1819, %v1669, 0
    %v2142 = vsel %vm1819, %v1670, 0
    %v2145 = vsel %vm1819, %v1671, 0
    %v2148 = vsel %vm1819, %v1672, 0
    %v2151 = vsel %vm1819, %v1673, 0
    %v2154 = vsel %vm1819, %v1674, 0
    %v2157 = vsel %vm1819, %v1675, 0
    %v2160 = vsel %vm1819, %v1676, 0
    %v2163 = vsel %vm1819, %v1677, 0
    %v2166 = vsel %vm1819, %v1678, 0
    %v2169 = vsel %vm1819, %v1679, 0
    %v2172 = vsel %vm1819, %v1680, 0
    %v2175 = vsel %vm1819, %v1681, 0
    %v2178 = vsel %vm1819, %v1682, 0
    %v2181 = vsel %vm1819, %v1683, 0
    %v2184 = vsel %vm1819, %v1684, 0
    %v2187 = vsel %vm1819, %v1685, 0
    %v2190 = vsel %vm1819, %v1686, 0
    %v2193 = vsel %vm1819, %v1687, 0
    %v2196 = vsel %vm1819, %v1688, 0
    %v2199 = vsel %vm1819, %v1689, 0
    %v2202 = vsel %vm1819, %v1690, 0
    %v2205 = vsel %vm1819, %v1691, 0
    %v2208 = vsel %vm1819, %v1692, 0
    %v2211 = vsel %vm1819, %v1693, 0
    %v2214 = vsel %vm1819, %v1694, 0
    %v2217 = vsel %vm1819, %v1695, 0
    %v2220 = vsel %vm1819, %v1696, 0
    %v2223 = vsel %vm1819, %v1697, 0
    %v2226 = vsel %vm1819, %v1698, 0
    %v2229 = vsel %vm1819, %v1699, 0
    %v2232 = vsel %vm1819, %v1700, 0
    %v2235 = vsel %vm1819, %v1701, 0
    %v2238 = vsel %vm1819, %v1702, 0
    %v2241 = vsel %vm1819, %v1703, 0
    %v2244 = vsel %vm1819, %v1704, 0
    %v2247 = vsel %vm1819, %v1705, 0
    %v2250 = vsel %vm1819, %v1706, 0
    %v2253 = vsel %vm1819, %v1707, 0
    %v2256 = vsel %vm1819, %v1708, 0
    %v2259 = vsel %vm1819, %v1709, 0
    %v2262 = vsel %vm1819, %v1710, 0
    %v2265 = vsel %vm1819, %v1711, 0
    %v2268 = vsel %vm1819, %v1712, 0
    %v2271 = vsel %vm1819, %v1713, 0
    %v2274 = vsel %vm1819, %v1714, 0
    %v2277 = vsel %vm1819, %v1715, 0
    %v2280 = vsel %vm1819, %v1716, 0
    %v2283 = vsel %vm1819, %v1717, 0
    %v2286 = vsel %vm1819, %v1718, 0
    %v2289 = vsel %vm1819, %v1719, 0
    %v2292 = vsel %vm1819, %v1720, 0
    %v2295 = vsel %vm1819, %v1721, 0
    %v2298 = vsel %vm1819, %v1722, 0
    %v2301 = vsel %vm1819, %v1723, 0
    %v2304 = vsel %vm1819, %v1724, 0
    %v2307 = vsel %vm1819, %v1725, 0
    %v2310 = vsel %vm1819, %v1726, 0
    %v2313 = vsel %vm1819, %v1727, 0
    %v2316 = vsel %vm1819, %v1728, 0
    %v2319 = vsel %vm1819, %v1729, 0
    %v2322 = vsel %vm1819, %v1730, 0
    %v2325 = vsel %vm1819, %v1731, 0
    %v2328 = vsel %vm1819, %v1732, 0
    %v2331 = vsel %vm1819, %v1733, 0
    %v2334 = vsel %vm1819, %v1734, 0
    %v2337 = vsel %vm1819, %v1735, 0
    %v2340 = vsel %vm1819, %v1736, 0
    %v2343 = vsel %vm1819, %v1737, 0
    %v2346 = vsel %vm1819, %v1738, 0
    %v2349 = vsel %vm1819, %v1739, 0
    %v2352 = vsel %vm1819, %v1740, 0
    %v2355 = vsel %vm1819, %v1741, 0
    %v2358 = vsel %vm1819, %v1742, 0
    %v2361 = vsel %vm1819, %v1743, 0
    %v2364 = vsel %vm1819, %v1744, 0
    %v2367 = vsel %vm1819, %v1745, 0
    %v2370 = vsel %vm1819, %v1746, 0
    %v2373 = vsel %vm1819, %v1747, 0
    %v2376 = vsel %vm1819, %v1748, 0
    %v2379 = vsel %vm1819, %v1749, 0
    %v2382 = vsel %vm1819, %v1750, 0
    %v2385 = vsel %vm1819, %v1751, 0
    %v2388 = vsel %vm1819, %v1752, 0
    %v2391 = vsel %vm1819, %v1753, 0
    %v2394 = vsel %vm1819, %v1754, 0
    %v2397 = vsel %vm1819, %v1755, 0
    %v2400 = vsel %vm1819, %v1756, 0
    %v2403 = vsel %vm1819, %v1757, 0
    %v2406 = vsel %vm1819, %v1758, 0
    %v2409 = vsel %vm1819, %v1759, 0
    %v2412 = vsel %vm1819, %v1760, 0
    %v2415 = vsel %vm1819, %v1761, 0
    %v2418 = vsel %vm1819, %v1762, 0
    %v2421 = vsel %vm1819, %v1763, 0
    %v2424 = vsel %vm1819, %v1764, 0
    %v2427 = vsel %vm1819, %v1765, 0
    %v2430 = vsel %vm1819, %v1766, 0
    %v2433 = vsel %vm1819, %v1767, 0
    %v2436 = vsel %vm1819, %v1768, 0
    %v2439 = vsel %vm1819, %v1769, 0
    %v2442 = vsel %vm1819, %v1770, 0
    %v2445 = vsel %vm1819, %v1771, 0
    %v2448 = vsel %vm1819, %v1772, 0
    %v2451 = vsel %vm1819, %v1773, 0
    %v2454 = vsel %vm1819, %v1774, 0
    %v2457 = vsel %vm1819, %v1775, 0
    %v2460 = vsel %vm1819, %v1776, 0
    %v2463 = vsel %vm1819, %v1777, 0
    %v2466 = vsel %vm1819, %v1778, 0
    %v2469 = vsel %vm1819, %v1779, 0
    %v2472 = vsel %vm1819, %v1780, 0
    %v2475 = vsel %vm1819, %v1781, 0
    %v2478 = vsel %vm1819, %v1782, 0
    %v2481 = vsel %vm1819, %v1783, 0
    %v2484 = vsel %vm1819, %v1784, 0
    %v2487 = vsel %vm1819, %v1785, 0
    %v2490 = vsel %vm1819, %v1786, 0
    %v2493 = vsel %vm1819, %v1787, 0
    %v2496 = vsel %vm1819, %v1788, 0
    %v2499 = vsel %vm1819, %v1789, 0
    %v2502 = vsel %vm1819, %v1790, 0
    %v2505 = vsel %vm1819, %v1791, 0
    %v2508 = vsel %vm1819, %v1792, 0
    %v2511 = vsel %vm1819, %v1793, 0
    %v2514 = vsel %vm1819, %v1794, 0
    %v2517 = vsel %vm1819, %v1795, 0
    %v2520 = vsel %vm1819, %v1796, 0
    %v2523 = vsel %vm1819, %v1797, 0
    %v2526 = vsel %vm1819, %v1798, 0
    %v2529 = vsel %vm1819, %v1799, 0
    %v2532 = vsel %vm1819, %v1800, 0
    %v2535 = vsel %vm1819, %v1801, 0
    %v2538 = vsel %vm1819, %v1802, 0
    %v2541 = vsel %vm1819, %v1803, 0
    %v2544 = vsel %vm1819, %v1804, 0
    %v2547 = vsel %vm1819, %v1805, 0
    %v2550 = vsel %vm1819, %v1806, 0
    %v2553 = vsel %vm1819, %v1807, 0
    %v2556 = vsel %vm1819, %v1808, 0
    %v2559 = vsel %vm1819, %v1809, 0
    %v2562 = vsel %vm1819, %v1810, 0
    %v2565 = vsel %vm1819, %v1811, 0
    %v2568 = vsel %vm1819, %v1812, 0
    %v2571 = vsel %vm1819, %v1813, 0
    %v2574 = vsel %vm1819, %v1814, 0
    %v2577 = vsel %vm1819, %v1815, 0
    %v2580 = vsel %vm1819, %v1816, 0
    %v2583 = vsel %vm1819, %v1817, 0
    %v2586 = vsel %vm1819, %v1818, 0
    %vm2588 = vcmask 1041408
    %v2590 = vsel %vm2588, %v534, 0
    %2592 = vmatpush.bf16.msra.mxu0 0
    %2593 = vmatpush.bf16.msra.mxu0 0
    %2594 = vmatpush.bf16.msra.mxu0 0
    %2595 = vmatpush.bf16.msra.mxu0 0
    %2596 = vmatpush.bf16.msra.mxu0 0
    %2597 = vmatpush.bf16.msra.mxu0 0
    %2598 = vmatpush.bf16.msra.mxu0 0
    %2599 = vmatpush.bf16.msra.mxu0 %v2590
    %2600 = vmatmul.bf16.gmra.mxu0 %v1821
    %v2601 = vpop.f32.mrf.mxu0
    %v2602 = vadd.f32 %v537, %v2601
    %v2603 = vpop.f32.mrf.mxu0
    %v2604 = vadd.f32 %v537, %v2603
    %2605 = vmatmul.bf16.gmra.mxu0 %v1824
    %v2606 = vpop.f32.mrf.mxu0
    %v2607 = vadd.f32 %v537, %v2606
    %v2608 = vpop.f32.mrf.mxu0
    %v2609 = vadd.f32 %v537, %v2608
    %2610 = vmatmul.bf16.gmra.mxu0 %v1827
    %v2611 = vpop.f32.mrf.mxu0
    %v2612 = vadd.f32 %v537, %v2611
    %v2613 = vpop.f32.mrf.mxu0
    %v2614 = vadd.f32 %v537, %v2613
    %2615 = vmatmul.bf16.gmra.mxu0 %v1830
    %v2616 = vpop.f32.mrf.mxu0
    %v2617 = vadd.f32 %v537, %v2616
    %v2618 = vpop.f32.mrf.mxu0
    %v2619 = vadd.f32 %v537, %v2618
    %2620 = vmatmul.bf16.gmra.mxu0 %v1833
    %v2621 = vpop.f32.mrf.mxu0
    %v2622 = vadd.f32 %v537, %v2621
    %v2623 = vpop.f32.mrf.mxu0
    %v2624 = vadd.f32 %v537, %v2623
    %2625 = vmatmul.bf16.gmra.mxu0 %v1836
    %v2626 = vpop.f32.mrf.mxu0
    %v2627 = vadd.f32 %v537, %v2626
    %v2628 = vpop.f32.mrf.mxu0
    %v2629 = vadd.f32 %v537, %v2628
    %2630 = vmatmul.bf16.gmra.mxu0 %v1839
    %v2631 = vpop.f32.mrf.mxu0
    %v2632 = vadd.f32 %v537, %v2631
    %v2633 = vpop.f32.mrf.mxu0
    %v2634 = vadd.f32 %v537, %v2633
    %2635 = vmatmul.bf16.gmra.mxu0 %v1842
    %v2636 = vpop.f32.mrf.mxu0
    %v2637 = vadd.f32 %v537, %v2636
    %v2638 = vpop.f32.mrf.mxu0
    %v2639 = vadd.f32 %v537, %v2638
    %2640 = vmatmul.bf16.gmra.mxu0 %v1845
    %v2641 = vpop.f32.mrf.mxu0
    %v2642 = vadd.f32 %v537, %v2641
    %v2643 = vpop.f32.mrf.mxu0
    %v2644 = vadd.f32 %v537, %v2643
    %2645 = vmatmul.bf16.gmra.mxu0 %v1848
    %v2646 = vpop.f32.mrf.mxu0
    %v2647 = vadd.f32 %v537, %v2646
    %v2648 = vpop.f32.mrf.mxu0
    %v2649 = vadd.f32 %v537, %v2648
    %2650 = vmatmul.bf16.gmra.mxu0 %v1851
    %v2651 = vpop.f32.mrf.mxu0
    %v2652 = vadd.f32 %v537, %v2651
    %v2653 = vpop.f32.mrf.mxu0
    %v2654 = vadd.f32 %v537, %v2653
    %2655 = vmatmul.bf16.gmra.mxu0 %v1854
    %v2656 = vpop.f32.mrf.mxu0
    %v2657 = vadd.f32 %v537, %v2656
    %v2658 = vpop.f32.mrf.mxu0
    %v2659 = vadd.f32 %v537, %v2658
    %2660 = vmatmul.bf16.gmra.mxu0 %v1857
    %v2661 = vpop.f32.mrf.mxu0
    %v2662 = vadd.f32 %v537, %v2661
    %v2663 = vpop.f32.mrf.mxu0
    %v2664 = vadd.f32 %v537, %v2663
    %2665 = vmatmul.bf16.gmra.mxu0 %v1860
    %v2666 = vpop.f32.mrf.mxu0
    %v2667 = vadd.f32 %v537, %v2666
    %v2668 = vpop.f32.mrf.mxu0
    %v2669 = vadd.f32 %v537, %v2668
    %2670 = vmatmul.bf16.gmra.mxu0 %v1863
    %v2671 = vpop.f32.mrf.mxu0
    %v2672 = vadd.f32 %v537, %v2671
    %v2673 = vpop.f32.mrf.mxu0
    %v2674 = vadd.f32 %v537, %v2673
    %2675 = vmatmul.bf16.gmra.mxu0 %v1866
    %v2676 = vpop.f32.mrf.mxu0
    %v2677 = vadd.f32 %v537, %v2676
    %v2678 = vpop.f32.mrf.mxu0
    %v2679 = vadd.f32 %v537, %v2678
    %2680 = vmatmul.bf16.gmra.mxu0 %v1869
    %v2681 = vpop.f32.mrf.mxu0
    %v2682 = vadd.f32 %v537, %v2681
    %v2683 = vpop.f32.mrf.mxu0
    %v2684 = vadd.f32 %v537, %v2683
    %2685 = vmatmul.bf16.gmra.mxu0 %v1872
    %v2686 = vpop.f32.mrf.mxu0
    %v2687 = vadd.f32 %v537, %v2686
    %v2688 = vpop.f32.mrf.mxu0
    %v2689 = vadd.f32 %v537, %v2688
    %2690 = vmatmul.bf16.gmra.mxu0 %v1875
    %v2691 = vpop.f32.mrf.mxu0
    %v2692 = vadd.f32 %v537, %v2691
    %v2693 = vpop.f32.mrf.mxu0
    %v2694 = vadd.f32 %v537, %v2693
    %2695 = vmatmul.bf16.gmra.mxu0 %v1878
    %v2696 = vpop.f32.mrf.mxu0
    %v2697 = vadd.f32 %v537, %v2696
    %v2698 = vpop.f32.mrf.mxu0
    %v2699 = vadd.f32 %v537, %v2698
    %2700 = vmatmul.bf16.gmra.mxu0 %v1881
    %v2701 = vpop.f32.mrf.mxu0
    %v2702 = vadd.f32 %v537, %v2701
    %v2703 = vpop.f32.mrf.mxu0
    %v2704 = vadd.f32 %v537, %v2703
    %2705 = vmatmul.bf16.gmra.mxu0 %v1884
    %v2706 = vpop.f32.mrf.mxu0
    %v2707 = vadd.f32 %v537, %v2706
    %v2708 = vpop.f32.mrf.mxu0
    %v2709 = vadd.f32 %v537, %v2708
    %2710 = vmatmul.bf16.gmra.mxu0 %v1887
    %v2711 = vpop.f32.mrf.mxu0
    %v2712 = vadd.f32 %v537, %v2711
    %v2713 = vpop.f32.mrf.mxu0
    %v2714 = vadd.f32 %v537, %v2713
    %2715 = vmatmul.bf16.gmra.mxu0 %v1890
    %v2716 = vpop.f32.mrf.mxu0
    %v2717 = vadd.f32 %v537, %v2716
    %v2718 = vpop.f32.mrf.mxu0
    %v2719 = vadd.f32 %v537, %v2718
    %2720 = vmatmul.bf16.gmra.mxu0 %v1893
    %v2721 = vpop.f32.mrf.mxu0
    %v2722 = vadd.f32 %v537, %v2721
    %v2723 = vpop.f32.mrf.mxu0
    %v2724 = vadd.f32 %v537, %v2723
    %2725 = vmatmul.bf16.gmra.mxu0 %v1896
    %v2726 = vpop.f32.mrf.mxu0
    %v2727 = vadd.f32 %v537, %v2726
    %v2728 = vpop.f32.mrf.mxu0
    %v2729 = vadd.f32 %v537, %v2728
    %2730 = vmatmul.bf16.gmra.mxu0 %v1899
    %v2731 = vpop.f32.mrf.mxu0
    %v2732 = vadd.f32 %v537, %v2731
    %v2733 = vpop.f32.mrf.mxu0
    %v2734 = vadd.f32 %v537, %v2733
    %2735 = vmatmul.bf16.gmra.mxu0 %v1902
    %v2736 = vpop.f32.mrf.mxu0
    %v2737 = vadd.f32 %v537, %v2736
    %v2738 = vpop.f32.mrf.mxu0
    %v2739 = vadd.f32 %v537, %v2738
    %2740 = vmatmul.bf16.gmra.mxu0 %v1905
    %v2741 = vpop.f32.mrf.mxu0
    %v2742 = vadd.f32 %v537, %v2741
    %v2743 = vpop.f32.mrf.mxu0
    %v2744 = vadd.f32 %v537, %v2743
    %2745 = vmatmul.bf16.gmra.mxu0 %v1908
    %v2746 = vpop.f32.mrf.mxu0
    %v2747 = vadd.f32 %v537, %v2746
    %v2748 = vpop.f32.mrf.mxu0
    %v2749 = vadd.f32 %v537, %v2748
    %2750 = vmatmul.bf16.gmra.mxu0 %v1911
    %v2751 = vpop.f32.mrf.mxu0
    %v2752 = vadd.f32 %v537, %v2751
    %v2753 = vpop.f32.mrf.mxu0
    %v2754 = vadd.f32 %v537, %v2753
    %2755 = vmatmul.bf16.gmra.mxu0 %v1914
    %v2756 = vpop.f32.mrf.mxu0
    %v2757 = vadd.f32 %v537, %v2756
    %v2758 = vpop.f32.mrf.mxu0
    %v2759 = vadd.f32 %v537, %v2758
    %2760 = vmatmul.bf16.gmra.mxu0 %v1917
    %v2761 = vpop.f32.mrf.mxu0
    %v2762 = vadd.f32 %v537, %v2761
    %v2763 = vpop.f32.mrf.mxu0
    %v2764 = vadd.f32 %v537, %v2763
    %2765 = vmatmul.bf16.gmra.mxu0 %v1920
    %v2766 = vpop.f32.mrf.mxu0
    %v2767 = vadd.f32 %v537, %v2766
    %v2768 = vpop.f32.mrf.mxu0
    %v2769 = vadd.f32 %v537, %v2768
    %2770 = vmatmul.bf16.gmra.mxu0 %v1923
    %v2771 = vpop.f32.mrf.mxu0
    %v2772 = vadd.f32 %v537, %v2771
    %v2773 = vpop.f32.mrf.mxu0
    %v2774 = vadd.f32 %v537, %v2773
    %2775 = vmatmul.bf16.gmra.mxu0 %v1926
    %v2776 = vpop.f32.mrf.mxu0
    %v2777 = vadd.f32 %v537, %v2776
    %v2778 = vpop.f32.mrf.mxu0
    %v2779 = vadd.f32 %v537, %v2778
    %2780 = vmatmul.bf16.gmra.mxu0 %v1929
    %v2781 = vpop.f32.mrf.mxu0
    %v2782 = vadd.f32 %v537, %v2781
    %v2783 = vpop.f32.mrf.mxu0
    %v2784 = vadd.f32 %v537, %v2783
    %2785 = vmatmul.bf16.gmra.mxu0 %v1932
    %v2786 = vpop.f32.mrf.mxu0
    %v2787 = vadd.f32 %v537, %v2786
    %v2788 = vpop.f32.mrf.mxu0
    %v2789 = vadd.f32 %v537, %v2788
    %2790 = vmatmul.bf16.gmra.mxu0 %v1935
    %v2791 = vpop.f32.mrf.mxu0
    %v2792 = vadd.f32 %v537, %v2791
    %v2793 = vpop.f32.mrf.mxu0
    %v2794 = vadd.f32 %v537, %v2793
    %2795 = vmatmul.bf16.gmra.mxu0 %v1938
    %v2796 = vpop.f32.mrf.mxu0
    %v2797 = vadd.f32 %v537, %v2796
    %v2798 = vpop.f32.mrf.mxu0
    %v2799 = vadd.f32 %v537, %v2798
    %2800 = vmatmul.bf16.gmra.mxu0 %v1941
    %v2801 = vpop.f32.mrf.mxu0
    %v2802 = vadd.f32 %v537, %v2801
    %v2803 = vpop.f32.mrf.mxu0
    %v2804 = vadd.f32 %v537, %v2803
    %2805 = vmatmul.bf16.gmra.mxu0 %v1944
    %v2806 = vpop.f32.mrf.mxu0
    %v2807 = vadd.f32 %v537, %v2806
    %v2808 = vpop.f32.mrf.mxu0
    %v2809 = vadd.f32 %v537, %v2808
    %2810 = vmatmul.bf16.gmra.mxu0 %v1947
    %v2811 = vpop.f32.mrf.mxu0
    %v2812 = vadd.f32 %v537, %v2811
    %v2813 = vpop.f32.mrf.mxu0
    %v2814 = vadd.f32 %v537, %v2813
    %2815 = vmatmul.bf16.gmra.mxu0 %v1950
    %v2816 = vpop.f32.mrf.mxu0
    %v2817 = vadd.f32 %v537, %v2816
    %v2818 = vpop.f32.mrf.mxu0
    %v2819 = vadd.f32 %v537, %v2818
    %2820 = vmatmul.bf16.gmra.mxu0 %v1953
    %v2821 = vpop.f32.mrf.mxu0
    %v2822 = vadd.f32 %v537, %v2821
    %v2823 = vpop.f32.mrf.mxu0
    %v2824 = vadd.f32 %v537, %v2823
    %2825 = vmatmul.bf16.gmra.mxu0 %v1956
    %v2826 = vpop.f32.mrf.mxu0
    %v2827 = vadd.f32 %v537, %v2826
    %v2828 = vpop.f32.mrf.mxu0
    %v2829 = vadd.f32 %v537, %v2828
    %2830 = vmatmul.bf16.gmra.mxu0 %v1959
    %v2831 = vpop.f32.mrf.mxu0
    %v2832 = vadd.f32 %v537, %v2831
    %v2833 = vpop.f32.mrf.mxu0
    %v2834 = vadd.f32 %v537, %v2833
    %2835 = vmatmul.bf16.gmra.mxu0 %v1962
    %v2836 = vpop.f32.mrf.mxu0
    %v2837 = vadd.f32 %v537, %v2836
    %v2838 = vpop.f32.mrf.mxu0
    %v2839 = vadd.f32 %v537, %v2838
    %2840 = vmatmul.bf16.gmra.mxu0 %v1965
    %v2841 = vpop.f32.mrf.mxu0
    %v2842 = vadd.f32 %v537, %v2841
    %v2843 = vpop.f32.mrf.mxu0
    %v2844 = vadd.f32 %v537, %v2843
    %2845 = vmatmul.bf16.gmra.mxu0 %v1968
    %v2846 = vpop.f32.mrf.mxu0
    %v2847 = vadd.f32 %v537, %v2846
    %v2848 = vpop.f32.mrf.mxu0
    %v2849 = vadd.f32 %v537, %v2848
    %2850 = vmatmul.bf16.gmra.mxu0 %v1971
    %v2851 = vpop.f32.mrf.mxu0
    %v2852 = vadd.f32 %v537, %v2851
    %v2853 = vpop.f32.mrf.mxu0
    %v2854 = vadd.f32 %v537, %v2853
    %2855 = vmatmul.bf16.gmra.mxu0 %v1974
    %v2856 = vpop.f32.mrf.mxu0
    %v2857 = vadd.f32 %v537, %v2856
    %v2858 = vpop.f32.mrf.mxu0
    %v2859 = vadd.f32 %v537, %v2858
    %2860 = vmatmul.bf16.gmra.mxu0 %v1977
    %v2861 = vpop.f32.mrf.mxu0
    %v2862 = vadd.f32 %v537, %v2861
    %v2863 = vpop.f32.mrf.mxu0
    %v2864 = vadd.f32 %v537, %v2863
    %2865 = vmatmul.bf16.gmra.mxu0 %v1980
    %v2866 = vpop.f32.mrf.mxu0
    %v2867 = vadd.f32 %v537, %v2866
    %v2868 = vpop.f32.mrf.mxu0
    %v2869 = vadd.f32 %v537, %v2868
    %2870 = vmatmul.bf16.gmra.mxu0 %v1983
    %v2871 = vpop.f32.mrf.mxu0
    %v2872 = vadd.f32 %v537, %v2871
    %v2873 = vpop.f32.mrf.mxu0
    %v2874 = vadd.f32 %v537, %v2873
    %2875 = vmatmul.bf16.gmra.mxu0 %v1986
    %v2876 = vpop.f32.mrf.mxu0
    %v2877 = vadd.f32 %v537, %v2876
    %v2878 = vpop.f32.mrf.mxu0
    %v2879 = vadd.f32 %v537, %v2878
    %2880 = vmatmul.bf16.gmra.mxu0 %v1989
    %v2881 = vpop.f32.mrf.mxu0
    %v2882 = vadd.f32 %v537, %v2881
    %v2883 = vpop.f32.mrf.mxu0
    %v2884 = vadd.f32 %v537, %v2883
    %2885 = vmatmul.bf16.gmra.mxu0 %v1992
    %v2886 = vpop.f32.mrf.mxu0
    %v2887 = vadd.f32 %v537, %v2886
    %v2888 = vpop.f32.mrf.mxu0
    %v2889 = vadd.f32 %v537, %v2888
    %2890 = vmatmul.bf16.gmra.mxu0 %v1995
    %v2891 = vpop.f32.mrf.mxu0
    %v2892 = vadd.f32 %v537, %v2891
    %v2893 = vpop.f32.mrf.mxu0
    %v2894 = vadd.f32 %v537, %v2893
    %2895 = vmatmul.bf16.gmra.mxu0 %v1998
    %v2896 = vpop.f32.mrf.mxu0
    %v2897 = vadd.f32 %v537, %v2896
    %v2898 = vpop.f32.mrf.mxu0
    %v2899 = vadd.f32 %v537, %v2898
    %2900 = vmatmul.bf16.gmra.mxu0 %v2001
    %v2901 = vpop.f32.mrf.mxu0
    %v2902 = vadd.f32 %v537, %v2901
    %v2903 = vpop.f32.mrf.mxu0
    %v2904 = vadd.f32 %v537, %v2903
    %2905 = vmatmul.bf16.gmra.mxu0 %v2004
    %v2906 = vpop.f32.mrf.mxu0
    %v2907 = vadd.f32 %v537, %v2906
    %v2908 = vpop.f32.mrf.mxu0
    %v2909 = vadd.f32 %v537, %v2908
    %2910 = vmatmul.bf16.gmra.mxu0 %v2007
    %v2911 = vpop.f32.mrf.mxu0
    %v2912 = vadd.f32 %v537, %v2911
    %v2913 = vpop.f32.mrf.mxu0
    %v2914 = vadd.f32 %v537, %v2913
    %2915 = vmatmul.bf16.gmra.mxu0 %v2010
    %v2916 = vpop.f32.mrf.mxu0
    %v2917 = vadd.f32 %v537, %v2916
    %v2918 = vpop.f32.mrf.mxu0
    %v2919 = vadd.f32 %v537, %v2918
    %2920 = vmatmul.bf16.gmra.mxu0 %v2013
    %v2921 = vpop.f32.mrf.mxu0
    %v2922 = vadd.f32 %v537, %v2921
    %v2923 = vpop.f32.mrf.mxu0
    %v2924 = vadd.f32 %v537, %v2923
    %2925 = vmatmul.bf16.gmra.mxu0 %v2016
    %v2926 = vpop.f32.mrf.mxu0
    %v2927 = vadd.f32 %v537, %v2926
    %v2928 = vpop.f32.mrf.mxu0
    %v2929 = vadd.f32 %v537, %v2928
    %2930 = vmatmul.bf16.gmra.mxu0 %v2019
    %v2931 = vpop.f32.mrf.mxu0
    %v2932 = vadd.f32 %v537, %v2931
    %v2933 = vpop.f32.mrf.mxu0
    %v2934 = vadd.f32 %v537, %v2933
    %2935 = vmatmul.bf16.gmra.mxu0 %v2022
    %v2936 = vpop.f32.mrf.mxu0
    %v2937 = vadd.f32 %v537, %v2936
    %v2938 = vpop.f32.mrf.mxu0
    %v2939 = vadd.f32 %v537, %v2938
    %2940 = vmatmul.bf16.gmra.mxu0 %v2025
    %v2941 = vpop.f32.mrf.mxu0
    %v2942 = vadd.f32 %v537, %v2941
    %v2943 = vpop.f32.mrf.mxu0
    %v2944 = vadd.f32 %v537, %v2943
    %2945 = vmatmul.bf16.gmra.mxu0 %v2028
    %v2946 = vpop.f32.mrf.mxu0
    %v2947 = vadd.f32 %v537, %v2946
    %v2948 = vpop.f32.mrf.mxu0
    %v2949 = vadd.f32 %v537, %v2948
    %2950 = vmatmul.bf16.gmra.mxu0 %v2031
    %v2951 = vpop.f32.mrf.mxu0
    %v2952 = vadd.f32 %v537, %v2951
    %v2953 = vpop.f32.mrf.mxu0
    %v2954 = vadd.f32 %v537, %v2953
    %2955 = vmatmul.bf16.gmra.mxu0 %v2034
    %v2956 = vpop.f32.mrf.mxu0
    %v2957 = vadd.f32 %v537, %v2956
    %v2958 = vpop.f32.mrf.mxu0
    %v2959 = vadd.f32 %v537, %v2958
    %2960 = vmatmul.bf16.gmra.mxu0 %v2037
    %v2961 = vpop.f32.mrf.mxu0
    %v2962 = vadd.f32 %v537, %v2961
    %v2963 = vpop.f32.mrf.mxu0
    %v2964 = vadd.f32 %v537, %v2963
    %2965 = vmatmul.bf16.gmra.mxu0 %v2040
    %v2966 = vpop.f32.mrf.mxu0
    %v2967 = vadd.f32 %v537, %v2966
    %v2968 = vpop.f32.mrf.mxu0
    %v2969 = vadd.f32 %v537, %v2968
    %2970 = vmatmul.bf16.gmra.mxu0 %v2043
    %v2971 = vpop.f32.mrf.mxu0
    %v2972 = vadd.f32 %v537, %v2971
    %v2973 = vpop.f32.mrf.mxu0
    %v2974 = vadd.f32 %v537, %v2973
    %2975 = vmatmul.bf16.gmra.mxu0 %v2046
    %v2976 = vpop.f32.mrf.mxu0
    %v2977 = vadd.f32 %v537, %v2976
    %v2978 = vpop.f32.mrf.mxu0
    %v2979 = vadd.f32 %v537, %v2978
    %2980 = vmatmul.bf16.gmra.mxu0 %v2049
    %v2981 = vpop.f32.mrf.mxu0
    %v2982 = vadd.f32 %v537, %v2981
    %v2983 = vpop.f32.mrf.mxu0
    %v2984 = vadd.f32 %v537, %v2983
    %2985 = vmatmul.bf16.gmra.mxu0 %v2052
    %v2986 = vpop.f32.mrf.mxu0
    %v2987 = vadd.f32 %v537, %v2986
    %v2988 = vpop.f32.mrf.mxu0
    %v2989 = vadd.f32 %v537, %v2988
    %2990 = vmatmul.bf16.gmra.mxu0 %v2055
    %v2991 = vpop.f32.mrf.mxu0
    %v2992 = vadd.f32 %v537, %v2991
    %v2993 = vpop.f32.mrf.mxu0
    %v2994 = vadd.f32 %v537, %v2993
    %2995 = vmatmul.bf16.gmra.mxu0 %v2058
    %v2996 = vpop.f32.mrf.mxu0
    %v2997 = vadd.f32 %v537, %v2996
    %v2998 = vpop.f32.mrf.mxu0
    %v2999 = vadd.f32 %v537, %v2998
    %3000 = vmatmul.bf16.gmra.mxu0 %v2061
    %v3001 = vpop.f32.mrf.mxu0
    %v3002 = vadd.f32 %v537, %v3001
    %v3003 = vpop.f32.mrf.mxu0
    %v3004 = vadd.f32 %v537, %v3003
    %3005 = vmatmul.bf16.gmra.mxu0 %v2064
    %v3006 = vpop.f32.mrf.mxu0
    %v3007 = vadd.f32 %v537, %v3006
    %v3008 = vpop.f32.mrf.mxu0
    %v3009 = vadd.f32 %v537, %v3008
    %3010 = vmatmul.bf16.gmra.mxu0 %v2067
    %v3011 = vpop.f32.mrf.mxu0
    %v3012 = vadd.f32 %v537, %v3011
    %v3013 = vpop.f32.mrf.mxu0
    %v3014 = vadd.f32 %v537, %v3013
    %3015 = vmatmul.bf16.gmra.mxu0 %v2070
    %v3016 = vpop.f32.mrf.mxu0
    %v3017 = vadd.f32 %v537, %v3016
    %v3018 = vpop.f32.mrf.mxu0
    %v3019 = vadd.f32 %v537, %v3018
    %3020 = vmatmul.bf16.gmra.mxu0 %v2073
    %v3021 = vpop.f32.mrf.mxu0
    %v3022 = vadd.f32 %v537, %v3021
    %v3023 = vpop.f32.mrf.mxu0
    %v3024 = vadd.f32 %v537, %v3023
    %3025 = vmatmul.bf16.gmra.mxu0 %v2076
    %v3026 = vpop.f32.mrf.mxu0
    %v3027 = vadd.f32 %v537, %v3026
    %v3028 = vpop.f32.mrf.mxu0
    %v3029 = vadd.f32 %v537, %v3028
    %3030 = vmatmul.bf16.gmra.mxu0 %v2079
    %v3031 = vpop.f32.mrf.mxu0
    %v3032 = vadd.f32 %v537, %v3031
    %v3033 = vpop.f32.mrf.mxu0
    %v3034 = vadd.f32 %v537, %v3033
    %3035 = vmatmul.bf16.gmra.mxu0 %v2082
    %v3036 = vpop.f32.mrf.mxu0
    %v3037 = vadd.f32 %v537, %v3036
    %v3038 = vpop.f32.mrf.mxu0
    %v3039 = vadd.f32 %v537, %v3038
    %3040 = vmatmul.bf16.gmra.mxu0 %v2085
    %v3041 = vpop.f32.mrf.mxu0
    %v3042 = vadd.f32 %v537, %v3041
    %v3043 = vpop.f32.mrf.mxu0
    %v3044 = vadd.f32 %v537, %v3043
    %3045 = vmatmul.bf16.gmra.mxu0 %v2088
    %v3046 = vpop.f32.mrf.mxu0
    %v3047 = vadd.f32 %v537, %v3046
    %v3048 = vpop.f32.mrf.mxu0
    %v3049 = vadd.f32 %v537, %v3048
    %3050 = vmatmul.bf16.gmra.mxu0 %v2091
    %v3051 = vpop.f32.mrf.mxu0
    %v3052 = vadd.f32 %v537, %v3051
    %v3053 = vpop.f32.mrf.mxu0
    %v3054 = vadd.f32 %v537, %v3053
    %3055 = vmatmul.bf16.gmra.mxu0 %v2094
    %v3056 = vpop.f32.mrf.mxu0
    %v3057 = vadd.f32 %v537, %v3056
    %v3058 = vpop.f32.mrf.mxu0
    %v3059 = vadd.f32 %v537, %v3058
    %3060 = vmatmul.bf16.gmra.mxu0 %v2097
    %v3061 = vpop.f32.mrf.mxu0
    %v3062 = vadd.f32 %v537, %v3061
    %v3063 = vpop.f32.mrf.mxu0
    %v3064 = vadd.f32 %v537, %v3063
    %3065 = vmatmul.bf16.gmra.mxu0 %v2100
    %v3066 = vpop.f32.mrf.mxu0
    %v3067 = vadd.f32 %v537, %v3066
    %v3068 = vpop.f32.mrf.mxu0
    %v3069 = vadd.f32 %v537, %v3068
    %3070 = vmatmul.bf16.gmra.mxu0 %v2103
    %v3071 = vpop.f32.mrf.mxu0
    %v3072 = vadd.f32 %v537, %v3071
    %v3073 = vpop.f32.mrf.mxu0
    %v3074 = vadd.f32 %v537, %v3073
    %3075 = vmatmul.bf16.gmra.mxu0 %v2106
    %v3076 = vpop.f32.mrf.mxu0
    %v3077 = vadd.f32 %v537, %v3076
    %v3078 = vpop.f32.mrf.mxu0
    %v3079 = vadd.f32 %v537, %v3078
    %3080 = vmatmul.bf16.gmra.mxu0 %v2109
    %v3081 = vpop.f32.mrf.mxu0
    %v3082 = vadd.f32 %v537, %v3081
    %v3083 = vpop.f32.mrf.mxu0
    %v3084 = vadd.f32 %v537, %v3083
    %3085 = vmatmul.bf16.gmra.mxu0 %v2112
    %v3086 = vpop.f32.mrf.mxu0
    %v3087 = vadd.f32 %v537, %v3086
    %v3088 = vpop.f32.mrf.mxu0
    %v3089 = vadd.f32 %v537, %v3088
    %3090 = vmatmul.bf16.gmra.mxu0 %v2115
    %v3091 = vpop.f32.mrf.mxu0
    %v3092 = vadd.f32 %v537, %v3091
    %v3093 = vpop.f32.mrf.mxu0
    %v3094 = vadd.f32 %v537, %v3093
    %3095 = vmatmul.bf16.gmra.mxu0 %v2118
    %v3096 = vpop.f32.mrf.mxu0
    %v3097 = vadd.f32 %v537, %v3096
    %v3098 = vpop.f32.mrf.mxu0
    %v3099 = vadd.f32 %v537, %v3098
    %3100 = vmatmul.bf16.gmra.mxu0 %v2121
    %v3101 = vpop.f32.mrf.mxu0
    %v3102 = vadd.f32 %v537, %v3101
    %v3103 = vpop.f32.mrf.mxu0
    %v3104 = vadd.f32 %v537, %v3103
    %3105 = vmatmul.bf16.gmra.mxu0 %v2124
    %v3106 = vpop.f32.mrf.mxu0
    %v3107 = vadd.f32 %v537, %v3106
    %v3108 = vpop.f32.mrf.mxu0
    %v3109 = vadd.f32 %v537, %v3108
    %3110 = vmatmul.bf16.gmra.mxu0 %v2127
    %v3111 = vpop.f32.mrf.mxu0
    %v3112 = vadd.f32 %v537, %v3111
    %v3113 = vpop.f32.mrf.mxu0
    %v3114 = vadd.f32 %v537, %v3113
    %3115 = vmatmul.bf16.gmra.mxu0 %v2130
    %v3116 = vpop.f32.mrf.mxu0
    %v3117 = vadd.f32 %v537, %v3116
    %v3118 = vpop.f32.mrf.mxu0
    %v3119 = vadd.f32 %v537, %v3118
    %3120 = vmatmul.bf16.gmra.mxu0 %v2133
    %v3121 = vpop.f32.mrf.mxu0
    %v3122 = vadd.f32 %v537, %v3121
    %v3123 = vpop.f32.mrf.mxu0
    %v3124 = vadd.f32 %v537, %v3123
    %3125 = vmatmul.bf16.gmra.mxu0 %v2136
    %v3126 = vpop.f32.mrf.mxu0
    %v3127 = vadd.f32 %v537, %v3126
    %v3128 = vpop.f32.mrf.mxu0
    %v3129 = vadd.f32 %v537, %v3128
    %3130 = vmatmul.bf16.gmra.mxu0 %v2139
    %v3131 = vpop.f32.mrf.mxu0
    %v3132 = vadd.f32 %v537, %v3131
    %v3133 = vpop.f32.mrf.mxu0
    %v3134 = vadd.f32 %v537, %v3133
    %3135 = vmatmul.bf16.gmra.mxu0 %v2142
    %v3136 = vpop.f32.mrf.mxu0
    %v3137 = vadd.f32 %v537, %v3136
    %v3138 = vpop.f32.mrf.mxu0
    %v3139 = vadd.f32 %v537, %v3138
    %3140 = vmatmul.bf16.gmra.mxu0 %v2145
    %v3141 = vpop.f32.mrf.mxu0
    %v3142 = vadd.f32 %v537, %v3141
    %v3143 = vpop.f32.mrf.mxu0
    %v3144 = vadd.f32 %v537, %v3143
    %3145 = vmatmul.bf16.gmra.mxu0 %v2148
    %v3146 = vpop.f32.mrf.mxu0
    %v3147 = vadd.f32 %v537, %v3146
    %v3148 = vpop.f32.mrf.mxu0
    %v3149 = vadd.f32 %v537, %v3148
    %3150 = vmatmul.bf16.gmra.mxu0 %v2151
    %v3151 = vpop.f32.mrf.mxu0
    %v3152 = vadd.f32 %v537, %v3151
    %v3153 = vpop.f32.mrf.mxu0
    %v3154 = vadd.f32 %v537, %v3153
    %3155 = vmatmul.bf16.gmra.mxu0 %v2154
    %v3156 = vpop.f32.mrf.mxu0
    %v3157 = vadd.f32 %v537, %v3156
    %v3158 = vpop.f32.mrf.mxu0
    %v3159 = vadd.f32 %v537, %v3158
    %3160 = vmatmul.bf16.gmra.mxu0 %v2157
    %v3161 = vpop.f32.mrf.mxu0
    %v3162 = vadd.f32 %v537, %v3161
    %v3163 = vpop.f32.mrf.mxu0
    %v3164 = vadd.f32 %v537, %v3163
    %3165 = vmatmul.bf16.gmra.mxu0 %v2160
    %v3166 = vpop.f32.mrf.mxu0
    %v3167 = vadd.f32 %v537, %v3166
    %v3168 = vpop.f32.mrf.mxu0
    %v3169 = vadd.f32 %v537, %v3168
    %3170 = vmatmul.bf16.gmra.mxu0 %v2163
    %v3171 = vpop.f32.mrf.mxu0
    %v3172 = vadd.f32 %v537, %v3171
    %v3173 = vpop.f32.mrf.mxu0
    %v3174 = vadd.f32 %v537, %v3173
    %3175 = vmatmul.bf16.gmra.mxu0 %v2166
    %v3176 = vpop.f32.mrf.mxu0
    %v3177 = vadd.f32 %v537, %v3176
    %v3178 = vpop.f32.mrf.mxu0
    %v3179 = vadd.f32 %v537, %v3178
    %3180 = vmatmul.bf16.gmra.mxu0 %v2169
    %v3181 = vpop.f32.mrf.mxu0
    %v3182 = vadd.f32 %v537, %v3181
    %v3183 = vpop.f32.mrf.mxu0
    %v3184 = vadd.f32 %v537, %v3183
    %3185 = vmatmul.bf16.gmra.mxu0 %v2172
    %v3186 = vpop.f32.mrf.mxu0
    %v3187 = vadd.f32 %v537, %v3186
    %v3188 = vpop.f32.mrf.mxu0
    %v3189 = vadd.f32 %v537, %v3188
    %3190 = vmatmul.bf16.gmra.mxu0 %v2175
    %v3191 = vpop.f32.mrf.mxu0
    %v3192 = vadd.f32 %v537, %v3191
    %v3193 = vpop.f32.mrf.mxu0
    %v3194 = vadd.f32 %v537, %v3193
    %3195 = vmatmul.bf16.gmra.mxu0 %v2178
    %v3196 = vpop.f32.mrf.mxu0
    %v3197 = vadd.f32 %v537, %v3196
    %v3198 = vpop.f32.mrf.mxu0
    %v3199 = vadd.f32 %v537, %v3198
    %3200 = vmatmul.bf16.gmra.mxu0 %v2181
    %v3201 = vpop.f32.mrf.mxu0
    %v3202 = vadd.f32 %v537, %v3201
    %v3203 = vpop.f32.mrf.mxu0
    %v3204 = vadd.f32 %v537, %v3203
    %3205 = vmatmul.bf16.gmra.mxu0 %v2184
    %v3206 = vpop.f32.mrf.mxu0
    %v3207 = vadd.f32 %v537, %v3206
    %v3208 = vpop.f32.mrf.mxu0
    %v3209 = vadd.f32 %v537, %v3208
    %3210 = vmatmul.bf16.gmra.mxu0 %v2187
    %v3211 = vpop.f32.mrf.mxu0
    %v3212 = vadd.f32 %v537, %v3211
    %v3213 = vpop.f32.mrf.mxu0
    %v3214 = vadd.f32 %v537, %v3213
    %3215 = vmatmul.bf16.gmra.mxu0 %v2190
    %v3216 = vpop.f32.mrf.mxu0
    %v3217 = vadd.f32 %v537, %v3216
    %v3218 = vpop.f32.mrf.mxu0
    %v3219 = vadd.f32 %v537, %v3218
    %3220 = vmatmul.bf16.gmra.mxu0 %v2193
    %v3221 = vpop.f32.mrf.mxu0
    %v3222 = vadd.f32 %v537, %v3221
    %v3223 = vpop.f32.mrf.mxu0
    %v3224 = vadd.f32 %v537, %v3223
    %3225 = vmatmul.bf16.gmra.mxu0 %v2196
    %v3226 = vpop.f32.mrf.mxu0
    %v3227 = vadd.f32 %v537, %v3226
    %v3228 = vpop.f32.mrf.mxu0
    %v3229 = vadd.f32 %v537, %v3228
    %3230 = vmatmul.bf16.gmra.mxu0 %v2199
    %v3231 = vpop.f32.mrf.mxu0
    %v3232 = vadd.f32 %v537, %v3231
    %v3233 = vpop.f32.mrf.mxu0
    %v3234 = vadd.f32 %v537, %v3233
    %3235 = vmatmul.bf16.gmra.mxu0 %v2202
    %v3236 = vpop.f32.mrf.mxu0
    %v3237 = vadd.f32 %v537, %v3236
    %v3238 = vpop.f32.mrf.mxu0
    %v3239 = vadd.f32 %v537, %v3238
    %3240 = vmatmul.bf16.gmra.mxu0 %v2205
    %v3241 = vpop.f32.mrf.mxu0
    %v3242 = vadd.f32 %v537, %v3241
    %v3243 = vpop.f32.mrf.mxu0
    %v3244 = vadd.f32 %v537, %v3243
    %3245 = vmatmul.bf16.gmra.mxu0 %v2208
    %v3246 = vpop.f32.mrf.mxu0
    %v3247 = vadd.f32 %v537, %v3246
    %v3248 = vpop.f32.mrf.mxu0
    %v3249 = vadd.f32 %v537, %v3248
    %3250 = vmatmul.bf16.gmra.mxu0 %v2211
    %v3251 = vpop.f32.mrf.mxu0
    %v3252 = vadd.f32 %v537, %v3251
    %v3253 = vpop.f32.mrf.mxu0
    %v3254 = vadd.f32 %v537, %v3253
    %3255 = vmatmul.bf16.gmra.mxu0 %v2214
    %v3256 = vpop.f32.mrf.mxu0
    %v3257 = vadd.f32 %v537, %v3256
    %v3258 = vpop.f32.mrf.mxu0
    %v3259 = vadd.f32 %v537, %v3258
    %3260 = vmatmul.bf16.gmra.mxu0 %v2217
    %v3261 = vpop.f32.mrf.mxu0
    %v3262 = vadd.f32 %v537, %v3261
    %v3263 = vpop.f32.mrf.mxu0
    %v3264 = vadd.f32 %v537, %v3263
    %3265 = vmatmul.bf16.gmra.mxu0 %v2220
    %v3266 = vpop.f32.mrf.mxu0
    %v3267 = vadd.f32 %v537, %v3266
    %v3268 = vpop.f32.mrf.mxu0
    %v3269 = vadd.f32 %v537, %v3268
    %3270 = vmatmul.bf16.gmra.mxu0 %v2223
    %v3271 = vpop.f32.mrf.mxu0
    %v3272 = vadd.f32 %v537, %v3271
    %v3273 = vpop.f32.mrf.mxu0
    %v3274 = vadd.f32 %v537, %v3273
    %3275 = vmatmul.bf16.gmra.mxu0 %v2226
    %v3276 = vpop.f32.mrf.mxu0
    %v3277 = vadd.f32 %v537, %v3276
    %v3278 = vpop.f32.mrf.mxu0
    %v3279 = vadd.f32 %v537, %v3278
    %3280 = vmatmul.bf16.gmra.mxu0 %v2229
    %v3281 = vpop.f32.mrf.mxu0
    %v3282 = vadd.f32 %v537, %v3281
    %v3283 = vpop.f32.mrf.mxu0
    %v3284 = vadd.f32 %v537, %v3283
    %3285 = vmatmul.bf16.gmra.mxu0 %v2232
    %v3286 = vpop.f32.mrf.mxu0
    %v3287 = vadd.f32 %v537, %v3286
    %v3288 = vpop.f32.mrf.mxu0
    %v3289 = vadd.f32 %v537, %v3288
    %3290 = vmatmul.bf16.gmra.mxu0 %v2235
    %v3291 = vpop.f32.mrf.mxu0
    %v3292 = vadd.f32 %v537, %v3291
    %v3293 = vpop.f32.mrf.mxu0
    %v3294 = vadd.f32 %v537, %v3293
    %3295 = vmatmul.bf16.gmra.mxu0 %v2238
    %v3296 = vpop.f32.mrf.mxu0
    %v3297 = vadd.f32 %v537, %v3296
    %v3298 = vpop.f32.mrf.mxu0
    %v3299 = vadd.f32 %v537, %v3298
    %3300 = vmatmul.bf16.gmra.mxu0 %v2241
    %v3301 = vpop.f32.mrf.mxu0
    %v3302 = vadd.f32 %v537, %v3301
    %v3303 = vpop.f32.mrf.mxu0
    %v3304 = vadd.f32 %v537, %v3303
    %3305 = vmatmul.bf16.gmra.mxu0 %v2244
    %v3306 = vpop.f32.mrf.mxu0
    %v3307 = vadd.f32 %v537, %v3306
    %v3308 = vpop.f32.mrf.mxu0
    %v3309 = vadd.f32 %v537, %v3308
    %3310 = vmatmul.bf16.gmra.mxu0 %v2247
    %v3311 = vpop.f32.mrf.mxu0
    %v3312 = vadd.f32 %v537, %v3311
    %v3313 = vpop.f32.mrf.mxu0
    %v3314 = vadd.f32 %v537, %v3313
    %3315 = vmatmul.bf16.gmra.mxu0 %v2250
    %v3316 = vpop.f32.mrf.mxu0
    %v3317 = vadd.f32 %v537, %v3316
    %v3318 = vpop.f32.mrf.mxu0
    %v3319 = vadd.f32 %v537, %v3318
    %3320 = vmatmul.bf16.gmra.mxu0 %v2253
    %v3321 = vpop.f32.mrf.mxu0
    %v3322 = vadd.f32 %v537, %v3321
    %v3323 = vpop.f32.mrf.mxu0
    %v3324 = vadd.f32 %v537, %v3323
    %3325 = vmatmul.bf16.gmra.mxu0 %v2256
    %v3326 = vpop.f32.mrf.mxu0
    %v3327 = vadd.f32 %v537, %v3326
    %v3328 = vpop.f32.mrf.mxu0
    %v3329 = vadd.f32 %v537, %v3328
    %3330 = vmatmul.bf16.gmra.mxu0 %v2259
    %v3331 = vpop.f32.mrf.mxu0
    %v3332 = vadd.f32 %v537, %v3331
    %v3333 = vpop.f32.mrf.mxu0
    %v3334 = vadd.f32 %v537, %v3333
    %3335 = vmatmul.bf16.gmra.mxu0 %v2262
    %v3336 = vpop.f32.mrf.mxu0
    %v3337 = vadd.f32 %v537, %v3336
    %v3338 = vpop.f32.mrf.mxu0
    %v3339 = vadd.f32 %v537, %v3338
    %3340 = vmatmul.bf16.gmra.mxu0 %v2265
    %v3341 = vpop.f32.mrf.mxu0
    %v3342 = vadd.f32 %v537, %v3341
    %v3343 = vpop.f32.mrf.mxu0
    %v3344 = vadd.f32 %v537, %v3343
    %3345 = vmatmul.bf16.gmra.mxu0 %v2268
    %v3346 = vpop.f32.mrf.mxu0
    %v3347 = vadd.f32 %v537, %v3346
    %v3348 = vpop.f32.mrf.mxu0
    %v3349 = vadd.f32 %v537, %v3348
    %3350 = vmatmul.bf16.gmra.mxu0 %v2271
    %v3351 = vpop.f32.mrf.mxu0
    %v3352 = vadd.f32 %v537, %v3351
    %v3353 = vpop.f32.mrf.mxu0
    %v3354 = vadd.f32 %v537, %v3353
    %3355 = vmatmul.bf16.gmra.mxu0 %v2274
    %v3356 = vpop.f32.mrf.mxu0
    %v3357 = vadd.f32 %v537, %v3356
    %v3358 = vpop.f32.mrf.mxu0
    %v3359 = vadd.f32 %v537, %v3358
    %3360 = vmatmul.bf16.gmra.mxu0 %v2277
    %v3361 = vpop.f32.mrf.mxu0
    %v3362 = vadd.f32 %v537, %v3361
    %v3363 = vpop.f32.mrf.mxu0
    %v3364 = vadd.f32 %v537, %v3363
    %3365 = vmatmul.bf16.gmra.mxu0 %v2280
    %v3366 = vpop.f32.mrf.mxu0
    %v3367 = vadd.f32 %v537, %v3366
    %v3368 = vpop.f32.mrf.mxu0
    %v3369 = vadd.f32 %v537, %v3368
    %3370 = vmatmul.bf16.gmra.mxu0 %v2283
    %v3371 = vpop.f32.mrf.mxu0
    %v3372 = vadd.f32 %v537, %v3371
    %v3373 = vpop.f32.mrf.mxu0
    %v3374 = vadd.f32 %v537, %v3373
    %3375 = vmatmul.bf16.gmra.mxu0 %v2286
    %v3376 = vpop.f32.mrf.mxu0
    %v3377 = vadd.f32 %v537, %v3376
    %v3378 = vpop.f32.mrf.mxu0
    %v3379 = vadd.f32 %v537, %v3378
    %3380 = vmatmul.bf16.gmra.mxu0 %v2289
    %v3381 = vpop.f32.mrf.mxu0
    %v3382 = vadd.f32 %v537, %v3381
    %v3383 = vpop.f32.mrf.mxu0
    %v3384 = vadd.f32 %v537, %v3383
    %3385 = vmatmul.bf16.gmra.mxu0 %v2292
    %v3386 = vpop.f32.mrf.mxu0
    %v3387 = vadd.f32 %v537, %v3386
    %v3388 = vpop.f32.mrf.mxu0
    %v3389 = vadd.f32 %v537, %v3388
    %3390 = vmatmul.bf16.gmra.mxu0 %v2295
    %v3391 = vpop.f32.mrf.mxu0
    %v3392 = vadd.f32 %v537, %v3391
    %v3393 = vpop.f32.mrf.mxu0
    %v3394 = vadd.f32 %v537, %v3393
    %3395 = vmatmul.bf16.gmra.mxu0 %v2298
    %v3396 = vpop.f32.mrf.mxu0
    %v3397 = vadd.f32 %v537, %v3396
    %v3398 = vpop.f32.mrf.mxu0
    %v3399 = vadd.f32 %v537, %v3398
    %3400 = vmatmul.bf16.gmra.mxu0 %v2301
    %v3401 = vpop.f32.mrf.mxu0
    %v3402 = vadd.f32 %v537, %v3401
    %v3403 = vpop.f32.mrf.mxu0
    %v3404 = vadd.f32 %v537, %v3403
    %3405 = vmatmul.bf16.gmra.mxu0 %v2304
    %v3406 = vpop.f32.mrf.mxu0
    %v3407 = vadd.f32 %v537, %v3406
    %v3408 = vpop.f32.mrf.mxu0
    %v3409 = vadd.f32 %v537, %v3408
    %3410 = vmatmul.bf16.gmra.mxu0 %v2307
    %v3411 = vpop.f32.mrf.mxu0
    %v3412 = vadd.f32 %v537, %v3411
    %v3413 = vpop.f32.mrf.mxu0
    %v3414 = vadd.f32 %v537, %v3413
    %3415 = vmatmul.bf16.gmra.mxu0 %v2310
    %v3416 = vpop.f32.mrf.mxu0
    %v3417 = vadd.f32 %v537, %v3416
    %v3418 = vpop.f32.mrf.mxu0
    %v3419 = vadd.f32 %v537, %v3418
    %3420 = vmatmul.bf16.gmra.mxu0 %v2313
    %v3421 = vpop.f32.mrf.mxu0
    %v3422 = vadd.f32 %v537, %v3421
    %v3423 = vpop.f32.mrf.mxu0
    %v3424 = vadd.f32 %v537, %v3423
    %3425 = vmatmul.bf16.gmra.mxu0 %v2316
    %v3426 = vpop.f32.mrf.mxu0
    %v3427 = vadd.f32 %v537, %v3426
    %v3428 = vpop.f32.mrf.mxu0
    %v3429 = vadd.f32 %v537, %v3428
    %3430 = vmatmul.bf16.gmra.mxu0 %v2319
    %v3431 = vpop.f32.mrf.mxu0
    %v3432 = vadd.f32 %v537, %v3431
    %v3433 = vpop.f32.mrf.mxu0
    %v3434 = vadd.f32 %v537, %v3433
    %3435 = vmatmul.bf16.gmra.mxu0 %v2322
    %v3436 = vpop.f32.mrf.mxu0
    %v3437 = vadd.f32 %v537, %v3436
    %v3438 = vpop.f32.mrf.mxu0
    %v3439 = vadd.f32 %v537, %v3438
    %3440 = vmatmul.bf16.gmra.mxu0 %v2325
    %v3441 = vpop.f32.mrf.mxu0
    %v3442 = vadd.f32 %v537, %v3441
    %v3443 = vpop.f32.mrf.mxu0
    %v3444 = vadd.f32 %v537, %v3443
    %3445 = vmatmul.bf16.gmra.mxu0 %v2328
    %v3446 = vpop.f32.mrf.mxu0
    %v3447 = vadd.f32 %v537, %v3446
    %v3448 = vpop.f32.mrf.mxu0
    %v3449 = vadd.f32 %v537, %v3448
    %3450 = vmatmul.bf16.gmra.mxu0 %v2331
    %v3451 = vpop.f32.mrf.mxu0
    %v3452 = vadd.f32 %v537, %v3451
    %v3453 = vpop.f32.mrf.mxu0
    %v3454 = vadd.f32 %v537, %v3453
    %3455 = vmatmul.bf16.gmra.mxu0 %v2334
    %v3456 = vpop.f32.mrf.mxu0
    %v3457 = vadd.f32 %v537, %v3456
    %v3458 = vpop.f32.mrf.mxu0
    %v3459 = vadd.f32 %v537, %v3458
    %3460 = vmatmul.bf16.gmra.mxu0 %v2337
    %v3461 = vpop.f32.mrf.mxu0
    %v3462 = vadd.f32 %v537, %v3461
    %v3463 = vpop.f32.mrf.mxu0
    %v3464 = vadd.f32 %v537, %v3463
    %3465 = vmatmul.bf16.gmra.mxu0 %v2340
    %v3466 = vpop.f32.mrf.mxu0
    %v3467 = vadd.f32 %v537, %v3466
    %v3468 = vpop.f32.mrf.mxu0
    %v3469 = vadd.f32 %v537, %v3468
    %3470 = vmatmul.bf16.gmra.mxu0 %v2343
    %v3471 = vpop.f32.mrf.mxu0
    %v3472 = vadd.f32 %v537, %v3471
    %v3473 = vpop.f32.mrf.mxu0
    %v3474 = vadd.f32 %v537, %v3473
    %3475 = vmatmul.bf16.gmra.mxu0 %v2346
    %v3476 = vpop.f32.mrf.mxu0
    %v3477 = vadd.f32 %v537, %v3476
    %v3478 = vpop.f32.mrf.mxu0
    %v3479 = vadd.f32 %v537, %v3478
    %3480 = vmatmul.bf16.gmra.mxu0 %v2349
    %v3481 = vpop.f32.mrf.mxu0
    %v3482 = vadd.f32 %v537, %v3481
    %v3483 = vpop.f32.mrf.mxu0
    %v3484 = vadd.f32 %v537, %v3483
    %3485 = vmatmul.bf16.gmra.mxu0 %v2352
    %v3486 = vpop.f32.mrf.mxu0
    %v3487 = vadd.f32 %v537, %v3486
    %v3488 = vpop.f32.mrf.mxu0
    %v3489 = vadd.f32 %v537, %v3488
    %3490 = vmatmul.bf16.gmra.mxu0 %v2355
    %v3491 = vpop.f32.mrf.mxu0
    %v3492 = vadd.f32 %v537, %v3491
    %v3493 = vpop.f32.mrf.mxu0
    %v3494 = vadd.f32 %v537, %v3493
    %3495 = vmatmul.bf16.gmra.mxu0 %v2358
    %v3496 = vpop.f32.mrf.mxu0
    %v3497 = vadd.f32 %v537, %v3496
    %v3498 = vpop.f32.mrf.mxu0
    %v3499 = vadd.f32 %v537, %v3498
    %3500 = vmatmul.bf16.gmra.mxu0 %v2361
    %v3501 = vpop.f32.mrf.mxu0
    %v3502 = vadd.f32 %v537, %v3501
    %v3503 = vpop.f32.mrf.mxu0
    %v3504 = vadd.f32 %v537, %v3503
    %3505 = vmatmul.bf16.gmra.mxu0 %v2364
    %v3506 = vpop.f32.mrf.mxu0
    %v3507 = vadd.f32 %v537, %v3506
    %v3508 = vpop.f32.mrf.mxu0
    %v3509 = vadd.f32 %v537, %v3508
    %3510 = vmatmul.bf16.gmra.mxu0 %v2367
    %v3511 = vpop.f32.mrf.mxu0
    %v3512 = vadd.f32 %v537, %v3511
    %v3513 = vpop.f32.mrf.mxu0
    %v3514 = vadd.f32 %v537, %v3513
    %3515 = vmatmul.bf16.gmra.mxu0 %v2370
    %v3516 = vpop.f32.mrf.mxu0
    %v3517 = vadd.f32 %v537, %v3516
    %v3518 = vpop.f32.mrf.mxu0
    %v3519 = vadd.f32 %v537, %v3518
    %3520 = vmatmul.bf16.gmra.mxu0 %v2373
    %v3521 = vpop.f32.mrf.mxu0
    %v3522 = vadd.f32 %v537, %v3521
    %v3523 = vpop.f32.mrf.mxu0
    %v3524 = vadd.f32 %v537, %v3523
    %3525 = vmatmul.bf16.gmra.mxu0 %v2376
    %v3526 = vpop.f32.mrf.mxu0
    %v3527 = vadd.f32 %v537, %v3526
    %v3528 = vpop.f32.mrf.mxu0
    %v3529 = vadd.f32 %v537, %v3528
    %3530 = vmatmul.bf16.gmra.mxu0 %v2379
    %v3531 = vpop.f32.mrf.mxu0
    %v3532 = vadd.f32 %v537, %v3531
    %v3533 = vpop.f32.mrf.mxu0
    %v3534 = vadd.f32 %v537, %v3533
    %3535 = vmatmul.bf16.gmra.mxu0 %v2382
    %v3536 = vpop.f32.mrf.mxu0
    %v3537 = vadd.f32 %v537, %v3536
    %v3538 = vpop.f32.mrf.mxu0
    %v3539 = vadd.f32 %v537, %v3538
    %3540 = vmatmul.bf16.gmra.mxu0 %v2385
    %v3541 = vpop.f32.mrf.mxu0
    %v3542 = vadd.f32 %v537, %v3541
    %v3543 = vpop.f32.mrf.mxu0
    %v3544 = vadd.f32 %v537, %v3543
    %3545 = vmatmul.bf16.gmra.mxu0 %v2388
    %v3546 = vpop.f32.mrf.mxu0
    %v3547 = vadd.f32 %v537, %v3546
    %v3548 = vpop.f32.mrf.mxu0
    %v3549 = vadd.f32 %v537, %v3548
    %3550 = vmatmul.bf16.gmra.mxu0 %v2391
    %v3551 = vpop.f32.mrf.mxu0
    %v3552 = vadd.f32 %v537, %v3551
    %v3553 = vpop.f32.mrf.mxu0
    %v3554 = vadd.f32 %v537, %v3553
    %3555 = vmatmul.bf16.gmra.mxu0 %v2394
    %v3556 = vpop.f32.mrf.mxu0
    %v3557 = vadd.f32 %v537, %v3556
    %v3558 = vpop.f32.mrf.mxu0
    %v3559 = vadd.f32 %v537, %v3558
    %3560 = vmatmul.bf16.gmra.mxu0 %v2397
    %v3561 = vpop.f32.mrf.mxu0
    %v3562 = vadd.f32 %v537, %v3561
    %v3563 = vpop.f32.mrf.mxu0
    %v3564 = vadd.f32 %v537, %v3563
    %3565 = vmatmul.bf16.gmra.mxu0 %v2400
    %v3566 = vpop.f32.mrf.mxu0
    %v3567 = vadd.f32 %v537, %v3566
    %v3568 = vpop.f32.mrf.mxu0
    %v3569 = vadd.f32 %v537, %v3568
    %3570 = vmatmul.bf16.gmra.mxu0 %v2403
    %v3571 = vpop.f32.mrf.mxu0
    %v3572 = vadd.f32 %v537, %v3571
    %v3573 = vpop.f32.mrf.mxu0
    %v3574 = vadd.f32 %v537, %v3573
    %3575 = vmatmul.bf16.gmra.mxu0 %v2406
    %v3576 = vpop.f32.mrf.mxu0
    %v3577 = vadd.f32 %v537, %v3576
    %v3578 = vpop.f32.mrf.mxu0
    %v3579 = vadd.f32 %v537, %v3578
    %3580 = vmatmul.bf16.gmra.mxu0 %v2409
    %v3581 = vpop.f32.mrf.mxu0
    %v3582 = vadd.f32 %v537, %v3581
    %v3583 = vpop.f32.mrf.mxu0
    %v3584 = vadd.f32 %v537, %v3583
    %3585 = vmatmul.bf16.gmra.mxu0 %v2412
    %v3586 = vpop.f32.mrf.mxu0
    %v3587 = vadd.f32 %v537, %v3586
    %v3588 = vpop.f32.mrf.mxu0
    %v3589 = vadd.f32 %v537, %v3588
    %3590 = vmatmul.bf16.gmra.mxu0 %v2415
    %v3591 = vpop.f32.mrf.mxu0
    %v3592 = vadd.f32 %v537, %v3591
    %v3593 = vpop.f32.mrf.mxu0
    %v3594 = vadd.f32 %v537, %v3593
    %3595 = vmatmul.bf16.gmra.mxu0 %v2418
    %v3596 = vpop.f32.mrf.mxu0
    %v3597 = vadd.f32 %v537, %v3596
    %v3598 = vpop.f32.mrf.mxu0
    %v3599 = vadd.f32 %v537, %v3598
    %3600 = vmatmul.bf16.gmra.mxu0 %v2421
    %v3601 = vpop.f32.mrf.mxu0
    %v3602 = vadd.f32 %v537, %v3601
    %v3603 = vpop.f32.mrf.mxu0
    %v3604 = vadd.f32 %v537, %v3603
    %3605 = vmatmul.bf16.gmra.mxu0 %v2424
    %v3606 = vpop.f32.mrf.mxu0
    %v3607 = vadd.f32 %v537, %v3606
    %v3608 = vpop.f32.mrf.mxu0
    %v3609 = vadd.f32 %v537, %v3608
    %3610 = vmatmul.bf16.gmra.mxu0 %v2427
    %v3611 = vpop.f32.mrf.mxu0
    %v3612 = vadd.f32 %v537, %v3611
    %v3613 = vpop.f32.mrf.mxu0
    %v3614 = vadd.f32 %v537, %v3613
    %3615 = vmatmul.bf16.gmra.mxu0 %v2430
    %v3616 = vpop.f32.mrf.mxu0
    %v3617 = vadd.f32 %v537, %v3616
    %v3618 = vpop.f32.mrf.mxu0
    %v3619 = vadd.f32 %v537, %v3618
    %3620 = vmatmul.bf16.gmra.mxu0 %v2433
    %v3621 = vpop.f32.mrf.mxu0
    %v3622 = vadd.f32 %v537, %v3621
    %v3623 = vpop.f32.mrf.mxu0
    %v3624 = vadd.f32 %v537, %v3623
    %3625 = vmatmul.bf16.gmra.mxu0 %v2436
    %v3626 = vpop.f32.mrf.mxu0
    %v3627 = vadd.f32 %v537, %v3626
    %v3628 = vpop.f32.mrf.mxu0
    %v3629 = vadd.f32 %v537, %v3628
    %3630 = vmatmul.bf16.gmra.mxu0 %v2439
    %v3631 = vpop.f32.mrf.mxu0
    %v3632 = vadd.f32 %v537, %v3631
    %v3633 = vpop.f32.mrf.mxu0
    %v3634 = vadd.f32 %v537, %v3633
    %3635 = vmatmul.bf16.gmra.mxu0 %v2442
    %v3636 = vpop.f32.mrf.mxu0
    %v3637 = vadd.f32 %v537, %v3636
    %v3638 = vpop.f32.mrf.mxu0
    %v3639 = vadd.f32 %v537, %v3638
    %3640 = vmatmul.bf16.gmra.mxu0 %v2445
    %v3641 = vpop.f32.mrf.mxu0
    %v3642 = vadd.f32 %v537, %v3641
    %v3643 = vpop.f32.mrf.mxu0
    %v3644 = vadd.f32 %v537, %v3643
    %3645 = vmatmul.bf16.gmra.mxu0 %v2448
    %v3646 = vpop.f32.mrf.mxu0
    %v3647 = vadd.f32 %v537, %v3646
    %v3648 = vpop.f32.mrf.mxu0
    %v3649 = vadd.f32 %v537, %v3648
    %3650 = vmatmul.bf16.gmra.mxu0 %v2451
    %v3651 = vpop.f32.mrf.mxu0
    %v3652 = vadd.f32 %v537, %v3651
    %v3653 = vpop.f32.mrf.mxu0
    %v3654 = vadd.f32 %v537, %v3653
    %3655 = vmatmul.bf16.gmra.mxu0 %v2454
    %v3656 = vpop.f32.mrf.mxu0
    %v3657 = vadd.f32 %v537, %v3656
    %v3658 = vpop.f32.mrf.mxu0
    %v3659 = vadd.f32 %v537, %v3658
    %3660 = vmatmul.bf16.gmra.mxu0 %v2457
    %v3661 = vpop.f32.mrf.mxu0
    %v3662 = vadd.f32 %v537, %v3661
    %v3663 = vpop.f32.mrf.mxu0
    %v3664 = vadd.f32 %v537, %v3663
    %3665 = vmatmul.bf16.gmra.mxu0 %v2460
    %v3666 = vpop.f32.mrf.mxu0
    %v3667 = vadd.f32 %v537, %v3666
    %v3668 = vpop.f32.mrf.mxu0
    %v3669 = vadd.f32 %v537, %v3668
    %3670 = vmatmul.bf16.gmra.mxu0 %v2463
    %v3671 = vpop.f32.mrf.mxu0
    %v3672 = vadd.f32 %v537, %v3671
    %v3673 = vpop.f32.mrf.mxu0
    %v3674 = vadd.f32 %v537, %v3673
    %3675 = vmatmul.bf16.gmra.mxu0 %v2466
    %v3676 = vpop.f32.mrf.mxu0
    %v3677 = vadd.f32 %v537, %v3676
    %v3678 = vpop.f32.mrf.mxu0
    %v3679 = vadd.f32 %v537, %v3678
    %3680 = vmatmul.bf16.gmra.mxu0 %v2469
    %v3681 = vpop.f32.mrf.mxu0
    %v3682 = vadd.f32 %v537, %v3681
    %v3683 = vpop.f32.mrf.mxu0
    %v3684 = vadd.f32 %v537, %v3683
    %3685 = vmatmul.bf16.gmra.mxu0 %v2472
    %v3686 = vpop.f32.mrf.mxu0
    %v3687 = vadd.f32 %v537, %v3686
    %v3688 = vpop.f32.mrf.mxu0
    %v3689 = vadd.f32 %v537, %v3688
    %3690 = vmatmul.bf16.gmra.mxu0 %v2475
    %v3691 = vpop.f32.mrf.mxu0
    %v3692 = vadd.f32 %v537, %v3691
    %v3693 = vpop.f32.mrf.mxu0
    %v3694 = vadd.f32 %v537, %v3693
    %3695 = vmatmul.bf16.gmra.mxu0 %v2478
    %v3696 = vpop.f32.mrf.mxu0
    %v3697 = vadd.f32 %v537, %v3696
    %v3698 = vpop.f32.mrf.mxu0
    %v3699 = vadd.f32 %v537, %v3698
    %3700 = vmatmul.bf16.gmra.mxu0 %v2481
    %v3701 = vpop.f32.mrf.mxu0
    %v3702 = vadd.f32 %v537, %v3701
    %v3703 = vpop.f32.mrf.mxu0
    %v3704 = vadd.f32 %v537, %v3703
    %3705 = vmatmul.bf16.gmra.mxu0 %v2484
    %v3706 = vpop.f32.mrf.mxu0
    %v3707 = vadd.f32 %v537, %v3706
    %v3708 = vpop.f32.mrf.mxu0
    %v3709 = vadd.f32 %v537, %v3708
    %3710 = vmatmul.bf16.gmra.mxu0 %v2487
    %v3711 = vpop.f32.mrf.mxu0
    %v3712 = vadd.f32 %v537, %v3711
    %v3713 = vpop.f32.mrf.mxu0
    %v3714 = vadd.f32 %v537, %v3713
    %3715 = vmatmul.bf16.gmra.mxu0 %v2490
    %v3716 = vpop.f32.mrf.mxu0
    %v3717 = vadd.f32 %v537, %v3716
    %v3718 = vpop.f32.mrf.mxu0
    %v3719 = vadd.f32 %v537, %v3718
    %3720 = vmatmul.bf16.gmra.mxu0 %v2493
    %v3721 = vpop.f32.mrf.mxu0
    %v3722 = vadd.f32 %v537, %v3721
    %v3723 = vpop.f32.mrf.mxu0
    %v3724 = vadd.f32 %v537, %v3723
    %3725 = vmatmul.bf16.gmra.mxu0 %v2496
    %v3726 = vpop.f32.mrf.mxu0
    %v3727 = vadd.f32 %v537, %v3726
    %v3728 = vpop.f32.mrf.mxu0
    %v3729 = vadd.f32 %v537, %v3728
    %3730 = vmatmul.bf16.gmra.mxu0 %v2499
    %v3731 = vpop.f32.mrf.mxu0
    %v3732 = vadd.f32 %v537, %v3731
    %v3733 = vpop.f32.mrf.mxu0
    %v3734 = vadd.f32 %v537, %v3733
    %3735 = vmatmul.bf16.gmra.mxu0 %v2502
    %v3736 = vpop.f32.mrf.mxu0
    %v3737 = vadd.f32 %v537, %v3736
    %v3738 = vpop.f32.mrf.mxu0
    %v3739 = vadd.f32 %v537, %v3738
    %3740 = vmatmul.bf16.gmra.mxu0 %v2505
    %v3741 = vpop.f32.mrf.mxu0
    %v3742 = vadd.f32 %v537, %v3741
    %v3743 = vpop.f32.mrf.mxu0
    %v3744 = vadd.f32 %v537, %v3743
    %3745 = vmatmul.bf16.gmra.mxu0 %v2508
    %v3746 = vpop.f32.mrf.mxu0
    %v3747 = vadd.f32 %v537, %v3746
    %v3748 = vpop.f32.mrf.mxu0
    %v3749 = vadd.f32 %v537, %v3748
    %3750 = vmatmul.bf16.gmra.mxu0 %v2511
    %v3751 = vpop.f32.mrf.mxu0
    %v3752 = vadd.f32 %v537, %v3751
    %v3753 = vpop.f32.mrf.mxu0
    %v3754 = vadd.f32 %v537, %v3753
    %3755 = vmatmul.bf16.gmra.mxu0 %v2514
    %v3756 = vpop.f32.mrf.mxu0
    %v3757 = vadd.f32 %v537, %v3756
    %v3758 = vpop.f32.mrf.mxu0
    %v3759 = vadd.f32 %v537, %v3758
    %3760 = vmatmul.bf16.gmra.mxu0 %v2517
    %v3761 = vpop.f32.mrf.mxu0
    %v3762 = vadd.f32 %v537, %v3761
    %v3763 = vpop.f32.mrf.mxu0
    %v3764 = vadd.f32 %v537, %v3763
    %3765 = vmatmul.bf16.gmra.mxu0 %v2520
    %v3766 = vpop.f32.mrf.mxu0
    %v3767 = vadd.f32 %v537, %v3766
    %v3768 = vpop.f32.mrf.mxu0
    %v3769 = vadd.f32 %v537, %v3768
    %3770 = vmatmul.bf16.gmra.mxu0 %v2523
    %v3771 = vpop.f32.mrf.mxu0
    %v3772 = vadd.f32 %v537, %v3771
    %v3773 = vpop.f32.mrf.mxu0
    %v3774 = vadd.f32 %v537, %v3773
    %3775 = vmatmul.bf16.gmra.mxu0 %v2526
    %v3776 = vpop.f32.mrf.mxu0
    %v3777 = vadd.f32 %v537, %v3776
    %v3778 = vpop.f32.mrf.mxu0
    %v3779 = vadd.f32 %v537, %v3778
    %3780 = vmatmul.bf16.gmra.mxu0 %v2529
    %v3781 = vpop.f32.mrf.mxu0
    %v3782 = vadd.f32 %v537, %v3781
    %v3783 = vpop.f32.mrf.mxu0
    %v3784 = vadd.f32 %v537, %v3783
    %3785 = vmatmul.bf16.gmra.mxu0 %v2532
    %v3786 = vpop.f32.mrf.mxu0
    %v3787 = vadd.f32 %v537, %v3786
    %v3788 = vpop.f32.mrf.mxu0
    %v3789 = vadd.f32 %v537, %v3788
    %3790 = vmatmul.bf16.gmra.mxu0 %v2535
    %v3791 = vpop.f32.mrf.mxu0
    %v3792 = vadd.f32 %v537, %v3791
    %v3793 = vpop.f32.mrf.mxu0
    %v3794 = vadd.f32 %v537, %v3793
    %3795 = vmatmul.bf16.gmra.mxu0 %v2538
    %v3796 = vpop.f32.mrf.mxu0
    %v3797 = vadd.f32 %v537, %v3796
    %v3798 = vpop.f32.mrf.mxu0
    %v3799 = vadd.f32 %v537, %v3798
    %3800 = vmatmul.bf16.gmra.mxu0 %v2541
    %v3801 = vpop.f32.mrf.mxu0
    %v3802 = vadd.f32 %v537, %v3801
    %v3803 = vpop.f32.mrf.mxu0
    %v3804 = vadd.f32 %v537, %v3803
    %3805 = vmatmul.bf16.gmra.mxu0 %v2544
    %v3806 = vpop.f32.mrf.mxu0
    %v3807 = vadd.f32 %v537, %v3806
    %v3808 = vpop.f32.mrf.mxu0
    %v3809 = vadd.f32 %v537, %v3808
    %3810 = vmatmul.bf16.gmra.mxu0 %v2547
    %v3811 = vpop.f32.mrf.mxu0
    %v3812 = vadd.f32 %v537, %v3811
    %v3813 = vpop.f32.mrf.mxu0
    %v3814 = vadd.f32 %v537, %v3813
    %3815 = vmatmul.bf16.gmra.mxu0 %v2550
    %v3816 = vpop.f32.mrf.mxu0
    %v3817 = vadd.f32 %v537, %v3816
    %v3818 = vpop.f32.mrf.mxu0
    %v3819 = vadd.f32 %v537, %v3818
    %3820 = vmatmul.bf16.gmra.mxu0 %v2553
    %v3821 = vpop.f32.mrf.mxu0
    %v3822 = vadd.f32 %v537, %v3821
    %v3823 = vpop.f32.mrf.mxu0
    %v3824 = vadd.f32 %v537, %v3823
    %3825 = vmatmul.bf16.gmra.mxu0 %v2556
    %v3826 = vpop.f32.mrf.mxu0
    %v3827 = vadd.f32 %v537, %v3826
    %v3828 = vpop.f32.mrf.mxu0
    %v3829 = vadd.f32 %v537, %v3828
    %3830 = vmatmul.bf16.gmra.mxu0 %v2559
    %v3831 = vpop.f32.mrf.mxu0
    %v3832 = vadd.f32 %v537, %v3831
    %v3833 = vpop.f32.mrf.mxu0
    %v3834 = vadd.f32 %v537, %v3833
    %3835 = vmatmul.bf16.gmra.mxu0 %v2562
    %v3836 = vpop.f32.mrf.mxu0
    %v3837 = vadd.f32 %v537, %v3836
    %v3838 = vpop.f32.mrf.mxu0
    %v3839 = vadd.f32 %v537, %v3838
    %3840 = vmatmul.bf16.gmra.mxu0 %v2565
    %v3841 = vpop.f32.mrf.mxu0
    %v3842 = vadd.f32 %v537, %v3841
    %v3843 = vpop.f32.mrf.mxu0
    %v3844 = vadd.f32 %v537, %v3843
    %3845 = vmatmul.bf16.gmra.mxu0 %v2568
    %v3846 = vpop.f32.mrf.mxu0
    %v3847 = vadd.f32 %v537, %v3846
    %v3848 = vpop.f32.mrf.mxu0
    %v3849 = vadd.f32 %v537, %v3848
    %3850 = vmatmul.bf16.gmra.mxu0 %v2571
    %v3851 = vpop.f32.mrf.mxu0
    %v3852 = vadd.f32 %v537, %v3851
    %v3853 = vpop.f32.mrf.mxu0
    %v3854 = vadd.f32 %v537, %v3853
    %3855 = vmatmul.bf16.gmra.mxu0 %v2574
    %v3856 = vpop.f32.mrf.mxu0
    %v3857 = vadd.f32 %v537, %v3856
    %v3858 = vpop.f32.mrf.mxu0
    %v3859 = vadd.f32 %v537, %v3858
    %3860 = vmatmul.bf16.gmra.mxu0 %v2577
    %v3861 = vpop.f32.mrf.mxu0
    %v3862 = vadd.f32 %v537, %v3861
    %v3863 = vpop.f32.mrf.mxu0
    %v3864 = vadd.f32 %v537, %v3863
    %3865 = vmatmul.bf16.gmra.mxu0 %v2580
    %v3866 = vpop.f32.mrf.mxu0
    %v3867 = vadd.f32 %v537, %v3866
    %v3868 = vpop.f32.mrf.mxu0
    %v3869 = vadd.f32 %v537, %v3868
    %3870 = vmatmul.bf16.gmra.mxu0 %v2583
    %v3871 = vpop.f32.mrf.mxu0
    %v3872 = vadd.f32 %v537, %v3871
    %v3873 = vpop.f32.mrf.mxu0
    %v3874 = vadd.f32 %v537, %v3873
    %3875 = vmatmul.bf16.gmra.mxu0 %v2586
    %v3876 = vpop.f32.mrf.mxu0
    %v3877 = vadd.f32 %v537, %v3876
    %v3878 = vpop.f32.mrf.mxu0
    %v3879 = vadd.f32 %v537, %v3878
    %3880 = vdwg.mxu0
    %v3881 = vmax.f32 %v2602, 0.0
    %v3882 = vmax.f32 %v2604, 0.0
    %v3883 = vmax.f32 %v2607, 0.0
    %v3884 = vmax.f32 %v2609, 0.0
    %v3885 = vmax.f32 %v2612, 0.0
    %v3886 = vmax.f32 %v2614, 0.0
    %v3887 = vmax.f32 %v2617, 0.0
    %v3888 = vmax.f32 %v2619, 0.0
    %v3889 = vmax.f32 %v2622, 0.0
    %v3890 = vmax.f32 %v2624, 0.0
    %v3891 = vmax.f32 %v2627, 0.0
    %v3892 = vmax.f32 %v2629, 0.0
    %v3893 = vmax.f32 %v2632, 0.0
    %v3894 = vmax.f32 %v2634, 0.0
    %v3895 = vmax.f32 %v2637, 0.0
    %v3896 = vmax.f32 %v2639, 0.0
    %v3897 = vmax.f32 %v2642, 0.0
    %v3898 = vmax.f32 %v2644, 0.0
    %v3899 = vmax.f32 %v2647, 0.0
    %v3900 = vmax.f32 %v2649, 0.0
    %v3901 = vmax.f32 %v2652, 0.0
    %v3902 = vmax.f32 %v2654, 0.0
    %v3903 = vmax.f32 %v2657, 0.0
    %v3904 = vmax.f32 %v2659, 0.0
    %v3905 = vmax.f32 %v2662, 0.0
    %v3906 = vmax.f32 %v2664, 0.0
    %v3907 = vmax.f32 %v2667, 0.0
    %v3908 = vmax.f32 %v2669, 0.0
    %v3909 = vmax.f32 %v2672, 0.0
    %v3910 = vmax.f32 %v2674, 0.0
    %v3911 = vmax.f32 %v2677, 0.0
    %v3912 = vmax.f32 %v2679, 0.0
    %v3913 = vmax.f32 %v2682, 0.0
    %v3914 = vmax.f32 %v2684, 0.0
    %v3915 = vmax.f32 %v2687, 0.0
    %v3916 = vmax.f32 %v2689, 0.0
    %v3917 = vmax.f32 %v2692, 0.0
    %v3918 = vmax.f32 %v2694, 0.0
    %v3919 = vmax.f32 %v2697, 0.0
    %v3920 = vmax.f32 %v2699, 0.0
    %v3921 = vmax.f32 %v2702, 0.0
    %v3922 = vmax.f32 %v2704, 0.0
    %v3923 = vmax.f32 %v2707, 0.0
    %v3924 = vmax.f32 %v2709, 0.0
    %v3925 = vmax.f32 %v2712, 0.0
    %v3926 = vmax.f32 %v2714, 0.0
    %v3927 = vmax.f32 %v2717, 0.0
    %v3928 = vmax.f32 %v2719, 0.0
    %v3929 = vmax.f32 %v2722, 0.0
    %v3930 = vmax.f32 %v2724, 0.0
    %v3931 = vmax.f32 %v2727, 0.0
    %v3932 = vmax.f32 %v2729, 0.0
    %v3933 = vmax.f32 %v2732, 0.0
    %v3934 = vmax.f32 %v2734, 0.0
    %v3935 = vmax.f32 %v2737, 0.0
    %v3936 = vmax.f32 %v2739, 0.0
    %v3937 = vmax.f32 %v2742, 0.0
    %v3938 = vmax.f32 %v2744, 0.0
    %v3939 = vmax.f32 %v2747, 0.0
    %v3940 = vmax.f32 %v2749, 0.0
    %v3941 = vmax.f32 %v2752, 0.0
    %v3942 = vmax.f32 %v2754, 0.0
    %v3943 = vmax.f32 %v2757, 0.0
    %v3944 = vmax.f32 %v2759, 0.0
    %v3945 = vmax.f32 %v2762, 0.0
    %v3946 = vmax.f32 %v2764, 0.0
    %v3947 = vmax.f32 %v2767, 0.0
    %v3948 = vmax.f32 %v2769, 0.0
    %v3949 = vmax.f32 %v2772, 0.0
    %v3950 = vmax.f32 %v2774, 0.0
    %v3951 = vmax.f32 %v2777, 0.0
    %v3952 = vmax.f32 %v2779, 0.0
    %v3953 = vmax.f32 %v2782, 0.0
    %v3954 = vmax.f32 %v2784, 0.0
    %v3955 = vmax.f32 %v2787, 0.0
    %v3956 = vmax.f32 %v2789, 0.0
    %v3957 = vmax.f32 %v2792, 0.0
    %v3958 = vmax.f32 %v2794, 0.0
    %v3959 = vmax.f32 %v2797, 0.0
    %v3960 = vmax.f32 %v2799, 0.0
    %v3961 = vmax.f32 %v2802, 0.0
    %v3962 = vmax.f32 %v2804, 0.0
    %v3963 = vmax.f32 %v2807, 0.0
    %v3964 = vmax.f32 %v2809, 0.0
    %v3965 = vmax.f32 %v2812, 0.0
    %v3966 = vmax.f32 %v2814, 0.0
    %v3967 = vmax.f32 %v2817, 0.0
    %v3968 = vmax.f32 %v2819, 0.0
    %v3969 = vmax.f32 %v2822, 0.0
    %v3970 = vmax.f32 %v2824, 0.0
    %v3971 = vmax.f32 %v2827, 0.0
    %v3972 = vmax.f32 %v2829, 0.0
    %v3973 = vmax.f32 %v2832, 0.0
    %v3974 = vmax.f32 %v2834, 0.0
    %v3975 = vmax.f32 %v2837, 0.0
    %v3976 = vmax.f32 %v2839, 0.0
    %v3977 = vmax.f32 %v2842, 0.0
    %v3978 = vmax.f32 %v2844, 0.0
    %v3979 = vmax.f32 %v2847, 0.0
    %v3980 = vmax.f32 %v2849, 0.0
    %v3981 = vmax.f32 %v2852, 0.0
    %v3982 = vmax.f32 %v2854, 0.0
    %v3983 = vmax.f32 %v2857, 0.0
    %v3984 = vmax.f32 %v2859, 0.0
    %v3985 = vmax.f32 %v2862, 0.0
    %v3986 = vmax.f32 %v2864, 0.0
    %v3987 = vmax.f32 %v2867, 0.0
    %v3988 = vmax.f32 %v2869, 0.0
    %v3989 = vmax.f32 %v2872, 0.0
    %v3990 = vmax.f32 %v2874, 0.0
    %v3991 = vmax.f32 %v2877, 0.0
    %v3992 = vmax.f32 %v2879, 0.0
    %v3993 = vmax.f32 %v2882, 0.0
    %v3994 = vmax.f32 %v2884, 0.0
    %v3995 = vmax.f32 %v2887, 0.0
    %v3996 = vmax.f32 %v2889, 0.0
    %v3997 = vmax.f32 %v2892, 0.0
    %v3998 = vmax.f32 %v2894, 0.0
    %v3999 = vmax.f32 %v2897, 0.0
    %v4000 = vmax.f32 %v2899, 0.0
    %v4001 = vmax.f32 %v2902, 0.0
    %v4002 = vmax.f32 %v2904, 0.0
    %v4003 = vmax.f32 %v2907, 0.0
    %v4004 = vmax.f32 %v2909, 0.0
    %v4005 = vmax.f32 %v2912, 0.0
    %v4006 = vmax.f32 %v2914, 0.0
    %v4007 = vmax.f32 %v2917, 0.0
    %v4008 = vmax.f32 %v2919, 0.0
    %v4009 = vmax.f32 %v2922, 0.0
    %v4010 = vmax.f32 %v2924, 0.0
    %v4011 = vmax.f32 %v2927, 0.0
    %v4012 = vmax.f32 %v2929, 0.0
    %v4013 = vmax.f32 %v2932, 0.0
    %v4014 = vmax.f32 %v2934, 0.0
    %v4015 = vmax.f32 %v2937, 0.0
    %v4016 = vmax.f32 %v2939, 0.0
    %v4017 = vmax.f32 %v2942, 0.0
    %v4018 = vmax.f32 %v2944, 0.0
    %v4019 = vmax.f32 %v2947, 0.0
    %v4020 = vmax.f32 %v2949, 0.0
    %v4021 = vmax.f32 %v2952, 0.0
    %v4022 = vmax.f32 %v2954, 0.0
    %v4023 = vmax.f32 %v2957, 0.0
    %v4024 = vmax.f32 %v2959, 0.0
    %v4025 = vmax.f32 %v2962, 0.0
    %v4026 = vmax.f32 %v2964, 0.0
    %v4027 = vmax.f32 %v2967, 0.0
    %v4028 = vmax.f32 %v2969, 0.0
    %v4029 = vmax.f32 %v2972, 0.0
    %v4030 = vmax.f32 %v2974, 0.0
    %v4031 = vmax.f32 %v2977, 0.0
    %v4032 = vmax.f32 %v2979, 0.0
    %v4033 = vmax.f32 %v2982, 0.0
    %v4034 = vmax.f32 %v2984, 0.0
    %v4035 = vmax.f32 %v2987, 0.0
    %v4036 = vmax.f32 %v2989, 0.0
    %v4037 = vmax.f32 %v2992, 0.0
    %v4038 = vmax.f32 %v2994, 0.0
    %v4039 = vmax.f32 %v2997, 0.0
    %v4040 = vmax.f32 %v2999, 0.0
    %v4041 = vmax.f32 %v3002, 0.0
    %v4042 = vmax.f32 %v3004, 0.0
    %v4043 = vmax.f32 %v3007, 0.0
    %v4044 = vmax.f32 %v3009, 0.0
    %v4045 = vmax.f32 %v3012, 0.0
    %v4046 = vmax.f32 %v3014, 0.0
    %v4047 = vmax.f32 %v3017, 0.0
    %v4048 = vmax.f32 %v3019, 0.0
    %v4049 = vmax.f32 %v3022, 0.0
    %v4050 = vmax.f32 %v3024, 0.0
    %v4051 = vmax.f32 %v3027, 0.0
    %v4052 = vmax.f32 %v3029, 0.0
    %v4053 = vmax.f32 %v3032, 0.0
    %v4054 = vmax.f32 %v3034, 0.0
    %v4055 = vmax.f32 %v3037, 0.0
    %v4056 = vmax.f32 %v3039, 0.0
    %v4057 = vmax.f32 %v3042, 0.0
    %v4058 = vmax.f32 %v3044, 0.0
    %v4059 = vmax.f32 %v3047, 0.0
    %v4060 = vmax.f32 %v3049, 0.0
    %v4061 = vmax.f32 %v3052, 0.0
    %v4062 = vmax.f32 %v3054, 0.0
    %v4063 = vmax.f32 %v3057, 0.0
    %v4064 = vmax.f32 %v3059, 0.0
    %v4065 = vmax.f32 %v3062, 0.0
    %v4066 = vmax.f32 %v3064, 0.0
    %v4067 = vmax.f32 %v3067, 0.0
    %v4068 = vmax.f32 %v3069, 0.0
    %v4069 = vmax.f32 %v3072, 0.0
    %v4070 = vmax.f32 %v3074, 0.0
    %v4071 = vmax.f32 %v3077, 0.0
    %v4072 = vmax.f32 %v3079, 0.0
    %v4073 = vmax.f32 %v3082, 0.0
    %v4074 = vmax.f32 %v3084, 0.0
    %v4075 = vmax.f32 %v3087, 0.0
    %v4076 = vmax.f32 %v3089, 0.0
    %v4077 = vmax.f32 %v3092, 0.0
    %v4078 = vmax.f32 %v3094, 0.0
    %v4079 = vmax.f32 %v3097, 0.0
    %v4080 = vmax.f32 %v3099, 0.0
    %v4081 = vmax.f32 %v3102, 0.0
    %v4082 = vmax.f32 %v3104, 0.0
    %v4083 = vmax.f32 %v3107, 0.0
    %v4084 = vmax.f32 %v3109, 0.0
    %v4085 = vmax.f32 %v3112, 0.0
    %v4086 = vmax.f32 %v3114, 0.0
    %v4087 = vmax.f32 %v3117, 0.0
    %v4088 = vmax.f32 %v3119, 0.0
    %v4089 = vmax.f32 %v3122, 0.0
    %v4090 = vmax.f32 %v3124, 0.0
    %v4091 = vmax.f32 %v3127, 0.0
    %v4092 = vmax.f32 %v3129, 0.0
    %v4093 = vmax.f32 %v3132, 0.0
    %v4094 = vmax.f32 %v3134, 0.0
    %v4095 = vmax.f32 %v3137, 0.0
    %v4096 = vmax.f32 %v3139, 0.0
    %v4097 = vmax.f32 %v3142, 0.0
    %v4098 = vmax.f32 %v3144, 0.0
    %v4099 = vmax.f32 %v3147, 0.0
    %v4100 = vmax.f32 %v3149, 0.0
    %v4101 = vmax.f32 %v3152, 0.0
    %v4102 = vmax.f32 %v3154, 0.0
    %v4103 = vmax.f32 %v3157, 0.0
    %v4104 = vmax.f32 %v3159, 0.0
    %v4105 = vmax.f32 %v3162, 0.0
    %v4106 = vmax.f32 %v3164, 0.0
    %v4107 = vmax.f32 %v3167, 0.0
    %v4108 = vmax.f32 %v3169, 0.0
    %v4109 = vmax.f32 %v3172, 0.0
    %v4110 = vmax.f32 %v3174, 0.0
    %v4111 = vmax.f32 %v3177, 0.0
    %v4112 = vmax.f32 %v3179, 0.0
    %v4113 = vmax.f32 %v3182, 0.0
    %v4114 = vmax.f32 %v3184, 0.0
    %v4115 = vmax.f32 %v3187, 0.0
    %v4116 = vmax.f32 %v3189, 0.0
    %v4117 = vmax.f32 %v3192, 0.0
    %v4118 = vmax.f32 %v3194, 0.0
    %v4119 = vmax.f32 %v3197, 0.0
    %v4120 = vmax.f32 %v3199, 0.0
    %v4121 = vmax.f32 %v3202, 0.0
    %v4122 = vmax.f32 %v3204, 0.0
    %v4123 = vmax.f32 %v3207, 0.0
    %v4124 = vmax.f32 %v3209, 0.0
    %v4125 = vmax.f32 %v3212, 0.0
    %v4126 = vmax.f32 %v3214, 0.0
    %v4127 = vmax.f32 %v3217, 0.0
    %v4128 = vmax.f32 %v3219, 0.0
    %v4129 = vmax.f32 %v3222, 0.0
    %v4130 = vmax.f32 %v3224, 0.0
    %v4131 = vmax.f32 %v3227, 0.0
    %v4132 = vmax.f32 %v3229, 0.0
    %v4133 = vmax.f32 %v3232, 0.0
    %v4134 = vmax.f32 %v3234, 0.0
    %v4135 = vmax.f32 %v3237, 0.0
    %v4136 = vmax.f32 %v3239, 0.0
    %v4137 = vmax.f32 %v3242, 0.0
    %v4138 = vmax.f32 %v3244, 0.0
    %v4139 = vmax.f32 %v3247, 0.0
    %v4140 = vmax.f32 %v3249, 0.0
    %v4141 = vmax.f32 %v3252, 0.0
    %v4142 = vmax.f32 %v3254, 0.0
    %v4143 = vmax.f32 %v3257, 0.0
    %v4144 = vmax.f32 %v3259, 0.0
    %v4145 = vmax.f32 %v3262, 0.0
    %v4146 = vmax.f32 %v3264, 0.0
    %v4147 = vmax.f32 %v3267, 0.0
    %v4148 = vmax.f32 %v3269, 0.0
    %v4149 = vmax.f32 %v3272, 0.0
    %v4150 = vmax.f32 %v3274, 0.0
    %v4151 = vmax.f32 %v3277, 0.0
    %v4152 = vmax.f32 %v3279, 0.0
    %v4153 = vmax.f32 %v3282, 0.0
    %v4154 = vmax.f32 %v3284, 0.0
    %v4155 = vmax.f32 %v3287, 0.0
    %v4156 = vmax.f32 %v3289, 0.0
    %v4157 = vmax.f32 %v3292, 0.0
    %v4158 = vmax.f32 %v3294, 0.0
    %v4159 = vmax.f32 %v3297, 0.0
    %v4160 = vmax.f32 %v3299, 0.0
    %v4161 = vmax.f32 %v3302, 0.0
    %v4162 = vmax.f32 %v3304, 0.0
    %v4163 = vmax.f32 %v3307, 0.0
    %v4164 = vmax.f32 %v3309, 0.0
    %v4165 = vmax.f32 %v3312, 0.0
    %v4166 = vmax.f32 %v3314, 0.0
    %v4167 = vmax.f32 %v3317, 0.0
    %v4168 = vmax.f32 %v3319, 0.0
    %v4169 = vmax.f32 %v3322, 0.0
    %v4170 = vmax.f32 %v3324, 0.0
    %v4171 = vmax.f32 %v3327, 0.0
    %v4172 = vmax.f32 %v3329, 0.0
    %v4173 = vmax.f32 %v3332, 0.0
    %v4174 = vmax.f32 %v3334, 0.0
    %v4175 = vmax.f32 %v3337, 0.0
    %v4176 = vmax.f32 %v3339, 0.0
    %v4177 = vmax.f32 %v3342, 0.0
    %v4178 = vmax.f32 %v3344, 0.0
    %v4179 = vmax.f32 %v3347, 0.0
    %v4180 = vmax.f32 %v3349, 0.0
    %v4181 = vmax.f32 %v3352, 0.0
    %v4182 = vmax.f32 %v3354, 0.0
    %v4183 = vmax.f32 %v3357, 0.0
    %v4184 = vmax.f32 %v3359, 0.0
    %v4185 = vmax.f32 %v3362, 0.0
    %v4186 = vmax.f32 %v3364, 0.0
    %v4187 = vmax.f32 %v3367, 0.0
    %v4188 = vmax.f32 %v3369, 0.0
    %v4189 = vmax.f32 %v3372, 0.0
    %v4190 = vmax.f32 %v3374, 0.0
    %v4191 = vmax.f32 %v3377, 0.0
    %v4192 = vmax.f32 %v3379, 0.0
    %v4193 = vmax.f32 %v3382, 0.0
    %v4194 = vmax.f32 %v3384, 0.0
    %v4195 = vmax.f32 %v3387, 0.0
    %v4196 = vmax.f32 %v3389, 0.0
    %v4197 = vmax.f32 %v3392, 0.0
    %v4198 = vmax.f32 %v3394, 0.0
    %v4199 = vmax.f32 %v3397, 0.0
    %v4200 = vmax.f32 %v3399, 0.0
    %v4201 = vmax.f32 %v3402, 0.0
    %v4202 = vmax.f32 %v3404, 0.0
    %v4203 = vmax.f32 %v3407, 0.0
    %v4204 = vmax.f32 %v3409, 0.0
    %v4205 = vmax.f32 %v3412, 0.0
    %v4206 = vmax.f32 %v3414, 0.0
    %v4207 = vmax.f32 %v3417, 0.0
    %v4208 = vmax.f32 %v3419, 0.0
    %v4209 = vmax.f32 %v3422, 0.0
    %v4210 = vmax.f32 %v3424, 0.0
    %v4211 = vmax.f32 %v3427, 0.0
    %v4212 = vmax.f32 %v3429, 0.0
    %v4213 = vmax.f32 %v3432, 0.0
    %v4214 = vmax.f32 %v3434, 0.0
    %v4215 = vmax.f32 %v3437, 0.0
    %v4216 = vmax.f32 %v3439, 0.0
    %v4217 = vmax.f32 %v3442, 0.0
    %v4218 = vmax.f32 %v3444, 0.0
    %v4219 = vmax.f32 %v3447, 0.0
    %v4220 = vmax.f32 %v3449, 0.0
    %v4221 = vmax.f32 %v3452, 0.0
    %v4222 = vmax.f32 %v3454, 0.0
    %v4223 = vmax.f32 %v3457, 0.0
    %v4224 = vmax.f32 %v3459, 0.0
    %v4225 = vmax.f32 %v3462, 0.0
    %v4226 = vmax.f32 %v3464, 0.0
    %v4227 = vmax.f32 %v3467, 0.0
    %v4228 = vmax.f32 %v3469, 0.0
    %v4229 = vmax.f32 %v3472, 0.0
    %v4230 = vmax.f32 %v3474, 0.0
    %v4231 = vmax.f32 %v3477, 0.0
    %v4232 = vmax.f32 %v3479, 0.0
    %v4233 = vmax.f32 %v3482, 0.0
    %v4234 = vmax.f32 %v3484, 0.0
    %v4235 = vmax.f32 %v3487, 0.0
    %v4236 = vmax.f32 %v3489, 0.0
    %v4237 = vmax.f32 %v3492, 0.0
    %v4238 = vmax.f32 %v3494, 0.0
    %v4239 = vmax.f32 %v3497, 0.0
    %v4240 = vmax.f32 %v3499, 0.0
    %v4241 = vmax.f32 %v3502, 0.0
    %v4242 = vmax.f32 %v3504, 0.0
    %v4243 = vmax.f32 %v3507, 0.0
    %v4244 = vmax.f32 %v3509, 0.0
    %v4245 = vmax.f32 %v3512, 0.0
    %v4246 = vmax.f32 %v3514, 0.0
    %v4247 = vmax.f32 %v3517, 0.0
    %v4248 = vmax.f32 %v3519, 0.0
    %v4249 = vmax.f32 %v3522, 0.0
    %v4250 = vmax.f32 %v3524, 0.0
    %v4251 = vmax.f32 %v3527, 0.0
    %v4252 = vmax.f32 %v3529, 0.0
    %v4253 = vmax.f32 %v3532, 0.0
    %v4254 = vmax.f32 %v3534, 0.0
    %v4255 = vmax.f32 %v3537, 0.0
    %v4256 = vmax.f32 %v3539, 0.0
    %v4257 = vmax.f32 %v3542, 0.0
    %v4258 = vmax.f32 %v3544, 0.0
    %v4259 = vmax.f32 %v3547, 0.0
    %v4260 = vmax.f32 %v3549, 0.0
    %v4261 = vmax.f32 %v3552, 0.0
    %v4262 = vmax.f32 %v3554, 0.0
    %v4263 = vmax.f32 %v3557, 0.0
    %v4264 = vmax.f32 %v3559, 0.0
    %v4265 = vmax.f32 %v3562, 0.0
    %v4266 = vmax.f32 %v3564, 0.0
    %v4267 = vmax.f32 %v3567, 0.0
    %v4268 = vmax.f32 %v3569, 0.0
    %v4269 = vmax.f32 %v3572, 0.0
    %v4270 = vmax.f32 %v3574, 0.0
    %v4271 = vmax.f32 %v3577, 0.0
    %v4272 = vmax.f32 %v3579, 0.0
    %v4273 = vmax.f32 %v3582, 0.0
    %v4274 = vmax.f32 %v3584, 0.0
    %v4275 = vmax.f32 %v3587, 0.0
    %v4276 = vmax.f32 %v3589, 0.0
    %v4277 = vmax.f32 %v3592, 0.0
    %v4278 = vmax.f32 %v3594, 0.0
    %v4279 = vmax.f32 %v3597, 0.0
    %v4280 = vmax.f32 %v3599, 0.0
    %v4281 = vmax.f32 %v3602, 0.0
    %v4282 = vmax.f32 %v3604, 0.0
    %v4283 = vmax.f32 %v3607, 0.0
    %v4284 = vmax.f32 %v3609, 0.0
    %v4285 = vmax.f32 %v3612, 0.0
    %v4286 = vmax.f32 %v3614, 0.0
    %v4287 = vmax.f32 %v3617, 0.0
    %v4288 = vmax.f32 %v3619, 0.0
    %v4289 = vmax.f32 %v3622, 0.0
    %v4290 = vmax.f32 %v3624, 0.0
    %v4291 = vmax.f32 %v3627, 0.0
    %v4292 = vmax.f32 %v3629, 0.0
    %v4293 = vmax.f32 %v3632, 0.0
    %v4294 = vmax.f32 %v3634, 0.0
    %v4295 = vmax.f32 %v3637, 0.0
    %v4296 = vmax.f32 %v3639, 0.0
    %v4297 = vmax.f32 %v3642, 0.0
    %v4298 = vmax.f32 %v3644, 0.0
    %v4299 = vmax.f32 %v3647, 0.0
    %v4300 = vmax.f32 %v3649, 0.0
    %v4301 = vmax.f32 %v3652, 0.0
    %v4302 = vmax.f32 %v3654, 0.0
    %v4303 = vmax.f32 %v3657, 0.0
    %v4304 = vmax.f32 %v3659, 0.0
    %v4305 = vmax.f32 %v3662, 0.0
    %v4306 = vmax.f32 %v3664, 0.0
    %v4307 = vmax.f32 %v3667, 0.0
    %v4308 = vmax.f32 %v3669, 0.0
    %v4309 = vmax.f32 %v3672, 0.0
    %v4310 = vmax.f32 %v3674, 0.0
    %v4311 = vmax.f32 %v3677, 0.0
    %v4312 = vmax.f32 %v3679, 0.0
    %v4313 = vmax.f32 %v3682, 0.0
    %v4314 = vmax.f32 %v3684, 0.0
    %v4315 = vmax.f32 %v3687, 0.0
    %v4316 = vmax.f32 %v3689, 0.0
    %v4317 = vmax.f32 %v3692, 0.0
    %v4318 = vmax.f32 %v3694, 0.0
    %v4319 = vmax.f32 %v3697, 0.0
    %v4320 = vmax.f32 %v3699, 0.0
    %v4321 = vmax.f32 %v3702, 0.0
    %v4322 = vmax.f32 %v3704, 0.0
    %v4323 = vmax.f32 %v3707, 0.0
    %v4324 = vmax.f32 %v3709, 0.0
    %v4325 = vmax.f32 %v3712, 0.0
    %v4326 = vmax.f32 %v3714, 0.0
    %v4327 = vmax.f32 %v3717, 0.0
    %v4328 = vmax.f32 %v3719, 0.0
    %v4329 = vmax.f32 %v3722, 0.0
    %v4330 = vmax.f32 %v3724, 0.0
    %v4331 = vmax.f32 %v3727, 0.0
    %v4332 = vmax.f32 %v3729, 0.0
    %v4333 = vmax.f32 %v3732, 0.0
    %v4334 = vmax.f32 %v3734, 0.0
    %v4335 = vmax.f32 %v3737, 0.0
    %v4336 = vmax.f32 %v3739, 0.0
    %v4337 = vmax.f32 %v3742, 0.0
    %v4338 = vmax.f32 %v3744, 0.0
    %v4339 = vmax.f32 %v3747, 0.0
    %v4340 = vmax.f32 %v3749, 0.0
    %v4341 = vmax.f32 %v3752, 0.0
    %v4342 = vmax.f32 %v3754, 0.0
    %v4343 = vmax.f32 %v3757, 0.0
    %v4344 = vmax.f32 %v3759, 0.0
    %v4345 = vmax.f32 %v3762, 0.0
    %v4346 = vmax.f32 %v3764, 0.0
    %v4347 = vmax.f32 %v3767, 0.0
    %v4348 = vmax.f32 %v3769, 0.0
    %v4349 = vmax.f32 %v3772, 0.0
    %v4350 = vmax.f32 %v3774, 0.0
    %v4351 = vmax.f32 %v3777, 0.0
    %v4352 = vmax.f32 %v3779, 0.0
    %v4353 = vmax.f32 %v3782, 0.0
    %v4354 = vmax.f32 %v3784, 0.0
    %v4355 = vmax.f32 %v3787, 0.0
    %v4356 = vmax.f32 %v3789, 0.0
    %v4357 = vmax.f32 %v3792, 0.0
    %v4358 = vmax.f32 %v3794, 0.0
    %v4359 = vmax.f32 %v3797, 0.0
    %v4360 = vmax.f32 %v3799, 0.0
    %v4361 = vmax.f32 %v3802, 0.0
    %v4362 = vmax.f32 %v3804, 0.0
    %v4363 = vmax.f32 %v3807, 0.0
    %v4364 = vmax.f32 %v3809, 0.0
    %v4365 = vmax.f32 %v3812, 0.0
    %v4366 = vmax.f32 %v3814, 0.0
    %v4367 = vmax.f32 %v3817, 0.0
    %v4368 = vmax.f32 %v3819, 0.0
    %v4369 = vmax.f32 %v3822, 0.0
    %v4370 = vmax.f32 %v3824, 0.0
    %v4371 = vmax.f32 %v3827, 0.0
    %v4372 = vmax.f32 %v3829, 0.0
    %v4373 = vmax.f32 %v3832, 0.0
    %v4374 = vmax.f32 %v3834, 0.0
    %v4375 = vmax.f32 %v3837, 0.0
    %v4376 = vmax.f32 %v3839, 0.0
    %v4377 = vmax.f32 %v3842, 0.0
    %v4378 = vmax.f32 %v3844, 0.0
    %v4379 = vmax.f32 %v3847, 0.0
    %v4380 = vmax.f32 %v3849, 0.0
    %v4381 = vmax.f32 %v3852, 0.0
    %v4382 = vmax.f32 %v3854, 0.0
    %v4383 = vmax.f32 %v3857, 0.0
    %v4384 = vmax.f32 %v3859, 0.0
    %v4385 = vmax.f32 %v3862, 0.0
    %v4386 = vmax.f32 %v3864, 0.0
    %v4387 = vmax.f32 %v3867, 0.0
    %v4388 = vmax.f32 %v3869, 0.0
    %v4389 = vmax.f32 %v3872, 0.0
    %v4390 = vmax.f32 %v3874, 0.0
    %v4391 = vmax.f32 %v3877, 0.0
    %v4392 = vmax.f32 %v3879, 0.0
    %v4393 = vadd.f32 %v3881, %v3882
    %v4394 = vadd.f32 %v4393, %v3883
    %v4395 = vadd.f32 %v4394, %v3884
    %v4396 = vadd.f32 %v4395, %v3885
    %v4397 = vadd.f32 %v4396, %v3886
    %v4398 = vadd.f32 %v4397, %v3887
    %v4399 = vadd.f32 %v4398, %v3888
    %v4400 = vadd.f32 %v4399, %v3889
    %v4401 = vadd.f32 %v4400, %v3890
    %v4402 = vadd.f32 %v4401, %v3891
    %v4403 = vadd.f32 %v4402, %v3892
    %v4404 = vadd.f32 %v4403, %v3893
    %v4405 = vadd.f32 %v4404, %v3894
    %v4406 = vadd.f32 %v4405, %v3895
    %v4407 = vadd.f32 %v4406, %v3896
    %v4408 = vadd.f32 %v4407, %v3897
    %v4409 = vadd.f32 %v4408, %v3898
    %v4410 = vadd.f32 %v4409, %v3899
    %v4411 = vadd.f32 %v4410, %v3900
    %v4412 = vadd.f32 %v4411, %v3901
    %v4413 = vadd.f32 %v4412, %v3902
    %v4414 = vadd.f32 %v4413, %v3903
    %v4415 = vadd.f32 %v4414, %v3904
    %v4416 = vadd.f32 %v4415, %v3905
    %v4417 = vadd.f32 %v4416, %v3906
    %v4418 = vadd.f32 %v4417, %v3907
    %v4419 = vadd.f32 %v4418, %v3908
    %v4420 = vadd.f32 %v4419, %v3909
    %v4421 = vadd.f32 %v4420, %v3910
    %v4422 = vadd.f32 %v4421, %v3911
    %v4423 = vadd.f32 %v4422, %v3912
    %v4424 = vrot.slane %v4423, 4
    %v4425 = vadd.f32 %v4423, %v4424
    %v4426 = vrot.slane %v4425, 2
    %v4427 = vadd.f32 %v4425, %v4426
    %v4428 = vrot.slane %v4427, 1
    %v4429 = vadd.f32 %v4427, %v4428
    %v4430 = vadd.f32 %v3913, %v3914
    %v4431 = vadd.f32 %v4430, %v3915
    %v4432 = vadd.f32 %v4431, %v3916
    %v4433 = vadd.f32 %v4432, %v3917
    %v4434 = vadd.f32 %v4433, %v3918
    %v4435 = vadd.f32 %v4434, %v3919
    %v4436 = vadd.f32 %v4435, %v3920
    %v4437 = vadd.f32 %v4436, %v3921
    %v4438 = vadd.f32 %v4437, %v3922
    %v4439 = vadd.f32 %v4438, %v3923
    %v4440 = vadd.f32 %v4439, %v3924
    %v4441 = vadd.f32 %v4440, %v3925
    %v4442 = vadd.f32 %v4441, %v3926
    %v4443 = vadd.f32 %v4442, %v3927
    %v4444 = vadd.f32 %v4443, %v3928
    %v4445 = vadd.f32 %v4444, %v3929
    %v4446 = vadd.f32 %v4445, %v3930
    %v4447 = vadd.f32 %v4446, %v3931
    %v4448 = vadd.f32 %v4447, %v3932
    %v4449 = vadd.f32 %v4448, %v3933
    %v4450 = vadd.f32 %v4449, %v3934
    %v4451 = vadd.f32 %v4450, %v3935
    %v4452 = vadd.f32 %v4451, %v3936
    %v4453 = vadd.f32 %v4452, %v3937
    %v4454 = vadd.f32 %v4453, %v3938
    %v4455 = vadd.f32 %v4454, %v3939
    %v4456 = vadd.f32 %v4455, %v3940
    %v4457 = vadd.f32 %v4456, %v3941
    %v4458 = vadd.f32 %v4457, %v3942
    %v4459 = vadd.f32 %v4458, %v3943
    %v4460 = vadd.f32 %v4459, %v3944
    %v4461 = vrot.slane %v4460, 4
    %v4462 = vadd.f32 %v4460, %v4461
    %v4463 = vrot.slane %v4462, 2
    %v4464 = vadd.f32 %v4462, %v4463
    %v4465 = vrot.slane %v4464, 1
    %v4466 = vadd.f32 %v4464, %v4465
    %v4467 = vadd.f32 %v3945, %v3946
    %v4468 = vadd.f32 %v4467, %v3947
    %v4469 = vadd.f32 %v4468, %v3948
    %v4470 = vadd.f32 %v4469, %v3949
    %v4471 = vadd.f32 %v4470, %v3950
    %v4472 = vadd.f32 %v4471, %v3951
    %v4473 = vadd.f32 %v4472, %v3952
    %v4474 = vadd.f32 %v4473, %v3953
    %v4475 = vadd.f32 %v4474, %v3954
    %v4476 = vadd.f32 %v4475, %v3955
    %v4477 = vadd.f32 %v4476, %v3956
    %v4478 = vadd.f32 %v4477, %v3957
    %v4479 = vadd.f32 %v4478, %v3958
    %v4480 = vadd.f32 %v4479, %v3959
    %v4481 = vadd.f32 %v4480, %v3960
    %v4482 = vadd.f32 %v4481, %v3961
    %v4483 = vadd.f32 %v4482, %v3962
    %v4484 = vadd.f32 %v4483, %v3963
    %v4485 = vadd.f32 %v4484, %v3964
    %v4486 = vadd.f32 %v4485, %v3965
    %v4487 = vadd.f32 %v4486, %v3966
    %v4488 = vadd.f32 %v4487, %v3967
    %v4489 = vadd.f32 %v4488, %v3968
    %v4490 = vadd.f32 %v4489, %v3969
    %v4491 = vadd.f32 %v4490, %v3970
    %v4492 = vadd.f32 %v4491, %v3971
    %v4493 = vadd.f32 %v4492, %v3972
    %v4494 = vadd.f32 %v4493, %v3973
    %v4495 = vadd.f32 %v4494, %v3974
    %v4496 = vadd.f32 %v4495, %v3975
    %v4497 = vadd.f32 %v4496, %v3976
    %v4498 = vrot.slane %v4497, 4
    %v4499 = vadd.f32 %v4497, %v4498
    %v4500 = vrot.slane %v4499, 2
    %v4501 = vadd.f32 %v4499, %v4500
    %v4502 = vrot.slane %v4501, 1
    %v4503 = vadd.f32 %v4501, %v4502
    %v4504 = vadd.f32 %v3977, %v3978
    %v4505 = vadd.f32 %v4504, %v3979
    %v4506 = vadd.f32 %v4505, %v3980
    %v4507 = vadd.f32 %v4506, %v3981
    %v4508 = vadd.f32 %v4507, %v3982
    %v4509 = vadd.f32 %v4508, %v3983
    %v4510 = vadd.f32 %v4509, %v3984
    %v4511 = vadd.f32 %v4510, %v3985
    %v4512 = vadd.f32 %v4511, %v3986
    %v4513 = vadd.f32 %v4512, %v3987
    %v4514 = vadd.f32 %v4513, %v3988
    %v4515 = vadd.f32 %v4514, %v3989
    %v4516 = vadd.f32 %v4515, %v3990
    %v4517 = vadd.f32 %v4516, %v3991
    %v4518 = vadd.f32 %v4517, %v3992
    %v4519 = vadd.f32 %v4518, %v3993
    %v4520 = vadd.f32 %v4519, %v3994
    %v4521 = vadd.f32 %v4520, %v3995
    %v4522 = vadd.f32 %v4521, %v3996
    %v4523 = vadd.f32 %v4522, %v3997
    %v4524 = vadd.f32 %v4523, %v3998
    %v4525 = vadd.f32 %v4524, %v3999
    %v4526 = vadd.f32 %v4525, %v4000
    %v4527 = vadd.f32 %v4526, %v4001
    %v4528 = vadd.f32 %v4527, %v4002
    %v4529 = vadd.f32 %v4528, %v4003
    %v4530 = vadd.f32 %v4529, %v4004
    %v4531 = vadd.f32 %v4530, %v4005
    %v4532 = vadd.f32 %v4531, %v4006
    %v4533 = vadd.f32 %v4532, %v4007
    %v4534 = vadd.f32 %v4533, %v4008
    %v4535 = vrot.slane %v4534, 4
    %v4536 = vadd.f32 %v4534, %v4535
    %v4537 = vrot.slane %v4536, 2
    %v4538 = vadd.f32 %v4536, %v4537
    %v4539 = vrot.slane %v4538, 1
    %v4540 = vadd.f32 %v4538, %v4539
    %v4541 = vadd.f32 %v4009, %v4010
    %v4542 = vadd.f32 %v4541, %v4011
    %v4543 = vadd.f32 %v4542, %v4012
    %v4544 = vadd.f32 %v4543, %v4013
    %v4545 = vadd.f32 %v4544, %v4014
    %v4546 = vadd.f32 %v4545, %v4015
    %v4547 = vadd.f32 %v4546, %v4016
    %v4548 = vadd.f32 %v4547, %v4017
    %v4549 = vadd.f32 %v4548, %v4018
    %v4550 = vadd.f32 %v4549, %v4019
    %v4551 = vadd.f32 %v4550, %v4020
    %v4552 = vadd.f32 %v4551, %v4021
    %v4553 = vadd.f32 %v4552, %v4022
    %v4554 = vadd.f32 %v4553, %v4023
    %v4555 = vadd.f32 %v4554, %v4024
    %v4556 = vadd.f32 %v4555, %v4025
    %v4557 = vadd.f32 %v4556, %v4026
    %v4558 = vadd.f32 %v4557, %v4027
    %v4559 = vadd.f32 %v4558, %v4028
    %v4560 = vadd.f32 %v4559, %v4029
    %v4561 = vadd.f32 %v4560, %v4030
    %v4562 = vadd.f32 %v4561, %v4031
    %v4563 = vadd.f32 %v4562, %v4032
    %v4564 = vadd.f32 %v4563, %v4033
    %v4565 = vadd.f32 %v4564, %v4034
    %v4566 = vadd.f32 %v4565, %v4035
    %v4567 = vadd.f32 %v4566, %v4036
    %v4568 = vadd.f32 %v4567, %v4037
    %v4569 = vadd.f32 %v4568, %v4038
    %v4570 = vadd.f32 %v4569, %v4039
    %v4571 = vadd.f32 %v4570, %v4040
    %v4572 = vrot.slane %v4571, 4
    %v4573 = vadd.f32 %v4571, %v4572
    %v4574 = vrot.slane %v4573, 2
    %v4575 = vadd.f32 %v4573, %v4574
    %v4576 = vrot.slane %v4575, 1
    %v4577 = vadd.f32 %v4575, %v4576
    %v4578 = vadd.f32 %v4041, %v4042
    %v4579 = vadd.f32 %v4578, %v4043
    %v4580 = vadd.f32 %v4579, %v4044
    %v4581 = vadd.f32 %v4580, %v4045
    %v4582 = vadd.f32 %v4581, %v4046
    %v4583 = vadd.f32 %v4582, %v4047
    %v4584 = vadd.f32 %v4583, %v4048
    %v4585 = vadd.f32 %v4584, %v4049
    %v4586 = vadd.f32 %v4585, %v4050
    %v4587 = vadd.f32 %v4586, %v4051
    %v4588 = vadd.f32 %v4587, %v4052
    %v4589 = vadd.f32 %v4588, %v4053
    %v4590 = vadd.f32 %v4589, %v4054
    %v4591 = vadd.f32 %v4590, %v4055
    %v4592 = vadd.f32 %v4591, %v4056
    %v4593 = vadd.f32 %v4592, %v4057
    %v4594 = vadd.f32 %v4593, %v4058
    %v4595 = vadd.f32 %v4594, %v4059
    %v4596 = vadd.f32 %v4595, %v4060
    %v4597 = vadd.f32 %v4596, %v4061
    %v4598 = vadd.f32 %v4597, %v4062
    %v4599 = vadd.f32 %v4598, %v4063
    %v4600 = vadd.f32 %v4599, %v4064
    %v4601 = vadd.f32 %v4600, %v4065
    %v4602 = vadd.f32 %v4601, %v4066
    %v4603 = vadd.f32 %v4602, %v4067
    %v4604 = vadd.f32 %v4603, %v4068
    %v4605 = vadd.f32 %v4604, %v4069
    %v4606 = vadd.f32 %v4605, %v4070
    %v4607 = vadd.f32 %v4606, %v4071
    %v4608 = vadd.f32 %v4607, %v4072
    %v4609 = vrot.slane %v4608, 4
    %v4610 = vadd.f32 %v4608, %v4609
    %v4611 = vrot.slane %v4610, 2
    %v4612 = vadd.f32 %v4610, %v4611
    %v4613 = vrot.slane %v4612, 1
    %v4614 = vadd.f32 %v4612, %v4613
    %v4615 = vadd.f32 %v4073, %v4074
    %v4616 = vadd.f32 %v4615, %v4075
    %v4617 = vadd.f32 %v4616, %v4076
    %v4618 = vadd.f32 %v4617, %v4077
    %v4619 = vadd.f32 %v4618, %v4078
    %v4620 = vadd.f32 %v4619, %v4079
    %v4621 = vadd.f32 %v4620, %v4080
    %v4622 = vadd.f32 %v4621, %v4081
    %v4623 = vadd.f32 %v4622, %v4082
    %v4624 = vadd.f32 %v4623, %v4083
    %v4625 = vadd.f32 %v4624, %v4084
    %v4626 = vadd.f32 %v4625, %v4085
    %v4627 = vadd.f32 %v4626, %v4086
    %v4628 = vadd.f32 %v4627, %v4087
    %v4629 = vadd.f32 %v4628, %v4088
    %v4630 = vadd.f32 %v4629, %v4089
    %v4631 = vadd.f32 %v4630, %v4090
    %v4632 = vadd.f32 %v4631, %v4091
    %v4633 = vadd.f32 %v4632, %v4092
    %v4634 = vadd.f32 %v4633, %v4093
    %v4635 = vadd.f32 %v4634, %v4094
    %v4636 = vadd.f32 %v4635, %v4095
    %v4637 = vadd.f32 %v4636, %v4096
    %v4638 = vadd.f32 %v4637, %v4097
    %v4639 = vadd.f32 %v4638, %v4098
    %v4640 = vadd.f32 %v4639, %v4099
    %v4641 = vadd.f32 %v4640, %v4100
    %v4642 = vadd.f32 %v4641, %v4101
    %v4643 = vadd.f32 %v4642, %v4102
    %v4644 = vadd.f32 %v4643, %v4103
    %v4645 = vadd.f32 %v4644, %v4104
    %v4646 = vrot.slane %v4645, 4
    %v4647 = vadd.f32 %v4645, %v4646
    %v4648 = vrot.slane %v4647, 2
    %v4649 = vadd.f32 %v4647, %v4648
    %v4650 = vrot.slane %v4649, 1
    %v4651 = vadd.f32 %v4649, %v4650
    %v4652 = vadd.f32 %v4105, %v4106
    %v4653 = vadd.f32 %v4652, %v4107
    %v4654 = vadd.f32 %v4653, %v4108
    %v4655 = vadd.f32 %v4654, %v4109
    %v4656 = vadd.f32 %v4655, %v4110
    %v4657 = vadd.f32 %v4656, %v4111
    %v4658 = vadd.f32 %v4657, %v4112
    %v4659 = vadd.f32 %v4658, %v4113
    %v4660 = vadd.f32 %v4659, %v4114
    %v4661 = vadd.f32 %v4660, %v4115
    %v4662 = vadd.f32 %v4661, %v4116
    %v4663 = vadd.f32 %v4662, %v4117
    %v4664 = vadd.f32 %v4663, %v4118
    %v4665 = vadd.f32 %v4664, %v4119
    %v4666 = vadd.f32 %v4665, %v4120
    %v4667 = vadd.f32 %v4666, %v4121
    %v4668 = vadd.f32 %v4667, %v4122
    %v4669 = vadd.f32 %v4668, %v4123
    %v4670 = vadd.f32 %v4669, %v4124
    %v4671 = vadd.f32 %v4670, %v4125
    %v4672 = vadd.f32 %v4671, %v4126
    %v4673 = vadd.f32 %v4672, %v4127
    %v4674 = vadd.f32 %v4673, %v4128
    %v4675 = vadd.f32 %v4674, %v4129
    %v4676 = vadd.f32 %v4675, %v4130
    %v4677 = vadd.f32 %v4676, %v4131
    %v4678 = vadd.f32 %v4677, %v4132
    %v4679 = vadd.f32 %v4678, %v4133
    %v4680 = vadd.f32 %v4679, %v4134
    %v4681 = vadd.f32 %v4680, %v4135
    %v4682 = vadd.f32 %v4681, %v4136
    %v4683 = vrot.slane %v4682, 4
    %v4684 = vadd.f32 %v4682, %v4683
    %v4685 = vrot.slane %v4684, 2
    %v4686 = vadd.f32 %v4684, %v4685
    %v4687 = vrot.slane %v4686, 1
    %v4688 = vadd.f32 %v4686, %v4687
    %v4689 = vadd.f32 %v4137, %v4138
    %v4690 = vadd.f32 %v4689, %v4139
    %v4691 = vadd.f32 %v4690, %v4140
    %v4692 = vadd.f32 %v4691, %v4141
    %v4693 = vadd.f32 %v4692, %v4142
    %v4694 = vadd.f32 %v4693, %v4143
    %v4695 = vadd.f32 %v4694, %v4144
    %v4696 = vadd.f32 %v4695, %v4145
    %v4697 = vadd.f32 %v4696, %v4146
    %v4698 = vadd.f32 %v4697, %v4147
    %v4699 = vadd.f32 %v4698, %v4148
    %v4700 = vadd.f32 %v4699, %v4149
    %v4701 = vadd.f32 %v4700, %v4150
    %v4702 = vadd.f32 %v4701, %v4151
    %v4703 = vadd.f32 %v4702, %v4152
    %v4704 = vadd.f32 %v4703, %v4153
    %v4705 = vadd.f32 %v4704, %v4154
    %v4706 = vadd.f32 %v4705, %v4155
    %v4707 = vadd.f32 %v4706, %v4156
    %v4708 = vadd.f32 %v4707, %v4157
    %v4709 = vadd.f32 %v4708, %v4158
    %v4710 = vadd.f32 %v4709, %v4159
    %v4711 = vadd.f32 %v4710, %v4160
    %v4712 = vadd.f32 %v4711, %v4161
    %v4713 = vadd.f32 %v4712, %v4162
    %v4714 = vadd.f32 %v4713, %v4163
    %v4715 = vadd.f32 %v4714, %v4164
    %v4716 = vadd.f32 %v4715, %v4165
    %v4717 = vadd.f32 %v4716, %v4166
    %v4718 = vadd.f32 %v4717, %v4167
    %v4719 = vadd.f32 %v4718, %v4168
    %v4720 = vrot.slane %v4719, 4
    %v4721 = vadd.f32 %v4719, %v4720
    %v4722 = vrot.slane %v4721, 2
    %v4723 = vadd.f32 %v4721, %v4722
    %v4724 = vrot.slane %v4723, 1
    %v4725 = vadd.f32 %v4723, %v4724
    %v4726 = vadd.f32 %v4169, %v4170
    %v4727 = vadd.f32 %v4726, %v4171
    %v4728 = vadd.f32 %v4727, %v4172
    %v4729 = vadd.f32 %v4728, %v4173
    %v4730 = vadd.f32 %v4729, %v4174
    %v4731 = vadd.f32 %v4730, %v4175
    %v4732 = vadd.f32 %v4731, %v4176
    %v4733 = vadd.f32 %v4732, %v4177
    %v4734 = vadd.f32 %v4733, %v4178
    %v4735 = vadd.f32 %v4734, %v4179
    %v4736 = vadd.f32 %v4735, %v4180
    %v4737 = vadd.f32 %v4736, %v4181
    %v4738 = vadd.f32 %v4737, %v4182
    %v4739 = vadd.f32 %v4738, %v4183
    %v4740 = vadd.f32 %v4739, %v4184
    %v4741 = vadd.f32 %v4740, %v4185
    %v4742 = vadd.f32 %v4741, %v4186
    %v4743 = vadd.f32 %v4742, %v4187
    %v4744 = vadd.f32 %v4743, %v4188
    %v4745 = vadd.f32 %v4744, %v4189
    %v4746 = vadd.f32 %v4745, %v4190
    %v4747 = vadd.f32 %v4746, %v4191
    %v4748 = vadd.f32 %v4747, %v4192
    %v4749 = vadd.f32 %v4748, %v4193
    %v4750 = vadd.f32 %v4749, %v4194
    %v4751 = vadd.f32 %v4750, %v4195
    %v4752 = vadd.f32 %v4751, %v4196
    %v4753 = vadd.f32 %v4752, %v4197
    %v4754 = vadd.f32 %v4753, %v4198
    %v4755 = vadd.f32 %v4754, %v4199
    %v4756 = vadd.f32 %v4755, %v4200
    %v4757 = vrot.slane %v4756, 4
    %v4758 = vadd.f32 %v4756, %v4757
    %v4759 = vrot.slane %v4758, 2
    %v4760 = vadd.f32 %v4758, %v4759
    %v4761 = vrot.slane %v4760, 1
    %v4762 = vadd.f32 %v4760, %v4761
    %v4763 = vadd.f32 %v4201, %v4202
    %v4764 = vadd.f32 %v4763, %v4203
    %v4765 = vadd.f32 %v4764, %v4204
    %v4766 = vadd.f32 %v4765, %v4205
    %v4767 = vadd.f32 %v4766, %v4206
    %v4768 = vadd.f32 %v4767, %v4207
    %v4769 = vadd.f32 %v4768, %v4208
    %v4770 = vadd.f32 %v4769, %v4209
    %v4771 = vadd.f32 %v4770, %v4210
    %v4772 = vadd.f32 %v4771, %v4211
    %v4773 = vadd.f32 %v4772, %v4212
    %v4774 = vadd.f32 %v4773, %v4213
    %v4775 = vadd.f32 %v4774, %v4214
    %v4776 = vadd.f32 %v4775, %v4215
    %v4777 = vadd.f32 %v4776, %v4216
    %v4778 = vadd.f32 %v4777, %v4217
    %v4779 = vadd.f32 %v4778, %v4218
    %v4780 = vadd.f32 %v4779, %v4219
    %v4781 = vadd.f32 %v4780, %v4220
    %v4782 = vadd.f32 %v4781, %v4221
    %v4783 = vadd.f32 %v4782, %v4222
    %v4784 = vadd.f32 %v4783, %v4223
    %v4785 = vadd.f32 %v4784, %v4224
    %v4786 = vadd.f32 %v4785, %v4225
    %v4787 = vadd.f32 %v4786, %v4226
    %v4788 = vadd.f32 %v4787, %v4227
    %v4789 = vadd.f32 %v4788, %v4228
    %v4790 = vadd.f32 %v4789, %v4229
    %v4791 = vadd.f32 %v4790, %v4230
    %v4792 = vadd.f32 %v4791, %v4231
    %v4793 = vadd.f32 %v4792, %v4232
    %v4794 = vrot.slane %v4793, 4
    %v4795 = vadd.f32 %v4793, %v4794
    %v4796 = vrot.slane %v4795, 2
    %v4797 = vadd.f32 %v4795, %v4796
    %v4798 = vrot.slane %v4797, 1
    %v4799 = vadd.f32 %v4797, %v4798
    %v4800 = vadd.f32 %v4233, %v4234
    %v4801 = vadd.f32 %v4800, %v4235
    %v4802 = vadd.f32 %v4801, %v4236
    %v4803 = vadd.f32 %v4802, %v4237
    %v4804 = vadd.f32 %v4803, %v4238
    %v4805 = vadd.f32 %v4804, %v4239
    %v4806 = vadd.f32 %v4805, %v4240
    %v4807 = vadd.f32 %v4806, %v4241
    %v4808 = vadd.f32 %v4807, %v4242
    %v4809 = vadd.f32 %v4808, %v4243
    %v4810 = vadd.f32 %v4809, %v4244
    %v4811 = vadd.f32 %v4810, %v4245
    %v4812 = vadd.f32 %v4811, %v4246
    %v4813 = vadd.f32 %v4812, %v4247
    %v4814 = vadd.f32 %v4813, %v4248
    %v4815 = vadd.f32 %v4814, %v4249
    %v4816 = vadd.f32 %v4815, %v4250
    %v4817 = vadd.f32 %v4816, %v4251
    %v4818 = vadd.f32 %v4817, %v4252
    %v4819 = vadd.f32 %v4818, %v4253
    %v4820 = vadd.f32 %v4819, %v4254
    %v4821 = vadd.f32 %v4820, %v4255
    %v4822 = vadd.f32 %v4821, %v4256
    %v4823 = vadd.f32 %v4822, %v4257
    %v4824 = vadd.f32 %v4823, %v4258
    %v4825 = vadd.f32 %v4824, %v4259
    %v4826 = vadd.f32 %v4825, %v4260
    %v4827 = vadd.f32 %v4826, %v4261
    %v4828 = vadd.f32 %v4827, %v4262
    %v4829 = vadd.f32 %v4828, %v4263
    %v4830 = vadd.f32 %v4829, %v4264
    %v4831 = vrot.slane %v4830, 4
    %v4832 = vadd.f32 %v4830, %v4831
    %v4833 = vrot.slane %v4832, 2
    %v4834 = vadd.f32 %v4832, %v4833
    %v4835 = vrot.slane %v4834, 1
    %v4836 = vadd.f32 %v4834, %v4835
    %v4837 = vadd.f32 %v4265, %v4266
    %v4838 = vadd.f32 %v4837, %v4267
    %v4839 = vadd.f32 %v4838, %v4268
    %v4840 = vadd.f32 %v4839, %v4269
    %v4841 = vadd.f32 %v4840, %v4270
    %v4842 = vadd.f32 %v4841, %v4271
    %v4843 = vadd.f32 %v4842, %v4272
    %v4844 = vadd.f32 %v4843, %v4273
    %v4845 = vadd.f32 %v4844, %v4274
    %v4846 = vadd.f32 %v4845, %v4275
    %v4847 = vadd.f32 %v4846, %v4276
    %v4848 = vadd.f32 %v4847, %v4277
    %v4849 = vadd.f32 %v4848, %v4278
    %v4850 = vadd.f32 %v4849, %v4279
    %v4851 = vadd.f32 %v4850, %v4280
    %v4852 = vadd.f32 %v4851, %v4281
    %v4853 = vadd.f32 %v4852, %v4282
    %v4854 = vadd.f32 %v4853, %v4283
    %v4855 = vadd.f32 %v4854, %v4284
    %v4856 = vadd.f32 %v4855, %v4285
    %v4857 = vadd.f32 %v4856, %v4286
    %v4858 = vadd.f32 %v4857, %v4287
    %v4859 = vadd.f32 %v4858, %v4288
    %v4860 = vadd.f32 %v4859, %v4289
    %v4861 = vadd.f32 %v4860, %v4290
    %v4862 = vadd.f32 %v4861, %v4291
    %v4863 = vadd.f32 %v4862, %v4292
    %v4864 = vadd.f32 %v4863, %v4293
    %v4865 = vadd.f32 %v4864, %v4294
    %v4866 = vadd.f32 %v4865, %v4295
    %v4867 = vadd.f32 %v4866, %v4296
    %v4868 = vrot.slane %v4867, 4
    %v4869 = vadd.f32 %v4867, %v4868
    %v4870 = vrot.slane %v4869, 2
    %v4871 = vadd.f32 %v4869, %v4870
    %v4872 = vrot.slane %v4871, 1
    %v4873 = vadd.f32 %v4871, %v4872
    %v4874 = vadd.f32 %v4297, %v4298
    %v4875 = vadd.f32 %v4874, %v4299
    %v4876 = vadd.f32 %v4875, %v4300
    %v4877 = vadd.f32 %v4876, %v4301
    %v4878 = vadd.f32 %v4877, %v4302
    %v4879 = vadd.f32 %v4878, %v4303
    %v4880 = vadd.f32 %v4879, %v4304
    %v4881 = vadd.f32 %v4880, %v4305
    %v4882 = vadd.f32 %v4881, %v4306
    %v4883 = vadd.f32 %v4882, %v4307
    %v4884 = vadd.f32 %v4883, %v4308
    %v4885 = vadd.f32 %v4884, %v4309
    %v4886 = vadd.f32 %v4885, %v4310
    %v4887 = vadd.f32 %v4886, %v4311
    %v4888 = vadd.f32 %v4887, %v4312
    %v4889 = vadd.f32 %v4888, %v4313
    %v4890 = vadd.f32 %v4889, %v4314
    %v4891 = vadd.f32 %v4890, %v4315
    %v4892 = vadd.f32 %v4891, %v4316
    %v4893 = vadd.f32 %v4892, %v4317
    %v4894 = vadd.f32 %v4893, %v4318
    %v4895 = vadd.f32 %v4894, %v4319
    %v4896 = vadd.f32 %v4895, %v4320
    %v4897 = vadd.f32 %v4896, %v4321
    %v4898 = vadd.f32 %v4897, %v4322
    %v4899 = vadd.f32 %v4898, %v4323
    %v4900 = vadd.f32 %v4899, %v4324
    %v4901 = vadd.f32 %v4900, %v4325
    %v4902 = vadd.f32 %v4901, %v4326
    %v4903 = vadd.f32 %v4902, %v4327
    %v4904 = vadd.f32 %v4903, %v4328
    %v4905 = vrot.slane %v4904, 4
    %v4906 = vadd.f32 %v4904, %v4905
    %v4907 = vrot.slane %v4906, 2
    %v4908 = vadd.f32 %v4906, %v4907
    %v4909 = vrot.slane %v4908, 1
    %v4910 = vadd.f32 %v4908, %v4909
    %v4911 = vadd.f32 %v4329, %v4330
    %v4912 = vadd.f32 %v4911, %v4331
    %v4913 = vadd.f32 %v4912, %v4332
    %v4914 = vadd.f32 %v4913, %v4333
    %v4915 = vadd.f32 %v4914, %v4334
    %v4916 = vadd.f32 %v4915, %v4335
    %v4917 = vadd.f32 %v4916, %v4336
    %v4918 = vadd.f32 %v4917, %v4337
    %v4919 = vadd.f32 %v4918, %v4338
    %v4920 = vadd.f32 %v4919, %v4339
    %v4921 = vadd.f32 %v4920, %v4340
    %v4922 = vadd.f32 %v4921, %v4341
    %v4923 = vadd.f32 %v4922, %v4342
    %v4924 = vadd.f32 %v4923, %v4343
    %v4925 = vadd.f32 %v4924, %v4344
    %v4926 = vadd.f32 %v4925, %v4345
    %v4927 = vadd.f32 %v4926, %v4346
    %v4928 = vadd.f32 %v4927, %v4347
    %v4929 = vadd.f32 %v4928, %v4348
    %v4930 = vadd.f32 %v4929, %v4349
    %v4931 = vadd.f32 %v4930, %v4350
    %v4932 = vadd.f32 %v4931, %v4351
    %v4933 = vadd.f32 %v4932, %v4352
    %v4934 = vadd.f32 %v4933, %v4353
    %v4935 = vadd.f32 %v4934, %v4354
    %v4936 = vadd.f32 %v4935, %v4355
    %v4937 = vadd.f32 %v4936, %v4356
    %v4938 = vadd.f32 %v4937, %v4357
    %v4939 = vadd.f32 %v4938, %v4358
    %v4940 = vadd.f32 %v4939, %v4359
    %v4941 = vadd.f32 %v4940, %v4360
    %v4942 = vrot.slane %v4941, 4
    %v4943 = vadd.f32 %v4941, %v4942
    %v4944 = vrot.slane %v4943, 2
    %v4945 = vadd.f32 %v4943, %v4944
    %v4946 = vrot.slane %v4945, 1
    %v4947 = vadd.f32 %v4945, %v4946
    %v4948 = vadd.f32 %v4361, %v4362
    %v4949 = vadd.f32 %v4948, %v4363
    %v4950 = vadd.f32 %v4949, %v4364
    %v4951 = vadd.f32 %v4950, %v4365
    %v4952 = vadd.f32 %v4951, %v4366
    %v4953 = vadd.f32 %v4952, %v4367
    %v4954 = vadd.f32 %v4953, %v4368
    %v4955 = vadd.f32 %v4954, %v4369
    %v4956 = vadd.f32 %v4955, %v4370
    %v4957 = vadd.f32 %v4956, %v4371
    %v4958 = vadd.f32 %v4957, %v4372
    %v4959 = vadd.f32 %v4958, %v4373
    %v4960 = vadd.f32 %v4959, %v4374
    %v4961 = vadd.f32 %v4960, %v4375
    %v4962 = vadd.f32 %v4961, %v4376
    %v4963 = vadd.f32 %v4962, %v4377
    %v4964 = vadd.f32 %v4963, %v4378
    %v4965 = vadd.f32 %v4964, %v4379
    %v4966 = vadd.f32 %v4965, %v4380
    %v4967 = vadd.f32 %v4966, %v4381
    %v4968 = vadd.f32 %v4967, %v4382
    %v4969 = vadd.f32 %v4968, %v4383
    %v4970 = vadd.f32 %v4969, %v4384
    %v4971 = vadd.f32 %v4970, %v4385
    %v4972 = vadd.f32 %v4971, %v4386
    %v4973 = vadd.f32 %v4972, %v4387
    %v4974 = vadd.f32 %v4973, %v4388
    %v4975 = vadd.f32 %v4974, %v4389
    %v4976 = vadd.f32 %v4975, %v4390
    %v4977 = vadd.f32 %v4976, %v4391
    %v4978 = vadd.f32 %v4977, %v4392
    %v4979 = vrot.slane %v4978, 4
    %v4980 = vadd.f32 %v4978, %v4979
    %v4981 = vrot.slane %v4980, 2
    %v4982 = vadd.f32 %v4980, %v4981
    %v4983 = vrot.slane %v4982, 1
    %v4984 = vadd.f32 %v4982, %v4983
    %v4985 = vmul.f32 %v4429, 0.00390625
    %v4986 = vmul.f32 %v4466, 0.00390625
    %v4987 = vmul.f32 %v4503, 0.00390625
    %v4988 = vmul.f32 %v4540, 0.00390625
    %v4989 = vmul.f32 %v4577, 0.00390625
    %v4990 = vmul.f32 %v4614, 0.00390625
    %v4991 = vmul.f32 %v4651, 0.00390625
    %v4992 = vmul.f32 %v4688, 0.00390625
    %v4993 = vmul.f32 %v4725, 0.00390625
    %v4994 = vmul.f32 %v4762, 0.00390625
    %v4995 = vmul.f32 %v4799, 0.00390625
    %v4996 = vmul.f32 %v4836, 0.00390625
    %v4997 = vmul.f32 %v4873, 0.00390625
    %v4998 = vmul.f32 %v4910, 0.00390625
    %v4999 = vmul.f32 %v4947, 0.00390625
    %v5000 = vmul.f32 %v4984, 0.00390625
    %v5001 = vld [vmem:[%s3] sm:$0xff]
    %v5002 = vld [vmem:[%s3 + $0x8] sm:$0xff]
    %v5003 = vld [vmem:[%s3 + $0x10] sm:$0xff]
    %v5004 = vld [vmem:[%s3 + $0x18] sm:$0xff]
    %v5005 = vld [vmem:[%s3 + $0x20] sm:$0xff]
    %v5006 = vld [vmem:[%s3 + $0x28] sm:$0xff]
    %v5007 = vld [vmem:[%s3 + $0x30] sm:$0xff]
    %v5008 = vld [vmem:[%s3 + $0x38] sm:$0xff]
    %v5009 = vld [vmem:[%s3 + $0x40] sm:$0xff]
    %v5010 = vld [vmem:[%s3 + $0x48] sm:$0xff]
    %v5011 = vld [vmem:[%s3 + $0x50] sm:$0xff]
    %v5012 = vld [vmem:[%s3 + $0x58] sm:$0xff]
    %v5013 = vld [vmem:[%s3 + $0x60] sm:$0xff]
    %v5014 = vld [vmem:[%s3 + $0x68] sm:$0xff]
    %v5015 = vld [vmem:[%s3 + $0x70] sm:$0xff]
    %v5016 = vld [vmem:[%s3 + $0x78] sm:$0xff]
    %v5017 = vld [vmem:[%s4] sm:$0x1]
    %v5019 = vperm.slane %v5017, 0
    %vm5037 = vcmask 1041409
    %v5038 = vsel %vm5037, %v4986, %v4985
    %vm5039 = vcmask 1042434
    %v5040 = vsel %vm5039, %v4987, %v5038
    %vm5041 = vcmask 1043459
    %v5042 = vsel %vm5041, %v4988, %v5040
    %vm5043 = vcmask 1044484
    %v5044 = vsel %vm5043, %v4989, %v5042
    %vm5045 = vcmask 1045509
    %v5046 = vsel %vm5045, %v4990, %v5044
    %vm5047 = vcmask 1046534
    %v5048 = vsel %vm5047, %v4991, %v5046
    %vm5049 = vcmask 1047559
    %v5050 = vsel %vm5049, %v4992, %v5048
    %v5051 = vsel %vm5037, %v4994, %v4993
    %v5052 = vsel %vm5039, %v4995, %v5051
    %v5053 = vsel %vm5041, %v4996, %v5052
    %v5054 = vsel %vm5043, %v4997, %v5053
    %v5055 = vsel %vm5045, %v4998, %v5054
    %v5056 = vsel %vm5047, %v4999, %v5055
    %v5057 = vsel %vm5049, %v5000, %v5056
    %5060 = vmatpush.msra.mxu0 %v5016
    %5061 = vmatpush.msra.mxu0 %v5015
    %5062 = vmatpush.msra.mxu0 %v5014
    %5063 = vmatpush.msra.mxu0 %v5013
    %5064 = vmatpush.msra.mxu0 %v5012
    %5065 = vmatpush.msra.mxu0 %v5011
    %5066 = vmatpush.msra.mxu0 %v5010
    %5067 = vmatpush.msra.mxu0 %v5009
    %5068 = vmatpush.msra.mxu0 %v5008
    %5069 = vmatpush.msra.mxu0 %v5007
    %5070 = vmatpush.msra.mxu0 %v5006
    %5071 = vmatpush.msra.mxu0 %v5005
    %5072 = vmatpush.msra.mxu0 %v5004
    %5073 = vmatpush.msra.mxu0 %v5003
    %5074 = vmatpush.msra.mxu0 %v5002
    %5075 = vmatpush.msra.mxu0 %v5001
    %5076 = vmatmul.f32.gmra.mxu0 %v5050
    %v5077 = vpop.f32.mrf.mxu0
    %v5078 = vadd.f32 %v5019, %v5077
    %5079 = vmatmul.f32.gmra.mxu0 %v5057
    %v5080 = vpop.f32.mrf.mxu0
    %v5081 = vadd.f32 %v5019, %v5080
    %5082 = vdwg.mxu0
    %5083 = vst [vmem:[#allocation2] sm:$0xff] %v5078
    %5084 = vst [vmem:[#allocation2 + $0x8] sm:$0xff] %v5081
    // Predicated region
    $region22: #{tpu_custom_call.1} parent=1 // pred_check
      _
    $region23: #{tpu_custom_call.1} parent=1 // pred_check_branch
      %5086 = sbr.rel (0) target = $region25
    $region24: #{tpu_custom_call.1} parent=1 // pred_region
      %5088 = vsyncadd [#allocation3], 0
      %s5089 = sshll.u32 [#allocation2], 4
      %s5090 = int_to_ptr.vmem [resolvable:$true] %s5089
      %s5091 = sshll.u32 %s5, 4
      %s5092 = int_to_ptr.hbm [resolvable:$true] %s5091
      %5097 = dma.vmem_to_hbm [thread:$0]  %s5090, 256, %s5092, [#allocation3], 128, 128, 8
    $region25: #{tpu_custom_call.1} parent=1 // pred_fallthru
      _
    // Predicated region
    $region26: #{tpu_custom_call.1} parent=1 // pred_check
      _
    $region27: #{tpu_custom_call.1} parent=1 // pred_check_branch
      %5099 = sbr.rel (0) target = $region29
    $region28: #{tpu_custom_call.1} parent=1 // pred_region
      %5101 = dma.done [#allocation3], 256
    $region29: #{tpu_custom_call.1} parent=1 // pred_fallthru
      _
    %5102 = vsyncpa [#allocation3], 1

</llo_original>
